<compile_context>
chip_gen: v7x
topology: tpu7x:2x2x1
jax: 0.10.0
libtpu: 0.0.40
codegen_flags: <defaults>
</compile_context>

<pallas_src>
import functools

import jax
import jax.numpy as jnp
from jax.experimental import pallas as pl
from jax.experimental.pallas import tpu as pltpu


# ----------------------------------------------------------------------------
# Kernel
# ----------------------------------------------------------------------------
def motion_ae_kernel(mask_ref, obs_ref,
                     efc_w_ref, efc_b_ref,
                     e_wih_ref, e_bih_ref, e_whh_ref, e_bhn_ref,
                     d_wih_ref, d_bih_ref, d_w1_ref, d_bhn_ref, f1_b_ref,
                     d_w2_ref, d_b2_ref,
                     out_ref, *, T, B, H):
    f32 = jnp.float32
    H2, H4, H3 = H // 2, H // 4, 3 * H
    dot = lambda a, b: jnp.dot(a, b, preferred_element_type=f32)

    def gru_combine(gx, hw, h, bhn_b):
        """Fused-gate GRU cell update; gate lane order is [n | r | z].

        gx = W_ih x + b_i* (+ b_hr / b_hz pre-folded); hw = W_hh h.
        PyTorch semantics: n = tanh(gx_n + r * (hw_n + b_hn)); h' = (1-z)n + zh.
        The n-gate / new-h math stays at lane offset 0 (layout reorder per the
        perf review's gate-slice audit).
        """
        s = gx + hw                                  # full-width add, 1 vreg
        rz = jax.nn.sigmoid(s[:, H:])                # (B, 2H) = [r | z]
        r, z = rz[:, :H], rz[:, H:]
        n = jnp.tanh(gx[:, :H] + r * (hw[:, :H] + bhn_b))
        return (1.0 - z) * n + z * h

    def step_rows(mat, t):
        """Rows of step t (all B batch entries) from a batch-major (B*T, N)."""
        return jnp.concatenate(
            [mat[b * T + t:b * T + t + 1, :] for b in range(B)], axis=0)

    # (B, T, 4) -> batch-major (B*T, 4) without any wrapper-side transpose.
    obs2d = jnp.concatenate([obs_ref[b] for b in range(B)], axis=0)

    # --------------- hoisted input-side work (wide matmuls, all T at once) ----
    xe = jnp.maximum(dot(obs2d, efc_w_ref[...]) + efc_b_ref[...], 0.0)   # (B*T, H/2)
    enc_gx = dot(xe, e_wih_ref[...]) + e_bih_ref[...]                    # (B*T, 3H)
    obs_gx = dot(obs2d, d_wih_ref[...]) + d_bih_ref[...]                 # (B*T, 3H)

    # Loop-invariant per-step extracts + teacher-forcing select vectors
    # (hoisted: not on the recurrence critical path, traced exactly once each).
    enc_rows = [step_rows(enc_gx, t) for t in range(T)]                  # (B, 3H)
    obs_rows = [step_rows(obs_gx, t) for t in range(T)]                  # (B, 3H)
    mvecs = [jnp.broadcast_to(mask_ref[t], (B, H3)) > 0 for t in range(T - 1)]

    # --------------------------- encoder recurrence ---------------------------
    e_whh = e_whh_ref[...]
    e_bhn_b = jnp.broadcast_to(e_bhn_ref[...], (B, H))
    h = jnp.zeros((B, H), f32)
    for t in range(T):                               # fully unrolled (static T)
        hw = jnp.zeros((B, H3), f32) if t == 0 else dot(h, e_whh)   # 1 MXU/step
        h = gru_combine(enc_rows[t], hw, h, e_bhn_b)
    enc_h = h

    # --------------------------- decoder recurrence ---------------------------
    d_w1 = d_w1_ref[...]                             # (H, 3H + H/4)  [W_hh | f1_w]
    d_w2 = d_w2_ref[...]                             # (H/4, 3H + 4)  [f2_w@W_ih | f2_w]
    d_bhn_b = jnp.broadcast_to(d_bhn_ref[...], (B, H))
    f1_b_b = jnp.broadcast_to(f1_b_ref[...], (B, H4))
    d_b2_b = jnp.broadcast_to(d_b2_ref[...], (B, H3 + 4))

    x = step_rows(obs2d, 0)                          # init_motion (B, 4)
    z1 = dot(enc_h, d_w1)                            # prime: hw_0 = z1[:, :3H]
    h = enc_h
    gxxb = obs_rows[0]                               # running x_t @ W_ih + b_ih
    for t in range(T):                               # fully unrolled
        # Input gates: teacher-forced (precomputed) vs. autoregressive running sum.
        gx = obs_rows[0] if t == 0 else jnp.where(mvecs[t - 1], obs_rows[t], gxxb)
        h = gru_combine(gx, z1[:, :H3], h, d_bhn_b)
        z1 = dot(h, d_w1)                            # fused: next hw | f1 pre-act
        y = jnp.maximum(z1[:, H3:] + f1_b_b, 0.0)    # ReLU(h @ f1_w + f1_b)
        z2 = dot(y, d_w2) + d_b2_b                   # fused: delta@W_ih | delta
        gxxb = gxxb + z2[:, :H3]
        x = x + z2[:, H3:]                           # cumulative residual
        out_ref[:, t, :] = x                         # per-step store (spare vst)


# ----------------------------------------------------------------------------
# Parameters (deterministic, synthetic) -- unfused layout matching nn.GRU
# ----------------------------------------------------------------------------
PARAM_KEYS = (
    "efc_w", "efc_b",
    "e_wir", "e_wiz", "e_win", "e_whr", "e_whz", "e_whn",
    "e_bir", "e_biz", "e_bin", "e_bhr", "e_bhz", "e_bhn",
    "d_wir", "d_wiz", "d_win", "d_whr", "d_whz", "d_whn",
    "d_bir", "d_biz", "d_bin", "d_bhr", "d_bhz", "d_bhn",
    "f1_w", "f1_b", "f2_w", "f2_b",
)


def init_params(key, hidden):
    H, H2, H4 = hidden, hidden // 2, hidden // 4
    shapes = {
        "efc_w": (4, H2), "efc_b": (1, H2),
        "e_wir": (H2, H), "e_wiz": (H2, H), "e_win": (H2, H),
        "e_whr": (H, H), "e_whz": (H, H), "e_whn": (H, H),
        "e_bir": (1, H), "e_biz": (1, H), "e_bin": (1, H),
        "e_bhr": (1, H), "e_bhz": (1, H), "e_bhn": (1, H),
        "d_wir": (4, H), "d_wiz": (4, H), "d_win": (4, H),
        "d_whr": (H, H), "d_whz": (H, H), "d_whn": (H, H),
        "d_bir": (1, H), "d_biz": (1, H), "d_bin": (1, H),
        "d_bhr": (1, H), "d_bhz": (1, H), "d_bhn": (1, H),
        "f1_w": (H, H4), "f1_b": (1, H4),
        "f2_w": (H4, 4), "f2_b": (1, 4),
    }
    bound = 1.0 / float(hidden) ** 0.5
    keys = jax.random.split(key, len(PARAM_KEYS))
    return {k: jax.random.uniform(sub, shapes[k], jnp.float32, -bound, bound)
            for k, sub in zip(PARAM_KEYS, keys)}


# ----------------------------------------------------------------------------
# One-time parameter fusion (hoisted out of the per-call path)
# ----------------------------------------------------------------------------
FUSED_KEYS = ("efc_w", "efc_b",
              "e_wih", "e_bih", "e_whh", "e_bhn",
              "d_wih", "d_bih", "d_w1", "d_bhn", "f1_b", "d_w2", "d_b2")


def fuse_params(p):
    """Fuse GRU gates in [n | r | z] lane order and pre-fuse decoder matmuls."""
    cat = lambda *xs: jnp.concatenate(xs, axis=1)
    e_wih = cat(p["e_win"], p["e_wir"], p["e_wiz"])                 # (H/2, 3H)
    e_whh = cat(p["e_whn"], p["e_whr"], p["e_whz"])                 # (H, 3H)
    e_bih = cat(p["e_bin"],                                         # b_in (b_hn separate)
                p["e_bir"] + p["e_bhr"],                            # fold b_ir + b_hr
                p["e_biz"] + p["e_bhz"])                            # fold b_iz + b_hz
    d_wih = cat(p["d_win"], p["d_wir"], p["d_wiz"])                 # (4, 3H)
    d_whh = cat(p["d_whn"], p["d_whr"], p["d_whz"])                 # (H, 3H)
    d_bih = cat(p["d_bin"], p["d_bir"] + p["d_bhr"], p["d_biz"] + p["d_bhz"])
    d_w1 = jnp.concatenate([d_whh, p["f1_w"]], axis=1)              # (H, 3H + H/4)
    f2d = p["f2_w"] @ d_wih                                         # (H/4, 3H)
    f2bd = p["f2_b"] @ d_wih                                        # (1, 3H)
    d_w2 = jnp.concatenate([f2d, p["f2_w"]], axis=1)                # (H/4, 3H + 4)
    d_b2 = jnp.concatenate([f2bd, p["f2_b"]], axis=1)               # (1, 3H + 4)
    return {
        "efc_w": p["efc_w"], "efc_b": p["efc_b"],
        "e_wih": e_wih, "e_bih": e_bih, "e_whh": e_whh, "e_bhn": p["e_bhn"],
        "d_wih": d_wih, "d_bih": d_bih, "d_w1": d_w1, "d_bhn": p["d_bhn"],
        "f1_b": p["f1_b"], "d_w2": d_w2, "d_b2": d_b2,
    }


# ----------------------------------------------------------------------------
# Jitted forward wrapper (no per-call transposes / reshapes / concats)
# ----------------------------------------------------------------------------
@jax.jit
def motion_ae_forward(observation, tf_mask, fused):
    """observation: (B, T, 4) f32, tf_mask: (T-1,) bool, fused: pre-fused params."""
    B, T, F = observation.shape
    H = fused["e_whh"].shape[0]

    obs = observation.astype(jnp.float32)
    mask_i32 = tf_mask.astype(jnp.int32)
    flat = [fused[k] for k in FUSED_KEYS]

    kernel = functools.partial(motion_ae_kernel, T=T, B=B, H=H)
    # Single invocation, no grid: ~30 KB footprint, latency-bound serial chain.
    return pl.pallas_call(
        kernel,
        out_shape=jax.ShapeDtypeStruct((B, T, F), jnp.float32),
        in_specs=[pl.BlockSpec(memory_space=pltpu.MemorySpace.SMEM)]
                 + [pl.BlockSpec(memory_space=pltpu.MemorySpace.VMEM)] * (1 + len(flat)),
        out_specs=pl.BlockSpec(memory_space=pltpu.MemorySpace.VMEM),
    )(mask_i32, obs, *flat)


# ----------------------------------------------------------------------------
# Pure-JAX reference (same math, unfused params) for verification
# ----------------------------------------------------------------------------
def reference_forward(observation, mask, p):
    B, T, _ = observation.shape
    H = p["e_whr"].shape[0]

    def gru(x, h, pre):
        r = jax.nn.sigmoid(x @ p[pre + "wir"] + p[pre + "bir"]
                           + h @ p[pre + "whr"] + p[pre + "bhr"])
        z = jax.nn.sigmoid(x @ p[pre + "wiz"] + p[pre + "biz"]
                           + h @ p[pre + "whz"] + p[pre + "bhz"])
        n = jnp.tanh(x @ p[pre + "win"] + p[pre + "bin"]
                     + r * (h @ p[pre + "whn"] + p[pre + "bhn"]))
        return (1.0 - z) * n + z * h

    def dec_fc(h):
        y = jnp.maximum(h @ p["f1_w"] + p["f1_b"], 0.0)
        return y @ p["f2_w"] + p["f2_b"]

    h = jnp.zeros((B, H), jnp.float32)
    for t in range(T):
        xe = jnp.maximum(observation[:, t, :] @ p["efc_w"] + p["efc_b"], 0.0)
        h = gru(xe, h, "e_")
    enc_h = h

    init_motion = observation[:, 0, :]
    h = gru(init_motion, enc_h, "d_")
    x = dec_fc(h) + init_motion
    outs = [x]
    for t in range(1, T):
        inp = jnp.where(mask[t - 1], observation[:, t, :], x)
        h = gru(inp, h, "d_")
        x = dec_fc(h) + x
        outs.append(x)
    return jnp.stack(outs, axis=1)


# ----------------------------------------------------------------------------
if __name__ == "__main__":
    key = jax.random.PRNGKey(0)
    k_obs, k_mask, k_par = jax.random.split(key, 3)

    B, T, HIDDEN = 2, 8, 32
    tf = 0.5

    observation = jax.random.normal(k_obs, (B, T, 4), jnp.float32)
    # TODO(synk): the original module draws the teacher-forcing mask with
    # np.random.uniform inside forward(); here it is drawn deterministically
    # with jax.random and passed into the kernel as data (selected via where).
    mask = jax.random.uniform(k_mask, (T - 1,)) < tf
    params = init_params(k_par, HIDDEN)
    fused = fuse_params(params)     # hoisted out of the per-call path (perf feedback)

    out = motion_ae_forward(observation, mask, fused)
    out = jax.block_until_ready(out)
    assert out.shape == (B, T, 4)

    ref = reference_forward(observation, mask, params)
    err = float(jnp.max(jnp.abs(out - ref)))
    assert err < 1e-3, f"max abs err {err}"

    print("KERNEL_OK")
</pallas_src>

<mosaic_0001>
module attributes {stable_mosaic.version = 11 : i64} {
  func.func @motion_ae_kernel(%arg0: memref<7xi32, #tpu.memory_space<smem>>, %arg1: memref<2x8x4xf32, #tpu.memory_space<vmem>>, %arg2: memref<4x16xf32, #tpu.memory_space<vmem>>, %arg3: memref<1x16xf32, #tpu.memory_space<vmem>>, %arg4: memref<16x96xf32, #tpu.memory_space<vmem>>, %arg5: memref<1x96xf32, #tpu.memory_space<vmem>>, %arg6: memref<32x96xf32, #tpu.memory_space<vmem>>, %arg7: memref<1x32xf32, #tpu.memory_space<vmem>>, %arg8: memref<4x96xf32, #tpu.memory_space<vmem>>, %arg9: memref<1x96xf32, #tpu.memory_space<vmem>>, %arg10: memref<32x104xf32, #tpu.memory_space<vmem>>, %arg11: memref<1x32xf32, #tpu.memory_space<vmem>>, %arg12: memref<1x8xf32, #tpu.memory_space<vmem>>, %arg13: memref<8x100xf32, #tpu.memory_space<vmem>>, %arg14: memref<1x100xf32, #tpu.memory_space<vmem>>, %arg15: memref<2x8x4xf32, #tpu.memory_space<vmem>>) attributes {dimension_semantics = [], scalar_prefetch = 0 : i64, scratch_operands = 0 : i64, tpu.core_type = #tpu.core_type<tc>} {
    %c0 = arith.constant 0 : index
    %c0_0 = arith.constant 0 : index
    %c0_1 = arith.constant 0 : index
    %0 = vector.load %arg1[%c0, %c0_0, %c0_1] : memref<2x8x4xf32, #tpu.memory_space<vmem>>, vector<1x8x4xf32>
    %1 = vector.shape_cast %0 : vector<1x8x4xf32> to vector<8x4xf32>
    %c1 = arith.constant 1 : index
    %c0_2 = arith.constant 0 : index
    %c0_3 = arith.constant 0 : index
    %2 = vector.load %arg1[%c1, %c0_2, %c0_3] : memref<2x8x4xf32, #tpu.memory_space<vmem>>, vector<1x8x4xf32>
    %3 = vector.shape_cast %2 : vector<1x8x4xf32> to vector<8x4xf32>
    %4 = tpu.concatenate %1, %3 in 0 : vector<8x4xf32>, vector<8x4xf32> -> vector<16x4xf32>
    %c0_4 = arith.constant 0 : index
    %c0_5 = arith.constant 0 : index
    %5 = vector.load %arg2[%c0_4, %c0_5] : memref<4x16xf32, #tpu.memory_space<vmem>>, vector<4x16xf32>
    %cst = arith.constant dense<0.000000e+00> : vector<16x16xf32>
    %6 = tpu.matmul %4, %5, %cst {dimension_numbers = #tpu.dot_dimension_numbers<[1], [0], [0], [1], [0, 0, 1, 1], [], []>} : vector<16x4xf32>, vector<4x16xf32>, vector<16x16xf32> -> vector<16x16xf32>
    %c0_6 = arith.constant 0 : index
    %c0_7 = arith.constant 0 : index
    %7 = vector.load %arg3[%c0_6, %c0_7] : memref<1x16xf32, #tpu.memory_space<vmem>>, vector<1x16xf32>
    %8 = vector.broadcast %7 : vector<1x16xf32> to vector<16x16xf32>
    %9 = arith.addf %6, %8 : vector<16x16xf32>
    %cst_8 = arith.constant 0.000000e+00 : f32
    %10 = vector.broadcast %cst_8 : f32 to vector<16x16xf32>
    %11 = arith.maximumf %9, %10 : vector<16x16xf32>
    %c0_9 = arith.constant 0 : index
    %c0_10 = arith.constant 0 : index
    %12 = vector.load %arg4[%c0_9, %c0_10] : memref<16x96xf32, #tpu.memory_space<vmem>>, vector<16x96xf32>
    %cst_11 = arith.constant dense<0.000000e+00> : vector<16x96xf32>
    %13 = tpu.matmul %11, %12, %cst_11 {dimension_numbers = #tpu.dot_dimension_numbers<[1], [0], [0], [1], [0, 0, 1, 1], [], []>} : vector<16x16xf32>, vector<16x96xf32>, vector<16x96xf32> -> vector<16x96xf32>
    %c0_12 = arith.constant 0 : index
    %c0_13 = arith.constant 0 : index
    %14 = vector.load %arg5[%c0_12, %c0_13] : memref<1x96xf32, #tpu.memory_space<vmem>>, vector<1x96xf32>
    %15 = vector.broadcast %14 : vector<1x96xf32> to vector<16x96xf32>
    %16 = arith.addf %13, %15 : vector<16x96xf32>
    %c0_14 = arith.constant 0 : index
    %c0_15 = arith.constant 0 : index
    %17 = vector.load %arg8[%c0_14, %c0_15] : memref<4x96xf32, #tpu.memory_space<vmem>>, vector<4x96xf32>
    %cst_16 = arith.constant dense<0.000000e+00> : vector<16x96xf32>
    %18 = tpu.matmul %4, %17, %cst_16 {dimension_numbers = #tpu.dot_dimension_numbers<[1], [0], [0], [1], [0, 0, 1, 1], [], []>} : vector<16x4xf32>, vector<4x96xf32>, vector<16x96xf32> -> vector<16x96xf32>
    %c0_17 = arith.constant 0 : index
    %c0_18 = arith.constant 0 : index
    %19 = vector.load %arg9[%c0_17, %c0_18] : memref<1x96xf32, #tpu.memory_space<vmem>>, vector<1x96xf32>
    %20 = vector.broadcast %19 : vector<1x96xf32> to vector<16x96xf32>
    %21 = arith.addf %18, %20 : vector<16x96xf32>
    %22 = vector.extract_strided_slice %16 {offsets = [0, 0], sizes = [1, 96], strides = [1, 1]} : vector<16x96xf32> to vector<1x96xf32>
    %23 = vector.extract_strided_slice %16 {offsets = [8, 0], sizes = [1, 96], strides = [1, 1]} : vector<16x96xf32> to vector<1x96xf32>
    %24 = tpu.concatenate %22, %23 in 0 : vector<1x96xf32>, vector<1x96xf32> -> vector<2x96xf32>
    %25 = vector.extract_strided_slice %16 {offsets = [1, 0], sizes = [1, 96], strides = [1, 1]} : vector<16x96xf32> to vector<1x96xf32>
    %26 = vector.extract_strided_slice %16 {offsets = [9, 0], sizes = [1, 96], strides = [1, 1]} : vector<16x96xf32> to vector<1x96xf32>
    %27 = tpu.concatenate %25, %26 in 0 : vector<1x96xf32>, vector<1x96xf32> -> vector<2x96xf32>
    %28 = vector.extract_strided_slice %16 {offsets = [2, 0], sizes = [1, 96], strides = [1, 1]} : vector<16x96xf32> to vector<1x96xf32>
    %29 = vector.extract_strided_slice %16 {offsets = [10, 0], sizes = [1, 96], strides = [1, 1]} : vector<16x96xf32> to vector<1x96xf32>
    %30 = tpu.concatenate %28, %29 in 0 : vector<1x96xf32>, vector<1x96xf32> -> vector<2x96xf32>
    %31 = vector.extract_strided_slice %16 {offsets = [3, 0], sizes = [1, 96], strides = [1, 1]} : vector<16x96xf32> to vector<1x96xf32>
    %32 = vector.extract_strided_slice %16 {offsets = [11, 0], sizes = [1, 96], strides = [1, 1]} : vector<16x96xf32> to vector<1x96xf32>
    %33 = tpu.concatenate %31, %32 in 0 : vector<1x96xf32>, vector<1x96xf32> -> vector<2x96xf32>
    %34 = vector.extract_strided_slice %16 {offsets = [4, 0], sizes = [1, 96], strides = [1, 1]} : vector<16x96xf32> to vector<1x96xf32>
    %35 = vector.extract_strided_slice %16 {offsets = [12, 0], sizes = [1, 96], strides = [1, 1]} : vector<16x96xf32> to vector<1x96xf32>
    %36 = tpu.concatenate %34, %35 in 0 : vector<1x96xf32>, vector<1x96xf32> -> vector<2x96xf32>
    %37 = vector.extract_strided_slice %16 {offsets = [5, 0], sizes = [1, 96], strides = [1, 1]} : vector<16x96xf32> to vector<1x96xf32>
    %38 = vector.extract_strided_slice %16 {offsets = [13, 0], sizes = [1, 96], strides = [1, 1]} : vector<16x96xf32> to vector<1x96xf32>
    %39 = tpu.concatenate %37, %38 in 0 : vector<1x96xf32>, vector<1x96xf32> -> vector<2x96xf32>
    %40 = vector.extract_strided_slice %16 {offsets = [6, 0], sizes = [1, 96], strides = [1, 1]} : vector<16x96xf32> to vector<1x96xf32>
    %41 = vector.extract_strided_slice %16 {offsets = [14, 0], sizes = [1, 96], strides = [1, 1]} : vector<16x96xf32> to vector<1x96xf32>
    %42 = tpu.concatenate %40, %41 in 0 : vector<1x96xf32>, vector<1x96xf32> -> vector<2x96xf32>
    %43 = vector.extract_strided_slice %16 {offsets = [7, 0], sizes = [1, 96], strides = [1, 1]} : vector<16x96xf32> to vector<1x96xf32>
    %44 = vector.extract_strided_slice %16 {offsets = [15, 0], sizes = [1, 96], strides = [1, 1]} : vector<16x96xf32> to vector<1x96xf32>
    %45 = tpu.concatenate %43, %44 in 0 : vector<1x96xf32>, vector<1x96xf32> -> vector<2x96xf32>
    %46 = vector.extract_strided_slice %21 {offsets = [0, 0], sizes = [1, 96], strides = [1, 1]} : vector<16x96xf32> to vector<1x96xf32>
    %47 = vector.extract_strided_slice %21 {offsets = [8, 0], sizes = [1, 96], strides = [1, 1]} : vector<16x96xf32> to vector<1x96xf32>
    %48 = tpu.concatenate %46, %47 in 0 : vector<1x96xf32>, vector<1x96xf32> -> vector<2x96xf32>
    %49 = vector.extract_strided_slice %21 {offsets = [1, 0], sizes = [1, 96], strides = [1, 1]} : vector<16x96xf32> to vector<1x96xf32>
    %50 = vector.extract_strided_slice %21 {offsets = [9, 0], sizes = [1, 96], strides = [1, 1]} : vector<16x96xf32> to vector<1x96xf32>
    %51 = tpu.concatenate %49, %50 in 0 : vector<1x96xf32>, vector<1x96xf32> -> vector<2x96xf32>
    %52 = vector.extract_strided_slice %21 {offsets = [2, 0], sizes = [1, 96], strides = [1, 1]} : vector<16x96xf32> to vector<1x96xf32>
    %53 = vector.extract_strided_slice %21 {offsets = [10, 0], sizes = [1, 96], strides = [1, 1]} : vector<16x96xf32> to vector<1x96xf32>
    %54 = tpu.concatenate %52, %53 in 0 : vector<1x96xf32>, vector<1x96xf32> -> vector<2x96xf32>
    %55 = vector.extract_strided_slice %21 {offsets = [3, 0], sizes = [1, 96], strides = [1, 1]} : vector<16x96xf32> to vector<1x96xf32>
    %56 = vector.extract_strided_slice %21 {offsets = [11, 0], sizes = [1, 96], strides = [1, 1]} : vector<16x96xf32> to vector<1x96xf32>
    %57 = tpu.concatenate %55, %56 in 0 : vector<1x96xf32>, vector<1x96xf32> -> vector<2x96xf32>
    %58 = vector.extract_strided_slice %21 {offsets = [4, 0], sizes = [1, 96], strides = [1, 1]} : vector<16x96xf32> to vector<1x96xf32>
    %59 = vector.extract_strided_slice %21 {offsets = [12, 0], sizes = [1, 96], strides = [1, 1]} : vector<16x96xf32> to vector<1x96xf32>
    %60 = tpu.concatenate %58, %59 in 0 : vector<1x96xf32>, vector<1x96xf32> -> vector<2x96xf32>
    %61 = vector.extract_strided_slice %21 {offsets = [5, 0], sizes = [1, 96], strides = [1, 1]} : vector<16x96xf32> to vector<1x96xf32>
    %62 = vector.extract_strided_slice %21 {offsets = [13, 0], sizes = [1, 96], strides = [1, 1]} : vector<16x96xf32> to vector<1x96xf32>
    %63 = tpu.concatenate %61, %62 in 0 : vector<1x96xf32>, vector<1x96xf32> -> vector<2x96xf32>
    %64 = vector.extract_strided_slice %21 {offsets = [6, 0], sizes = [1, 96], strides = [1, 1]} : vector<16x96xf32> to vector<1x96xf32>
    %65 = vector.extract_strided_slice %21 {offsets = [14, 0], sizes = [1, 96], strides = [1, 1]} : vector<16x96xf32> to vector<1x96xf32>
    %66 = tpu.concatenate %64, %65 in 0 : vector<1x96xf32>, vector<1x96xf32> -> vector<2x96xf32>
    %67 = vector.extract_strided_slice %21 {offsets = [7, 0], sizes = [1, 96], strides = [1, 1]} : vector<16x96xf32> to vector<1x96xf32>
    %68 = vector.extract_strided_slice %21 {offsets = [15, 0], sizes = [1, 96], strides = [1, 1]} : vector<16x96xf32> to vector<1x96xf32>
    %69 = tpu.concatenate %67, %68 in 0 : vector<1x96xf32>, vector<1x96xf32> -> vector<2x96xf32>
    %c0_19 = arith.constant 0 : index
    %70 = memref.load %arg0[%c0_19] : memref<7xi32, #tpu.memory_space<smem>>
    %71 = vector.broadcast %70 : i32 to vector<2x96xi32>
    %c0_i32 = arith.constant 0 : i32
    %72 = vector.broadcast %c0_i32 : i32 to vector<2x96xi32>
    %73 = arith.cmpi sgt, %71, %72 : vector<2x96xi32>
    %c1_20 = arith.constant 1 : index
    %74 = memref.load %arg0[%c1_20] : memref<7xi32, #tpu.memory_space<smem>>
    %75 = vector.broadcast %74 : i32 to vector<2x96xi32>
    %c0_i32_21 = arith.constant 0 : i32
    %76 = vector.broadcast %c0_i32_21 : i32 to vector<2x96xi32>
    %77 = arith.cmpi sgt, %75, %76 : vector<2x96xi32>
    %c2 = arith.constant 2 : index
    %78 = memref.load %arg0[%c2] : memref<7xi32, #tpu.memory_space<smem>>
    %79 = vector.broadcast %78 : i32 to vector<2x96xi32>
    %c0_i32_22 = arith.constant 0 : i32
    %80 = vector.broadcast %c0_i32_22 : i32 to vector<2x96xi32>
    %81 = arith.cmpi sgt, %79, %80 : vector<2x96xi32>
    %c3 = arith.constant 3 : index
    %82 = memref.load %arg0[%c3] : memref<7xi32, #tpu.memory_space<smem>>
    %83 = vector.broadcast %82 : i32 to vector<2x96xi32>
    %c0_i32_23 = arith.constant 0 : i32
    %84 = vector.broadcast %c0_i32_23 : i32 to vector<2x96xi32>
    %85 = arith.cmpi sgt, %83, %84 : vector<2x96xi32>
    %c4 = arith.constant 4 : index
    %86 = memref.load %arg0[%c4] : memref<7xi32, #tpu.memory_space<smem>>
    %87 = vector.broadcast %86 : i32 to vector<2x96xi32>
    %c0_i32_24 = arith.constant 0 : i32
    %88 = vector.broadcast %c0_i32_24 : i32 to vector<2x96xi32>
    %89 = arith.cmpi sgt, %87, %88 : vector<2x96xi32>
    %c5 = arith.constant 5 : index
    %90 = memref.load %arg0[%c5] : memref<7xi32, #tpu.memory_space<smem>>
    %91 = vector.broadcast %90 : i32 to vector<2x96xi32>
    %c0_i32_25 = arith.constant 0 : i32
    %92 = vector.broadcast %c0_i32_25 : i32 to vector<2x96xi32>
    %93 = arith.cmpi sgt, %91, %92 : vector<2x96xi32>
    %c6 = arith.constant 6 : index
    %94 = memref.load %arg0[%c6] : memref<7xi32, #tpu.memory_space<smem>>
    %95 = vector.broadcast %94 : i32 to vector<2x96xi32>
    %c0_i32_26 = arith.constant 0 : i32
    %96 = vector.broadcast %c0_i32_26 : i32 to vector<2x96xi32>
    %97 = arith.cmpi sgt, %95, %96 : vector<2x96xi32>
    %c0_27 = arith.constant 0 : index
    %c0_28 = arith.constant 0 : index
    %98 = vector.load %arg6[%c0_27, %c0_28] : memref<32x96xf32, #tpu.memory_space<vmem>>, vector<32x96xf32>
    %c0_29 = arith.constant 0 : index
    %c0_30 = arith.constant 0 : index
    %99 = vector.load %arg7[%c0_29, %c0_30] : memref<1x32xf32, #tpu.memory_space<vmem>>, vector<1x32xf32>
    %100 = vector.shape_cast %99 : vector<1x32xf32> to vector<1x32xf32>
    %101 = vector.broadcast %100 : vector<1x32xf32> to vector<2x32xf32>
    %cst_31 = arith.constant 0.000000e+00 : f32
    %102 = vector.broadcast %cst_31 : f32 to vector<2x32xf32>
    %cst_32 = arith.constant 0.000000e+00 : f32
    %103 = vector.broadcast %cst_32 : f32 to vector<2x96xf32>
    %104 = arith.addf %24, %103 : vector<2x96xf32>
    %105 = vector.extract_strided_slice %104 {offsets = [0, 32], sizes = [2, 64], strides = [1, 1]} : vector<2x96xf32> to vector<2x64xf32>
    %106 = arith.negf %105 : vector<2x64xf32>
    %107 = math.exp %106 : vector<2x64xf32>
    %cst_33 = arith.constant 1.000000e+00 : f32
    %108 = vector.broadcast %cst_33 : f32 to vector<2x64xf32>
    %109 = arith.addf %108, %107 : vector<2x64xf32>
    %110 = arith.divf %108, %109 : vector<2x64xf32>
    %111 = vector.extract_strided_slice %110 {offsets = [0, 0], sizes = [2, 32], strides = [1, 1]} : vector<2x64xf32> to vector<2x32xf32>
    %112 = vector.extract_strided_slice %110 {offsets = [0, 32], sizes = [2, 32], strides = [1, 1]} : vector<2x64xf32> to vector<2x32xf32>
    %113 = vector.extract_strided_slice %24 {offsets = [0, 0], sizes = [2, 32], strides = [1, 1]} : vector<2x96xf32> to vector<2x32xf32>
    %114 = vector.extract_strided_slice %103 {offsets = [0, 0], sizes = [2, 32], strides = [1, 1]} : vector<2x96xf32> to vector<2x32xf32>
    %115 = arith.addf %114, %101 : vector<2x32xf32>
    %116 = arith.mulf %111, %115 : vector<2x32xf32>
    %117 = arith.addf %113, %116 : vector<2x32xf32>
    %118 = math.tanh %117 : vector<2x32xf32>
    %cst_34 = arith.constant 1.000000e+00 : f32
    %119 = vector.broadcast %cst_34 : f32 to vector<2x32xf32>
    %120 = arith.subf %119, %112 : vector<2x32xf32>
    %121 = arith.mulf %120, %118 : vector<2x32xf32>
    %122 = arith.mulf %112, %102 : vector<2x32xf32>
    %123 = arith.addf %121, %122 : vector<2x32xf32>
    %cst_35 = arith.constant dense<0.000000e+00> : vector<2x96xf32>
    %124 = tpu.matmul %123, %98, %cst_35 {dimension_numbers = #tpu.dot_dimension_numbers<[1], [0], [0], [1], [0, 0, 1, 1], [], []>} : vector<2x32xf32>, vector<32x96xf32>, vector<2x96xf32> -> vector<2x96xf32>
    %125 = arith.addf %27, %124 : vector<2x96xf32>
    %126 = vector.extract_strided_slice %125 {offsets = [0, 32], sizes = [2, 64], strides = [1, 1]} : vector<2x96xf32> to vector<2x64xf32>
    %127 = arith.negf %126 : vector<2x64xf32>
    %128 = math.exp %127 : vector<2x64xf32>
    %cst_36 = arith.constant 1.000000e+00 : f32
    %129 = vector.broadcast %cst_36 : f32 to vector<2x64xf32>
    %130 = arith.addf %129, %128 : vector<2x64xf32>
    %131 = arith.divf %129, %130 : vector<2x64xf32>
    %132 = vector.extract_strided_slice %131 {offsets = [0, 0], sizes = [2, 32], strides = [1, 1]} : vector<2x64xf32> to vector<2x32xf32>
    %133 = vector.extract_strided_slice %131 {offsets = [0, 32], sizes = [2, 32], strides = [1, 1]} : vector<2x64xf32> to vector<2x32xf32>
    %134 = vector.extract_strided_slice %27 {offsets = [0, 0], sizes = [2, 32], strides = [1, 1]} : vector<2x96xf32> to vector<2x32xf32>
    %135 = vector.extract_strided_slice %124 {offsets = [0, 0], sizes = [2, 32], strides = [1, 1]} : vector<2x96xf32> to vector<2x32xf32>
    %136 = arith.addf %135, %101 : vector<2x32xf32>
    %137 = arith.mulf %132, %136 : vector<2x32xf32>
    %138 = arith.addf %134, %137 : vector<2x32xf32>
    %139 = math.tanh %138 : vector<2x32xf32>
    %cst_37 = arith.constant 1.000000e+00 : f32
    %140 = vector.broadcast %cst_37 : f32 to vector<2x32xf32>
    %141 = arith.subf %140, %133 : vector<2x32xf32>
    %142 = arith.mulf %141, %139 : vector<2x32xf32>
    %143 = arith.mulf %133, %123 : vector<2x32xf32>
    %144 = arith.addf %142, %143 : vector<2x32xf32>
    %cst_38 = arith.constant dense<0.000000e+00> : vector<2x96xf32>
    %145 = tpu.matmul %144, %98, %cst_38 {dimension_numbers = #tpu.dot_dimension_numbers<[1], [0], [0], [1], [0, 0, 1, 1], [], []>} : vector<2x32xf32>, vector<32x96xf32>, vector<2x96xf32> -> vector<2x96xf32>
    %146 = arith.addf %30, %145 : vector<2x96xf32>
    %147 = vector.extract_strided_slice %146 {offsets = [0, 32], sizes = [2, 64], strides = [1, 1]} : vector<2x96xf32> to vector<2x64xf32>
    %148 = arith.negf %147 : vector<2x64xf32>
    %149 = math.exp %148 : vector<2x64xf32>
    %cst_39 = arith.constant 1.000000e+00 : f32
    %150 = vector.broadcast %cst_39 : f32 to vector<2x64xf32>
    %151 = arith.addf %150, %149 : vector<2x64xf32>
    %152 = arith.divf %150, %151 : vector<2x64xf32>
    %153 = vector.extract_strided_slice %152 {offsets = [0, 0], sizes = [2, 32], strides = [1, 1]} : vector<2x64xf32> to vector<2x32xf32>
    %154 = vector.extract_strided_slice %152 {offsets = [0, 32], sizes = [2, 32], strides = [1, 1]} : vector<2x64xf32> to vector<2x32xf32>
    %155 = vector.extract_strided_slice %30 {offsets = [0, 0], sizes = [2, 32], strides = [1, 1]} : vector<2x96xf32> to vector<2x32xf32>
    %156 = vector.extract_strided_slice %145 {offsets = [0, 0], sizes = [2, 32], strides = [1, 1]} : vector<2x96xf32> to vector<2x32xf32>
    %157 = arith.addf %156, %101 : vector<2x32xf32>
    %158 = arith.mulf %153, %157 : vector<2x32xf32>
    %159 = arith.addf %155, %158 : vector<2x32xf32>
    %160 = math.tanh %159 : vector<2x32xf32>
    %cst_40 = arith.constant 1.000000e+00 : f32
    %161 = vector.broadcast %cst_40 : f32 to vector<2x32xf32>
    %162 = arith.subf %161, %154 : vector<2x32xf32>
    %163 = arith.mulf %162, %160 : vector<2x32xf32>
    %164 = arith.mulf %154, %144 : vector<2x32xf32>
    %165 = arith.addf %163, %164 : vector<2x32xf32>
    %cst_41 = arith.constant dense<0.000000e+00> : vector<2x96xf32>
    %166 = tpu.matmul %165, %98, %cst_41 {dimension_numbers = #tpu.dot_dimension_numbers<[1], [0], [0], [1], [0, 0, 1, 1], [], []>} : vector<2x32xf32>, vector<32x96xf32>, vector<2x96xf32> -> vector<2x96xf32>
    %167 = arith.addf %33, %166 : vector<2x96xf32>
    %168 = vector.extract_strided_slice %167 {offsets = [0, 32], sizes = [2, 64], strides = [1, 1]} : vector<2x96xf32> to vector<2x64xf32>
    %169 = arith.negf %168 : vector<2x64xf32>
    %170 = math.exp %169 : vector<2x64xf32>
    %cst_42 = arith.constant 1.000000e+00 : f32
    %171 = vector.broadcast %cst_42 : f32 to vector<2x64xf32>
    %172 = arith.addf %171, %170 : vector<2x64xf32>
    %173 = arith.divf %171, %172 : vector<2x64xf32>
    %174 = vector.extract_strided_slice %173 {offsets = [0, 0], sizes = [2, 32], strides = [1, 1]} : vector<2x64xf32> to vector<2x32xf32>
    %175 = vector.extract_strided_slice %173 {offsets = [0, 32], sizes = [2, 32], strides = [1, 1]} : vector<2x64xf32> to vector<2x32xf32>
    %176 = vector.extract_strided_slice %33 {offsets = [0, 0], sizes = [2, 32], strides = [1, 1]} : vector<2x96xf32> to vector<2x32xf32>
    %177 = vector.extract_strided_slice %166 {offsets = [0, 0], sizes = [2, 32], strides = [1, 1]} : vector<2x96xf32> to vector<2x32xf32>
    %178 = arith.addf %177, %101 : vector<2x32xf32>
    %179 = arith.mulf %174, %178 : vector<2x32xf32>
    %180 = arith.addf %176, %179 : vector<2x32xf32>
    %181 = math.tanh %180 : vector<2x32xf32>
    %cst_43 = arith.constant 1.000000e+00 : f32
    %182 = vector.broadcast %cst_43 : f32 to vector<2x32xf32>
    %183 = arith.subf %182, %175 : vector<2x32xf32>
    %184 = arith.mulf %183, %181 : vector<2x32xf32>
    %185 = arith.mulf %175, %165 : vector<2x32xf32>
    %186 = arith.addf %184, %185 : vector<2x32xf32>
    %cst_44 = arith.constant dense<0.000000e+00> : vector<2x96xf32>
    %187 = tpu.matmul %186, %98, %cst_44 {dimension_numbers = #tpu.dot_dimension_numbers<[1], [0], [0], [1], [0, 0, 1, 1], [], []>} : vector<2x32xf32>, vector<32x96xf32>, vector<2x96xf32> -> vector<2x96xf32>
    %188 = arith.addf %36, %187 : vector<2x96xf32>
    %189 = vector.extract_strided_slice %188 {offsets = [0, 32], sizes = [2, 64], strides = [1, 1]} : vector<2x96xf32> to vector<2x64xf32>
    %190 = arith.negf %189 : vector<2x64xf32>
    %191 = math.exp %190 : vector<2x64xf32>
    %cst_45 = arith.constant 1.000000e+00 : f32
    %192 = vector.broadcast %cst_45 : f32 to vector<2x64xf32>
    %193 = arith.addf %192, %191 : vector<2x64xf32>
    %194 = arith.divf %192, %193 : vector<2x64xf32>
    %195 = vector.extract_strided_slice %194 {offsets = [0, 0], sizes = [2, 32], strides = [1, 1]} : vector<2x64xf32> to vector<2x32xf32>
    %196 = vector.extract_strided_slice %194 {offsets = [0, 32], sizes = [2, 32], strides = [1, 1]} : vector<2x64xf32> to vector<2x32xf32>
    %197 = vector.extract_strided_slice %36 {offsets = [0, 0], sizes = [2, 32], strides = [1, 1]} : vector<2x96xf32> to vector<2x32xf32>
    %198 = vector.extract_strided_slice %187 {offsets = [0, 0], sizes = [2, 32], strides = [1, 1]} : vector<2x96xf32> to vector<2x32xf32>
    %199 = arith.addf %198, %101 : vector<2x32xf32>
    %200 = arith.mulf %195, %199 : vector<2x32xf32>
    %201 = arith.addf %197, %200 : vector<2x32xf32>
    %202 = math.tanh %201 : vector<2x32xf32>
    %cst_46 = arith.constant 1.000000e+00 : f32
    %203 = vector.broadcast %cst_46 : f32 to vector<2x32xf32>
    %204 = arith.subf %203, %196 : vector<2x32xf32>
    %205 = arith.mulf %204, %202 : vector<2x32xf32>
    %206 = arith.mulf %196, %186 : vector<2x32xf32>
    %207 = arith.addf %205, %206 : vector<2x32xf32>
    %cst_47 = arith.constant dense<0.000000e+00> : vector<2x96xf32>
    %208 = tpu.matmul %207, %98, %cst_47 {dimension_numbers = #tpu.dot_dimension_numbers<[1], [0], [0], [1], [0, 0, 1, 1], [], []>} : vector<2x32xf32>, vector<32x96xf32>, vector<2x96xf32> -> vector<2x96xf32>
    %209 = arith.addf %39, %208 : vector<2x96xf32>
    %210 = vector.extract_strided_slice %209 {offsets = [0, 32], sizes = [2, 64], strides = [1, 1]} : vector<2x96xf32> to vector<2x64xf32>
    %211 = arith.negf %210 : vector<2x64xf32>
    %212 = math.exp %211 : vector<2x64xf32>
    %cst_48 = arith.constant 1.000000e+00 : f32
    %213 = vector.broadcast %cst_48 : f32 to vector<2x64xf32>
    %214 = arith.addf %213, %212 : vector<2x64xf32>
    %215 = arith.divf %213, %214 : vector<2x64xf32>
    %216 = vector.extract_strided_slice %215 {offsets = [0, 0], sizes = [2, 32], strides = [1, 1]} : vector<2x64xf32> to vector<2x32xf32>
    %217 = vector.extract_strided_slice %215 {offsets = [0, 32], sizes = [2, 32], strides = [1, 1]} : vector<2x64xf32> to vector<2x32xf32>
    %218 = vector.extract_strided_slice %39 {offsets = [0, 0], sizes = [2, 32], strides = [1, 1]} : vector<2x96xf32> to vector<2x32xf32>
    %219 = vector.extract_strided_slice %208 {offsets = [0, 0], sizes = [2, 32], strides = [1, 1]} : vector<2x96xf32> to vector<2x32xf32>
    %220 = arith.addf %219, %101 : vector<2x32xf32>
    %221 = arith.mulf %216, %220 : vector<2x32xf32>
    %222 = arith.addf %218, %221 : vector<2x32xf32>
    %223 = math.tanh %222 : vector<2x32xf32>
    %cst_49 = arith.constant 1.000000e+00 : f32
    %224 = vector.broadcast %cst_49 : f32 to vector<2x32xf32>
    %225 = arith.subf %224, %217 : vector<2x32xf32>
    %226 = arith.mulf %225, %223 : vector<2x32xf32>
    %227 = arith.mulf %217, %207 : vector<2x32xf32>
    %228 = arith.addf %226, %227 : vector<2x32xf32>
    %cst_50 = arith.constant dense<0.000000e+00> : vector<2x96xf32>
    %229 = tpu.matmul %228, %98, %cst_50 {dimension_numbers = #tpu.dot_dimension_numbers<[1], [0], [0], [1], [0, 0, 1, 1], [], []>} : vector<2x32xf32>, vector<32x96xf32>, vector<2x96xf32> -> vector<2x96xf32>
    %230 = arith.addf %42, %229 : vector<2x96xf32>
    %231 = vector.extract_strided_slice %230 {offsets = [0, 32], sizes = [2, 64], strides = [1, 1]} : vector<2x96xf32> to vector<2x64xf32>
    %232 = arith.negf %231 : vector<2x64xf32>
    %233 = math.exp %232 : vector<2x64xf32>
    %cst_51 = arith.constant 1.000000e+00 : f32
    %234 = vector.broadcast %cst_51 : f32 to vector<2x64xf32>
    %235 = arith.addf %234, %233 : vector<2x64xf32>
    %236 = arith.divf %234, %235 : vector<2x64xf32>
    %237 = vector.extract_strided_slice %236 {offsets = [0, 0], sizes = [2, 32], strides = [1, 1]} : vector<2x64xf32> to vector<2x32xf32>
    %238 = vector.extract_strided_slice %236 {offsets = [0, 32], sizes = [2, 32], strides = [1, 1]} : vector<2x64xf32> to vector<2x32xf32>
    %239 = vector.extract_strided_slice %42 {offsets = [0, 0], sizes = [2, 32], strides = [1, 1]} : vector<2x96xf32> to vector<2x32xf32>
    %240 = vector.extract_strided_slice %229 {offsets = [0, 0], sizes = [2, 32], strides = [1, 1]} : vector<2x96xf32> to vector<2x32xf32>
    %241 = arith.addf %240, %101 : vector<2x32xf32>
    %242 = arith.mulf %237, %241 : vector<2x32xf32>
    %243 = arith.addf %239, %242 : vector<2x32xf32>
    %244 = math.tanh %243 : vector<2x32xf32>
    %cst_52 = arith.constant 1.000000e+00 : f32
    %245 = vector.broadcast %cst_52 : f32 to vector<2x32xf32>
    %246 = arith.subf %245, %238 : vector<2x32xf32>
    %247 = arith.mulf %246, %244 : vector<2x32xf32>
    %248 = arith.mulf %238, %228 : vector<2x32xf32>
    %249 = arith.addf %247, %248 : vector<2x32xf32>
    %cst_53 = arith.constant dense<0.000000e+00> : vector<2x96xf32>
    %250 = tpu.matmul %249, %98, %cst_53 {dimension_numbers = #tpu.dot_dimension_numbers<[1], [0], [0], [1], [0, 0, 1, 1], [], []>} : vector<2x32xf32>, vector<32x96xf32>, vector<2x96xf32> -> vector<2x96xf32>
    %251 = arith.addf %45, %250 : vector<2x96xf32>
    %252 = vector.extract_strided_slice %251 {offsets = [0, 32], sizes = [2, 64], strides = [1, 1]} : vector<2x96xf32> to vector<2x64xf32>
    %253 = arith.negf %252 : vector<2x64xf32>
    %254 = math.exp %253 : vector<2x64xf32>
    %cst_54 = arith.constant 1.000000e+00 : f32
    %255 = vector.broadcast %cst_54 : f32 to vector<2x64xf32>
    %256 = arith.addf %255, %254 : vector<2x64xf32>
    %257 = arith.divf %255, %256 : vector<2x64xf32>
    %258 = vector.extract_strided_slice %257 {offsets = [0, 0], sizes = [2, 32], strides = [1, 1]} : vector<2x64xf32> to vector<2x32xf32>
    %259 = vector.extract_strided_slice %257 {offsets = [0, 32], sizes = [2, 32], strides = [1, 1]} : vector<2x64xf32> to vector<2x32xf32>
    %260 = vector.extract_strided_slice %45 {offsets = [0, 0], sizes = [2, 32], strides = [1, 1]} : vector<2x96xf32> to vector<2x32xf32>
    %261 = vector.extract_strided_slice %250 {offsets = [0, 0], sizes = [2, 32], strides = [1, 1]} : vector<2x96xf32> to vector<2x32xf32>
    %262 = arith.addf %261, %101 : vector<2x32xf32>
    %263 = arith.mulf %258, %262 : vector<2x32xf32>
    %264 = arith.addf %260, %263 : vector<2x32xf32>
    %265 = math.tanh %264 : vector<2x32xf32>
    %cst_55 = arith.constant 1.000000e+00 : f32
    %266 = vector.broadcast %cst_55 : f32 to vector<2x32xf32>
    %267 = arith.subf %266, %259 : vector<2x32xf32>
    %268 = arith.mulf %267, %265 : vector<2x32xf32>
    %269 = arith.mulf %259, %249 : vector<2x32xf32>
    %270 = arith.addf %268, %269 : vector<2x32xf32>
    %c0_56 = arith.constant 0 : index
    %c0_57 = arith.constant 0 : index
    %271 = vector.load %arg10[%c0_56, %c0_57] : memref<32x104xf32, #tpu.memory_space<vmem>>, vector<32x104xf32>
    %c0_58 = arith.constant 0 : index
    %c0_59 = arith.constant 0 : index
    %272 = vector.load %arg13[%c0_58, %c0_59] : memref<8x100xf32, #tpu.memory_space<vmem>>, vector<8x100xf32>
    %c0_60 = arith.constant 0 : index
    %c0_61 = arith.constant 0 : index
    %273 = vector.load %arg11[%c0_60, %c0_61] : memref<1x32xf32, #tpu.memory_space<vmem>>, vector<1x32xf32>
    %274 = vector.shape_cast %273 : vector<1x32xf32> to vector<1x32xf32>
    %275 = vector.broadcast %274 : vector<1x32xf32> to vector<2x32xf32>
    %c0_62 = arith.constant 0 : index
    %c0_63 = arith.constant 0 : index
    %276 = vector.load %arg12[%c0_62, %c0_63] : memref<1x8xf32, #tpu.memory_space<vmem>>, vector<1x8xf32>
    %277 = vector.shape_cast %276 : vector<1x8xf32> to vector<1x8xf32>
    %278 = vector.broadcast %277 : vector<1x8xf32> to vector<2x8xf32>
    %c0_64 = arith.constant 0 : index
    %c0_65 = arith.constant 0 : index
    %279 = vector.load %arg14[%c0_64, %c0_65] : memref<1x100xf32, #tpu.memory_space<vmem>>, vector<1x100xf32>
    %280 = vector.shape_cast %279 : vector<1x100xf32> to vector<1x100xf32>
    %281 = vector.broadcast %280 : vector<1x100xf32> to vector<2x100xf32>
    %282 = vector.extract_strided_slice %4 {offsets = [0, 0], sizes = [1, 4], strides = [1, 1]} : vector<16x4xf32> to vector<1x4xf32>
    %283 = vector.extract_strided_slice %4 {offsets = [8, 0], sizes = [1, 4], strides = [1, 1]} : vector<16x4xf32> to vector<1x4xf32>
    %284 = tpu.concatenate %282, %283 in 0 : vector<1x4xf32>, vector<1x4xf32> -> vector<2x4xf32>
    %cst_66 = arith.constant dense<0.000000e+00> : vector<2x104xf32>
    %285 = tpu.matmul %270, %271, %cst_66 {dimension_numbers = #tpu.dot_dimension_numbers<[1], [0], [0], [1], [0, 0, 1, 1], [], []>} : vector<2x32xf32>, vector<32x104xf32>, vector<2x104xf32> -> vector<2x104xf32>
    %286 = vector.extract_strided_slice %285 {offsets = [0, 0], sizes = [2, 96], strides = [1, 1]} : vector<2x104xf32> to vector<2x96xf32>
    %287 = arith.addf %48, %286 : vector<2x96xf32>
    %288 = vector.extract_strided_slice %287 {offsets = [0, 32], sizes = [2, 64], strides = [1, 1]} : vector<2x96xf32> to vector<2x64xf32>
    %289 = arith.negf %288 : vector<2x64xf32>
    %290 = math.exp %289 : vector<2x64xf32>
    %cst_67 = arith.constant 1.000000e+00 : f32
    %291 = vector.broadcast %cst_67 : f32 to vector<2x64xf32>
    %292 = arith.addf %291, %290 : vector<2x64xf32>
    %293 = arith.divf %291, %292 : vector<2x64xf32>
    %294 = vector.extract_strided_slice %293 {offsets = [0, 0], sizes = [2, 32], strides = [1, 1]} : vector<2x64xf32> to vector<2x32xf32>
    %295 = vector.extract_strided_slice %293 {offsets = [0, 32], sizes = [2, 32], strides = [1, 1]} : vector<2x64xf32> to vector<2x32xf32>
    %296 = vector.extract_strided_slice %48 {offsets = [0, 0], sizes = [2, 32], strides = [1, 1]} : vector<2x96xf32> to vector<2x32xf32>
    %297 = vector.extract_strided_slice %286 {offsets = [0, 0], sizes = [2, 32], strides = [1, 1]} : vector<2x96xf32> to vector<2x32xf32>
    %298 = arith.addf %297, %275 : vector<2x32xf32>
    %299 = arith.mulf %294, %298 : vector<2x32xf32>
    %300 = arith.addf %296, %299 : vector<2x32xf32>
    %301 = math.tanh %300 : vector<2x32xf32>
    %cst_68 = arith.constant 1.000000e+00 : f32
    %302 = vector.broadcast %cst_68 : f32 to vector<2x32xf32>
    %303 = arith.subf %302, %295 : vector<2x32xf32>
    %304 = arith.mulf %303, %301 : vector<2x32xf32>
    %305 = arith.mulf %295, %270 : vector<2x32xf32>
    %306 = arith.addf %304, %305 : vector<2x32xf32>
    %cst_69 = arith.constant dense<0.000000e+00> : vector<2x104xf32>
    %307 = tpu.matmul %306, %271, %cst_69 {dimension_numbers = #tpu.dot_dimension_numbers<[1], [0], [0], [1], [0, 0, 1, 1], [], []>} : vector<2x32xf32>, vector<32x104xf32>, vector<2x104xf32> -> vector<2x104xf32>
    %308 = vector.extract_strided_slice %307 {offsets = [0, 96], sizes = [2, 8], strides = [1, 1]} : vector<2x104xf32> to vector<2x8xf32>
    %309 = arith.addf %308, %278 : vector<2x8xf32>
    %cst_70 = arith.constant 0.000000e+00 : f32
    %310 = vector.broadcast %cst_70 : f32 to vector<2x8xf32>
    %311 = arith.maximumf %309, %310 : vector<2x8xf32>
    %cst_71 = arith.constant dense<0.000000e+00> : vector<2x100xf32>
    %312 = tpu.matmul %311, %272, %cst_71 {dimension_numbers = #tpu.dot_dimension_numbers<[1], [0], [0], [1], [0, 0, 1, 1], [], []>} : vector<2x8xf32>, vector<8x100xf32>, vector<2x100xf32> -> vector<2x100xf32>
    %313 = arith.addf %312, %281 : vector<2x100xf32>
    %314 = vector.extract_strided_slice %313 {offsets = [0, 0], sizes = [2, 96], strides = [1, 1]} : vector<2x100xf32> to vector<2x96xf32>
    %315 = arith.addf %48, %314 : vector<2x96xf32>
    %316 = vector.extract_strided_slice %313 {offsets = [0, 96], sizes = [2, 4], strides = [1, 1]} : vector<2x100xf32> to vector<2x4xf32>
    %317 = arith.addf %284, %316 : vector<2x4xf32>
    %c0_72 = arith.constant 0 : index
    %c0_73 = arith.constant 0 : index
    %c0_74 = arith.constant 0 : index
    %318 = vector.load %arg15[%c0_72, %c0_73, %c0_74] : memref<2x8x4xf32, #tpu.memory_space<vmem>>, vector<2x1x4xf32>
    %319 = vector.shape_cast %318 : vector<2x1x4xf32> to vector<2x4xf32>
    %320 = vector.shape_cast %317 : vector<2x4xf32> to vector<2x1x4xf32>
    tpu.vector_store %arg15[%c0_72, %c0_73, %c0_74], %320 {strides = array<i32>} : memref<2x8x4xf32, #tpu.memory_space<vmem>>, vector<2x1x4xf32>,
    %321 = arith.select %73, %51, %315 : vector<2x96xi1>, vector<2x96xf32>
    %322 = vector.extract_strided_slice %307 {offsets = [0, 0], sizes = [2, 96], strides = [1, 1]} : vector<2x104xf32> to vector<2x96xf32>
    %323 = arith.addf %321, %322 : vector<2x96xf32>
    %324 = vector.extract_strided_slice %323 {offsets = [0, 32], sizes = [2, 64], strides = [1, 1]} : vector<2x96xf32> to vector<2x64xf32>
    %325 = arith.negf %324 : vector<2x64xf32>
    %326 = math.exp %325 : vector<2x64xf32>
    %cst_75 = arith.constant 1.000000e+00 : f32
    %327 = vector.broadcast %cst_75 : f32 to vector<2x64xf32>
    %328 = arith.addf %327, %326 : vector<2x64xf32>
    %329 = arith.divf %327, %328 : vector<2x64xf32>
    %330 = vector.extract_strided_slice %329 {offsets = [0, 0], sizes = [2, 32], strides = [1, 1]} : vector<2x64xf32> to vector<2x32xf32>
    %331 = vector.extract_strided_slice %329 {offsets = [0, 32], sizes = [2, 32], strides = [1, 1]} : vector<2x64xf32> to vector<2x32xf32>
    %332 = vector.extract_strided_slice %321 {offsets = [0, 0], sizes = [2, 32], strides = [1, 1]} : vector<2x96xf32> to vector<2x32xf32>
    %333 = vector.extract_strided_slice %322 {offsets = [0, 0], sizes = [2, 32], strides = [1, 1]} : vector<2x96xf32> to vector<2x32xf32>
    %334 = arith.addf %333, %275 : vector<2x32xf32>
    %335 = arith.mulf %330, %334 : vector<2x32xf32>
    %336 = arith.addf %332, %335 : vector<2x32xf32>
    %337 = math.tanh %336 : vector<2x32xf32>
    %cst_76 = arith.constant 1.000000e+00 : f32
    %338 = vector.broadcast %cst_76 : f32 to vector<2x32xf32>
    %339 = arith.subf %338, %331 : vector<2x32xf32>
    %340 = arith.mulf %339, %337 : vector<2x32xf32>
    %341 = arith.mulf %331, %306 : vector<2x32xf32>
    %342 = arith.addf %340, %341 : vector<2x32xf32>
    %cst_77 = arith.constant dense<0.000000e+00> : vector<2x104xf32>
    %343 = tpu.matmul %342, %271, %cst_77 {dimension_numbers = #tpu.dot_dimension_numbers<[1], [0], [0], [1], [0, 0, 1, 1], [], []>} : vector<2x32xf32>, vector<32x104xf32>, vector<2x104xf32> -> vector<2x104xf32>
    %344 = vector.extract_strided_slice %343 {offsets = [0, 96], sizes = [2, 8], strides = [1, 1]} : vector<2x104xf32> to vector<2x8xf32>
    %345 = arith.addf %344, %278 : vector<2x8xf32>
    %cst_78 = arith.constant 0.000000e+00 : f32
    %346 = vector.broadcast %cst_78 : f32 to vector<2x8xf32>
    %347 = arith.maximumf %345, %346 : vector<2x8xf32>
    %cst_79 = arith.constant dense<0.000000e+00> : vector<2x100xf32>
    %348 = tpu.matmul %347, %272, %cst_79 {dimension_numbers = #tpu.dot_dimension_numbers<[1], [0], [0], [1], [0, 0, 1, 1], [], []>} : vector<2x8xf32>, vector<8x100xf32>, vector<2x100xf32> -> vector<2x100xf32>
    %349 = arith.addf %348, %281 : vector<2x100xf32>
    %350 = vector.extract_strided_slice %349 {offsets = [0, 0], sizes = [2, 96], strides = [1, 1]} : vector<2x100xf32> to vector<2x96xf32>
    %351 = arith.addf %315, %350 : vector<2x96xf32>
    %352 = vector.extract_strided_slice %349 {offsets = [0, 96], sizes = [2, 4], strides = [1, 1]} : vector<2x100xf32> to vector<2x4xf32>
    %353 = arith.addf %317, %352 : vector<2x4xf32>
    %c0_80 = arith.constant 0 : index
    %c1_81 = arith.constant 1 : index
    %c0_82 = arith.constant 0 : index
    %354 = vector.load %arg15[%c0_80, %c1_81, %c0_82] : memref<2x8x4xf32, #tpu.memory_space<vmem>>, vector<2x1x4xf32>
    %355 = vector.shape_cast %354 : vector<2x1x4xf32> to vector<2x4xf32>
    %356 = vector.shape_cast %353 : vector<2x4xf32> to vector<2x1x4xf32>
    tpu.vector_store %arg15[%c0_80, %c1_81, %c0_82], %356 {strides = array<i32>} : memref<2x8x4xf32, #tpu.memory_space<vmem>>, vector<2x1x4xf32>,
    %357 = arith.select %77, %54, %351 : vector<2x96xi1>, vector<2x96xf32>
    %358 = vector.extract_strided_slice %343 {offsets = [0, 0], sizes = [2, 96], strides = [1, 1]} : vector<2x104xf32> to vector<2x96xf32>
    %359 = arith.addf %357, %358 : vector<2x96xf32>
    %360 = vector.extract_strided_slice %359 {offsets = [0, 32], sizes = [2, 64], strides = [1, 1]} : vector<2x96xf32> to vector<2x64xf32>
    %361 = arith.negf %360 : vector<2x64xf32>
    %362 = math.exp %361 : vector<2x64xf32>
    %cst_83 = arith.constant 1.000000e+00 : f32
    %363 = vector.broadcast %cst_83 : f32 to vector<2x64xf32>
    %364 = arith.addf %363, %362 : vector<2x64xf32>
    %365 = arith.divf %363, %364 : vector<2x64xf32>
    %366 = vector.extract_strided_slice %365 {offsets = [0, 0], sizes = [2, 32], strides = [1, 1]} : vector<2x64xf32> to vector<2x32xf32>
    %367 = vector.extract_strided_slice %365 {offsets = [0, 32], sizes = [2, 32], strides = [1, 1]} : vector<2x64xf32> to vector<2x32xf32>
    %368 = vector.extract_strided_slice %357 {offsets = [0, 0], sizes = [2, 32], strides = [1, 1]} : vector<2x96xf32> to vector<2x32xf32>
    %369 = vector.extract_strided_slice %358 {offsets = [0, 0], sizes = [2, 32], strides = [1, 1]} : vector<2x96xf32> to vector<2x32xf32>
    %370 = arith.addf %369, %275 : vector<2x32xf32>
    %371 = arith.mulf %366, %370 : vector<2x32xf32>
    %372 = arith.addf %368, %371 : vector<2x32xf32>
    %373 = math.tanh %372 : vector<2x32xf32>
    %cst_84 = arith.constant 1.000000e+00 : f32
    %374 = vector.broadcast %cst_84 : f32 to vector<2x32xf32>
    %375 = arith.subf %374, %367 : vector<2x32xf32>
    %376 = arith.mulf %375, %373 : vector<2x32xf32>
    %377 = arith.mulf %367, %342 : vector<2x32xf32>
    %378 = arith.addf %376, %377 : vector<2x32xf32>
    %cst_85 = arith.constant dense<0.000000e+00> : vector<2x104xf32>
    %379 = tpu.matmul %378, %271, %cst_85 {dimension_numbers = #tpu.dot_dimension_numbers<[1], [0], [0], [1], [0, 0, 1, 1], [], []>} : vector<2x32xf32>, vector<32x104xf32>, vector<2x104xf32> -> vector<2x104xf32>
    %380 = vector.extract_strided_slice %379 {offsets = [0, 96], sizes = [2, 8], strides = [1, 1]} : vector<2x104xf32> to vector<2x8xf32>
    %381 = arith.addf %380, %278 : vector<2x8xf32>
    %cst_86 = arith.constant 0.000000e+00 : f32
    %382 = vector.broadcast %cst_86 : f32 to vector<2x8xf32>
    %383 = arith.maximumf %381, %382 : vector<2x8xf32>
    %cst_87 = arith.constant dense<0.000000e+00> : vector<2x100xf32>
    %384 = tpu.matmul %383, %272, %cst_87 {dimension_numbers = #tpu.dot_dimension_numbers<[1], [0], [0], [1], [0, 0, 1, 1], [], []>} : vector<2x8xf32>, vector<8x100xf32>, vector<2x100xf32> -> vector<2x100xf32>
    %385 = arith.addf %384, %281 : vector<2x100xf32>
    %386 = vector.extract_strided_slice %385 {offsets = [0, 0], sizes = [2, 96], strides = [1, 1]} : vector<2x100xf32> to vector<2x96xf32>
    %387 = arith.addf %351, %386 : vector<2x96xf32>
    %388 = vector.extract_strided_slice %385 {offsets = [0, 96], sizes = [2, 4], strides = [1, 1]} : vector<2x100xf32> to vector<2x4xf32>
    %389 = arith.addf %353, %388 : vector<2x4xf32>
    %c0_88 = arith.constant 0 : index
    %c2_89 = arith.constant 2 : index
    %c0_90 = arith.constant 0 : index
    %390 = vector.load %arg15[%c0_88, %c2_89, %c0_90] : memref<2x8x4xf32, #tpu.memory_space<vmem>>, vector<2x1x4xf32>
    %391 = vector.shape_cast %390 : vector<2x1x4xf32> to vector<2x4xf32>
    %392 = vector.shape_cast %389 : vector<2x4xf32> to vector<2x1x4xf32>
    tpu.vector_store %arg15[%c0_88, %c2_89, %c0_90], %392 {strides = array<i32>} : memref<2x8x4xf32, #tpu.memory_space<vmem>>, vector<2x1x4xf32>,
    %393 = arith.select %81, %57, %387 : vector<2x96xi1>, vector<2x96xf32>
    %394 = vector.extract_strided_slice %379 {offsets = [0, 0], sizes = [2, 96], strides = [1, 1]} : vector<2x104xf32> to vector<2x96xf32>
    %395 = arith.addf %393, %394 : vector<2x96xf32>
    %396 = vector.extract_strided_slice %395 {offsets = [0, 32], sizes = [2, 64], strides = [1, 1]} : vector<2x96xf32> to vector<2x64xf32>
    %397 = arith.negf %396 : vector<2x64xf32>
    %398 = math.exp %397 : vector<2x64xf32>
    %cst_91 = arith.constant 1.000000e+00 : f32
    %399 = vector.broadcast %cst_91 : f32 to vector<2x64xf32>
    %400 = arith.addf %399, %398 : vector<2x64xf32>
    %401 = arith.divf %399, %400 : vector<2x64xf32>
    %402 = vector.extract_strided_slice %401 {offsets = [0, 0], sizes = [2, 32], strides = [1, 1]} : vector<2x64xf32> to vector<2x32xf32>
    %403 = vector.extract_strided_slice %401 {offsets = [0, 32], sizes = [2, 32], strides = [1, 1]} : vector<2x64xf32> to vector<2x32xf32>
    %404 = vector.extract_strided_slice %393 {offsets = [0, 0], sizes = [2, 32], strides = [1, 1]} : vector<2x96xf32> to vector<2x32xf32>
    %405 = vector.extract_strided_slice %394 {offsets = [0, 0], sizes = [2, 32], strides = [1, 1]} : vector<2x96xf32> to vector<2x32xf32>
    %406 = arith.addf %405, %275 : vector<2x32xf32>
    %407 = arith.mulf %402, %406 : vector<2x32xf32>
    %408 = arith.addf %404, %407 : vector<2x32xf32>
    %409 = math.tanh %408 : vector<2x32xf32>
    %cst_92 = arith.constant 1.000000e+00 : f32
    %410 = vector.broadcast %cst_92 : f32 to vector<2x32xf32>
    %411 = arith.subf %410, %403 : vector<2x32xf32>
    %412 = arith.mulf %411, %409 : vector<2x32xf32>
    %413 = arith.mulf %403, %378 : vector<2x32xf32>
    %414 = arith.addf %412, %413 : vector<2x32xf32>
    %cst_93 = arith.constant dense<0.000000e+00> : vector<2x104xf32>
    %415 = tpu.matmul %414, %271, %cst_93 {dimension_numbers = #tpu.dot_dimension_numbers<[1], [0], [0], [1], [0, 0, 1, 1], [], []>} : vector<2x32xf32>, vector<32x104xf32>, vector<2x104xf32> -> vector<2x104xf32>
    %416 = vector.extract_strided_slice %415 {offsets = [0, 96], sizes = [2, 8], strides = [1, 1]} : vector<2x104xf32> to vector<2x8xf32>
    %417 = arith.addf %416, %278 : vector<2x8xf32>
    %cst_94 = arith.constant 0.000000e+00 : f32
    %418 = vector.broadcast %cst_94 : f32 to vector<2x8xf32>
    %419 = arith.maximumf %417, %418 : vector<2x8xf32>
    %cst_95 = arith.constant dense<0.000000e+00> : vector<2x100xf32>
    %420 = tpu.matmul %419, %272, %cst_95 {dimension_numbers = #tpu.dot_dimension_numbers<[1], [0], [0], [1], [0, 0, 1, 1], [], []>} : vector<2x8xf32>, vector<8x100xf32>, vector<2x100xf32> -> vector<2x100xf32>
    %421 = arith.addf %420, %281 : vector<2x100xf32>
    %422 = vector.extract_strided_slice %421 {offsets = [0, 0], sizes = [2, 96], strides = [1, 1]} : vector<2x100xf32> to vector<2x96xf32>
    %423 = arith.addf %387, %422 : vector<2x96xf32>
    %424 = vector.extract_strided_slice %421 {offsets = [0, 96], sizes = [2, 4], strides = [1, 1]} : vector<2x100xf32> to vector<2x4xf32>
    %425 = arith.addf %389, %424 : vector<2x4xf32>
    %c0_96 = arith.constant 0 : index
    %c3_97 = arith.constant 3 : index
    %c0_98 = arith.constant 0 : index
    %426 = vector.load %arg15[%c0_96, %c3_97, %c0_98] : memref<2x8x4xf32, #tpu.memory_space<vmem>>, vector<2x1x4xf32>
    %427 = vector.shape_cast %426 : vector<2x1x4xf32> to vector<2x4xf32>
    %428 = vector.shape_cast %425 : vector<2x4xf32> to vector<2x1x4xf32>
    tpu.vector_store %arg15[%c0_96, %c3_97, %c0_98], %428 {strides = array<i32>} : memref<2x8x4xf32, #tpu.memory_space<vmem>>, vector<2x1x4xf32>,
    %429 = arith.select %85, %60, %423 : vector<2x96xi1>, vector<2x96xf32>
    %430 = vector.extract_strided_slice %415 {offsets = [0, 0], sizes = [2, 96], strides = [1, 1]} : vector<2x104xf32> to vector<2x96xf32>
    %431 = arith.addf %429, %430 : vector<2x96xf32>
    %432 = vector.extract_strided_slice %431 {offsets = [0, 32], sizes = [2, 64], strides = [1, 1]} : vector<2x96xf32> to vector<2x64xf32>
    %433 = arith.negf %432 : vector<2x64xf32>
    %434 = math.exp %433 : vector<2x64xf32>
    %cst_99 = arith.constant 1.000000e+00 : f32
    %435 = vector.broadcast %cst_99 : f32 to vector<2x64xf32>
    %436 = arith.addf %435, %434 : vector<2x64xf32>
    %437 = arith.divf %435, %436 : vector<2x64xf32>
    %438 = vector.extract_strided_slice %437 {offsets = [0, 0], sizes = [2, 32], strides = [1, 1]} : vector<2x64xf32> to vector<2x32xf32>
    %439 = vector.extract_strided_slice %437 {offsets = [0, 32], sizes = [2, 32], strides = [1, 1]} : vector<2x64xf32> to vector<2x32xf32>
    %440 = vector.extract_strided_slice %429 {offsets = [0, 0], sizes = [2, 32], strides = [1, 1]} : vector<2x96xf32> to vector<2x32xf32>
    %441 = vector.extract_strided_slice %430 {offsets = [0, 0], sizes = [2, 32], strides = [1, 1]} : vector<2x96xf32> to vector<2x32xf32>
    %442 = arith.addf %441, %275 : vector<2x32xf32>
    %443 = arith.mulf %438, %442 : vector<2x32xf32>
    %444 = arith.addf %440, %443 : vector<2x32xf32>
    %445 = math.tanh %444 : vector<2x32xf32>
    %cst_100 = arith.constant 1.000000e+00 : f32
    %446 = vector.broadcast %cst_100 : f32 to vector<2x32xf32>
    %447 = arith.subf %446, %439 : vector<2x32xf32>
    %448 = arith.mulf %447, %445 : vector<2x32xf32>
    %449 = arith.mulf %439, %414 : vector<2x32xf32>
    %450 = arith.addf %448, %449 : vector<2x32xf32>
    %cst_101 = arith.constant dense<0.000000e+00> : vector<2x104xf32>
    %451 = tpu.matmul %450, %271, %cst_101 {dimension_numbers = #tpu.dot_dimension_numbers<[1], [0], [0], [1], [0, 0, 1, 1], [], []>} : vector<2x32xf32>, vector<32x104xf32>, vector<2x104xf32> -> vector<2x104xf32>
    %452 = vector.extract_strided_slice %451 {offsets = [0, 96], sizes = [2, 8], strides = [1, 1]} : vector<2x104xf32> to vector<2x8xf32>
    %453 = arith.addf %452, %278 : vector<2x8xf32>
    %cst_102 = arith.constant 0.000000e+00 : f32
    %454 = vector.broadcast %cst_102 : f32 to vector<2x8xf32>
    %455 = arith.maximumf %453, %454 : vector<2x8xf32>
    %cst_103 = arith.constant dense<0.000000e+00> : vector<2x100xf32>
    %456 = tpu.matmul %455, %272, %cst_103 {dimension_numbers = #tpu.dot_dimension_numbers<[1], [0], [0], [1], [0, 0, 1, 1], [], []>} : vector<2x8xf32>, vector<8x100xf32>, vector<2x100xf32> -> vector<2x100xf32>
    %457 = arith.addf %456, %281 : vector<2x100xf32>
    %458 = vector.extract_strided_slice %457 {offsets = [0, 0], sizes = [2, 96], strides = [1, 1]} : vector<2x100xf32> to vector<2x96xf32>
    %459 = arith.addf %423, %458 : vector<2x96xf32>
    %460 = vector.extract_strided_slice %457 {offsets = [0, 96], sizes = [2, 4], strides = [1, 1]} : vector<2x100xf32> to vector<2x4xf32>
    %461 = arith.addf %425, %460 : vector<2x4xf32>
    %c0_104 = arith.constant 0 : index
    %c4_105 = arith.constant 4 : index
    %c0_106 = arith.constant 0 : index
    %462 = vector.load %arg15[%c0_104, %c4_105, %c0_106] : memref<2x8x4xf32, #tpu.memory_space<vmem>>, vector<2x1x4xf32>
    %463 = vector.shape_cast %462 : vector<2x1x4xf32> to vector<2x4xf32>
    %464 = vector.shape_cast %461 : vector<2x4xf32> to vector<2x1x4xf32>
    tpu.vector_store %arg15[%c0_104, %c4_105, %c0_106], %464 {strides = array<i32>} : memref<2x8x4xf32, #tpu.memory_space<vmem>>, vector<2x1x4xf32>,
    %465 = arith.select %89, %63, %459 : vector<2x96xi1>, vector<2x96xf32>
    %466 = vector.extract_strided_slice %451 {offsets = [0, 0], sizes = [2, 96], strides = [1, 1]} : vector<2x104xf32> to vector<2x96xf32>
    %467 = arith.addf %465, %466 : vector<2x96xf32>
    %468 = vector.extract_strided_slice %467 {offsets = [0, 32], sizes = [2, 64], strides = [1, 1]} : vector<2x96xf32> to vector<2x64xf32>
    %469 = arith.negf %468 : vector<2x64xf32>
    %470 = math.exp %469 : vector<2x64xf32>
    %cst_107 = arith.constant 1.000000e+00 : f32
    %471 = vector.broadcast %cst_107 : f32 to vector<2x64xf32>
    %472 = arith.addf %471, %470 : vector<2x64xf32>
    %473 = arith.divf %471, %472 : vector<2x64xf32>
    %474 = vector.extract_strided_slice %473 {offsets = [0, 0], sizes = [2, 32], strides = [1, 1]} : vector<2x64xf32> to vector<2x32xf32>
    %475 = vector.extract_strided_slice %473 {offsets = [0, 32], sizes = [2, 32], strides = [1, 1]} : vector<2x64xf32> to vector<2x32xf32>
    %476 = vector.extract_strided_slice %465 {offsets = [0, 0], sizes = [2, 32], strides = [1, 1]} : vector<2x96xf32> to vector<2x32xf32>
    %477 = vector.extract_strided_slice %466 {offsets = [0, 0], sizes = [2, 32], strides = [1, 1]} : vector<2x96xf32> to vector<2x32xf32>
    %478 = arith.addf %477, %275 : vector<2x32xf32>
    %479 = arith.mulf %474, %478 : vector<2x32xf32>
    %480 = arith.addf %476, %479 : vector<2x32xf32>
    %481 = math.tanh %480 : vector<2x32xf32>
    %cst_108 = arith.constant 1.000000e+00 : f32
    %482 = vector.broadcast %cst_108 : f32 to vector<2x32xf32>
    %483 = arith.subf %482, %475 : vector<2x32xf32>
    %484 = arith.mulf %483, %481 : vector<2x32xf32>
    %485 = arith.mulf %475, %450 : vector<2x32xf32>
    %486 = arith.addf %484, %485 : vector<2x32xf32>
    %cst_109 = arith.constant dense<0.000000e+00> : vector<2x104xf32>
    %487 = tpu.matmul %486, %271, %cst_109 {dimension_numbers = #tpu.dot_dimension_numbers<[1], [0], [0], [1], [0, 0, 1, 1], [], []>} : vector<2x32xf32>, vector<32x104xf32>, vector<2x104xf32> -> vector<2x104xf32>
    %488 = vector.extract_strided_slice %487 {offsets = [0, 96], sizes = [2, 8], strides = [1, 1]} : vector<2x104xf32> to vector<2x8xf32>
    %489 = arith.addf %488, %278 : vector<2x8xf32>
    %cst_110 = arith.constant 0.000000e+00 : f32
    %490 = vector.broadcast %cst_110 : f32 to vector<2x8xf32>
    %491 = arith.maximumf %489, %490 : vector<2x8xf32>
    %cst_111 = arith.constant dense<0.000000e+00> : vector<2x100xf32>
    %492 = tpu.matmul %491, %272, %cst_111 {dimension_numbers = #tpu.dot_dimension_numbers<[1], [0], [0], [1], [0, 0, 1, 1], [], []>} : vector<2x8xf32>, vector<8x100xf32>, vector<2x100xf32> -> vector<2x100xf32>
    %493 = arith.addf %492, %281 : vector<2x100xf32>
    %494 = vector.extract_strided_slice %493 {offsets = [0, 0], sizes = [2, 96], strides = [1, 1]} : vector<2x100xf32> to vector<2x96xf32>
    %495 = arith.addf %459, %494 : vector<2x96xf32>
    %496 = vector.extract_strided_slice %493 {offsets = [0, 96], sizes = [2, 4], strides = [1, 1]} : vector<2x100xf32> to vector<2x4xf32>
    %497 = arith.addf %461, %496 : vector<2x4xf32>
    %c0_112 = arith.constant 0 : index
    %c5_113 = arith.constant 5 : index
    %c0_114 = arith.constant 0 : index
    %498 = vector.load %arg15[%c0_112, %c5_113, %c0_114] : memref<2x8x4xf32, #tpu.memory_space<vmem>>, vector<2x1x4xf32>
    %499 = vector.shape_cast %498 : vector<2x1x4xf32> to vector<2x4xf32>
    %500 = vector.shape_cast %497 : vector<2x4xf32> to vector<2x1x4xf32>
    tpu.vector_store %arg15[%c0_112, %c5_113, %c0_114], %500 {strides = array<i32>} : memref<2x8x4xf32, #tpu.memory_space<vmem>>, vector<2x1x4xf32>,
    %501 = arith.select %93, %66, %495 : vector<2x96xi1>, vector<2x96xf32>
    %502 = vector.extract_strided_slice %487 {offsets = [0, 0], sizes = [2, 96], strides = [1, 1]} : vector<2x104xf32> to vector<2x96xf32>
    %503 = arith.addf %501, %502 : vector<2x96xf32>
    %504 = vector.extract_strided_slice %503 {offsets = [0, 32], sizes = [2, 64], strides = [1, 1]} : vector<2x96xf32> to vector<2x64xf32>
    %505 = arith.negf %504 : vector<2x64xf32>
    %506 = math.exp %505 : vector<2x64xf32>
    %cst_115 = arith.constant 1.000000e+00 : f32
    %507 = vector.broadcast %cst_115 : f32 to vector<2x64xf32>
    %508 = arith.addf %507, %506 : vector<2x64xf32>
    %509 = arith.divf %507, %508 : vector<2x64xf32>
    %510 = vector.extract_strided_slice %509 {offsets = [0, 0], sizes = [2, 32], strides = [1, 1]} : vector<2x64xf32> to vector<2x32xf32>
    %511 = vector.extract_strided_slice %509 {offsets = [0, 32], sizes = [2, 32], strides = [1, 1]} : vector<2x64xf32> to vector<2x32xf32>
    %512 = vector.extract_strided_slice %501 {offsets = [0, 0], sizes = [2, 32], strides = [1, 1]} : vector<2x96xf32> to vector<2x32xf32>
    %513 = vector.extract_strided_slice %502 {offsets = [0, 0], sizes = [2, 32], strides = [1, 1]} : vector<2x96xf32> to vector<2x32xf32>
    %514 = arith.addf %513, %275 : vector<2x32xf32>
    %515 = arith.mulf %510, %514 : vector<2x32xf32>
    %516 = arith.addf %512, %515 : vector<2x32xf32>
    %517 = math.tanh %516 : vector<2x32xf32>
    %cst_116 = arith.constant 1.000000e+00 : f32
    %518 = vector.broadcast %cst_116 : f32 to vector<2x32xf32>
    %519 = arith.subf %518, %511 : vector<2x32xf32>
    %520 = arith.mulf %519, %517 : vector<2x32xf32>
    %521 = arith.mulf %511, %486 : vector<2x32xf32>
    %522 = arith.addf %520, %521 : vector<2x32xf32>
    %cst_117 = arith.constant dense<0.000000e+00> : vector<2x104xf32>
    %523 = tpu.matmul %522, %271, %cst_117 {dimension_numbers = #tpu.dot_dimension_numbers<[1], [0], [0], [1], [0, 0, 1, 1], [], []>} : vector<2x32xf32>, vector<32x104xf32>, vector<2x104xf32> -> vector<2x104xf32>
    %524 = vector.extract_strided_slice %523 {offsets = [0, 96], sizes = [2, 8], strides = [1, 1]} : vector<2x104xf32> to vector<2x8xf32>
    %525 = arith.addf %524, %278 : vector<2x8xf32>
    %cst_118 = arith.constant 0.000000e+00 : f32
    %526 = vector.broadcast %cst_118 : f32 to vector<2x8xf32>
    %527 = arith.maximumf %525, %526 : vector<2x8xf32>
    %cst_119 = arith.constant dense<0.000000e+00> : vector<2x100xf32>
    %528 = tpu.matmul %527, %272, %cst_119 {dimension_numbers = #tpu.dot_dimension_numbers<[1], [0], [0], [1], [0, 0, 1, 1], [], []>} : vector<2x8xf32>, vector<8x100xf32>, vector<2x100xf32> -> vector<2x100xf32>
    %529 = arith.addf %528, %281 : vector<2x100xf32>
    %530 = vector.extract_strided_slice %529 {offsets = [0, 0], sizes = [2, 96], strides = [1, 1]} : vector<2x100xf32> to vector<2x96xf32>
    %531 = arith.addf %495, %530 : vector<2x96xf32>
    %532 = vector.extract_strided_slice %529 {offsets = [0, 96], sizes = [2, 4], strides = [1, 1]} : vector<2x100xf32> to vector<2x4xf32>
    %533 = arith.addf %497, %532 : vector<2x4xf32>
    %c0_120 = arith.constant 0 : index
    %c6_121 = arith.constant 6 : index
    %c0_122 = arith.constant 0 : index
    %534 = vector.load %arg15[%c0_120, %c6_121, %c0_122] : memref<2x8x4xf32, #tpu.memory_space<vmem>>, vector<2x1x4xf32>
    %535 = vector.shape_cast %534 : vector<2x1x4xf32> to vector<2x4xf32>
    %536 = vector.shape_cast %533 : vector<2x4xf32> to vector<2x1x4xf32>
    tpu.vector_store %arg15[%c0_120, %c6_121, %c0_122], %536 {strides = array<i32>} : memref<2x8x4xf32, #tpu.memory_space<vmem>>, vector<2x1x4xf32>,
    %537 = arith.select %97, %69, %531 : vector<2x96xi1>, vector<2x96xf32>
    %538 = vector.extract_strided_slice %523 {offsets = [0, 0], sizes = [2, 96], strides = [1, 1]} : vector<2x104xf32> to vector<2x96xf32>
    %539 = arith.addf %537, %538 : vector<2x96xf32>
    %540 = vector.extract_strided_slice %539 {offsets = [0, 32], sizes = [2, 64], strides = [1, 1]} : vector<2x96xf32> to vector<2x64xf32>
    %541 = arith.negf %540 : vector<2x64xf32>
    %542 = math.exp %541 : vector<2x64xf32>
    %cst_123 = arith.constant 1.000000e+00 : f32
    %543 = vector.broadcast %cst_123 : f32 to vector<2x64xf32>
    %544 = arith.addf %543, %542 : vector<2x64xf32>
    %545 = arith.divf %543, %544 : vector<2x64xf32>
    %546 = vector.extract_strided_slice %545 {offsets = [0, 0], sizes = [2, 32], strides = [1, 1]} : vector<2x64xf32> to vector<2x32xf32>
    %547 = vector.extract_strided_slice %545 {offsets = [0, 32], sizes = [2, 32], strides = [1, 1]} : vector<2x64xf32> to vector<2x32xf32>
    %548 = vector.extract_strided_slice %537 {offsets = [0, 0], sizes = [2, 32], strides = [1, 1]} : vector<2x96xf32> to vector<2x32xf32>
    %549 = vector.extract_strided_slice %538 {offsets = [0, 0], sizes = [2, 32], strides = [1, 1]} : vector<2x96xf32> to vector<2x32xf32>
    %550 = arith.addf %549, %275 : vector<2x32xf32>
    %551 = arith.mulf %546, %550 : vector<2x32xf32>
    %552 = arith.addf %548, %551 : vector<2x32xf32>
    %553 = math.tanh %552 : vector<2x32xf32>
    %cst_124 = arith.constant 1.000000e+00 : f32
    %554 = vector.broadcast %cst_124 : f32 to vector<2x32xf32>
    %555 = arith.subf %554, %547 : vector<2x32xf32>
    %556 = arith.mulf %555, %553 : vector<2x32xf32>
    %557 = arith.mulf %547, %522 : vector<2x32xf32>
    %558 = arith.addf %556, %557 : vector<2x32xf32>
    %cst_125 = arith.constant dense<0.000000e+00> : vector<2x104xf32>
    %559 = tpu.matmul %558, %271, %cst_125 {dimension_numbers = #tpu.dot_dimension_numbers<[1], [0], [0], [1], [0, 0, 1, 1], [], []>} : vector<2x32xf32>, vector<32x104xf32>, vector<2x104xf32> -> vector<2x104xf32>
    %560 = vector.extract_strided_slice %559 {offsets = [0, 96], sizes = [2, 8], strides = [1, 1]} : vector<2x104xf32> to vector<2x8xf32>
    %561 = arith.addf %560, %278 : vector<2x8xf32>
    %cst_126 = arith.constant 0.000000e+00 : f32
    %562 = vector.broadcast %cst_126 : f32 to vector<2x8xf32>
    %563 = arith.maximumf %561, %562 : vector<2x8xf32>
    %cst_127 = arith.constant dense<0.000000e+00> : vector<2x100xf32>
    %564 = tpu.matmul %563, %272, %cst_127 {dimension_numbers = #tpu.dot_dimension_numbers<[1], [0], [0], [1], [0, 0, 1, 1], [], []>} : vector<2x8xf32>, vector<8x100xf32>, vector<2x100xf32> -> vector<2x100xf32>
    %565 = arith.addf %564, %281 : vector<2x100xf32>
    %566 = vector.extract_strided_slice %565 {offsets = [0, 96], sizes = [2, 4], strides = [1, 1]} : vector<2x100xf32> to vector<2x4xf32>
    %567 = arith.addf %533, %566 : vector<2x4xf32>
    %c0_128 = arith.constant 0 : index
    %c7 = arith.constant 7 : index
    %c0_129 = arith.constant 0 : index
    %568 = vector.load %arg15[%c0_128, %c7, %c0_129] : memref<2x8x4xf32, #tpu.memory_space<vmem>>, vector<2x1x4xf32>
    %569 = vector.shape_cast %568 : vector<2x1x4xf32> to vector<2x4xf32>
    %570 = vector.shape_cast %567 : vector<2x4xf32> to vector<2x1x4xf32>
    tpu.vector_store %arg15[%c0_128, %c7, %c0_129], %570 {strides = array<i32>} : memref<2x8x4xf32, #tpu.memory_space<vmem>>, vector<2x1x4xf32>,
    return
  }
}

</mosaic_0001>

<llo_original>
// kernel: motion_ae_forward.1
$region0: #{motion_ae_forward.1}
  #allocation0 [shape = 'u32[]', space=smem, size = 0x4, offset = 0x4, fixed_abs, tag = 'smem constant byte address 0x4 - core index']
  #allocation1 [shape = 'u32[144,128]{1,0:T(1,128)}', space=vmem, size = 0x12000, scoped, tag = 'internal scratch']
  %s0 = inlined_call_operand.vmem [shape: s32[7], index: 0, kind: input, shape index: {}]
  %s1 = inlined_call_operand.vmem [shape: f32[2,8,4], index: 1, kind: input, shape index: {}]
  %s2 = inlined_call_operand.vmem [shape: f32[4,16], index: 2, kind: input, shape index: {}]
  %s3 = inlined_call_operand.vmem [shape: f32[1,16], index: 3, kind: input, shape index: {}]
  %s4 = inlined_call_operand.hbm [shape: f32[16,96], index: 4, kind: input, shape index: {}]
  %s5 = inlined_call_operand.hbm [shape: f32[1,96], index: 5, kind: input, shape index: {}]
  %s6 = inlined_call_operand.vmem [shape: f32[32,96], index: 6, kind: input, shape index: {}]
  %s7 = inlined_call_operand.hbm [shape: f32[1,32], index: 7, kind: input, shape index: {}]
  %s8 = inlined_call_operand.hbm [shape: f32[4,96], index: 8, kind: input, shape index: {}]
  %s9 = inlined_call_operand.hbm [shape: f32[1,96], index: 9, kind: input, shape index: {}]
  %s10 = inlined_call_operand.vmem [shape: f32[32,104], index: 10, kind: input, shape index: {}]
  %s11 = inlined_call_operand.hbm [shape: f32[1,32], index: 11, kind: input, shape index: {}]
  %s12 = inlined_call_operand.vmem [shape: f32[1,8], index: 12, kind: input, shape index: {}]
  %s13 = inlined_call_operand.hbm [shape: f32[8,100], index: 13, kind: input, shape index: {}]
  %s14 = inlined_call_operand.hbm [shape: f32[1,100], index: 14, kind: input, shape index: {}]
  %s15 = inlined_call_operand.vmem [shape: f32[2,8,4], index: 15, kind: output, shape index: {}]
  %s16 = sld [smem:[#allocation0]]
  $region106: #{motion_ae_forward.1} parent=0
    _
  %s18 = ssub.s32 1, %s16
  %s19 = scalar_select 0, %s18, %s16
  $region1: #{motion_ae_forward.1} parent=0
    #allocation2 [shape = 'u8[512]{0}', space=smem, size = 0x200, scoped, tag = 'input window, operand 0, single buffered']
    #allocation3 [shape = 's32[1]{0}', space=sflag, size = 0x4, scoped, tag = 'scoped memory for motion_ae_forward.1']
    #allocation4 [shape = 's32[1]{0}', space=sflag, size = 0x4, scoped, tag = 'scoped memory for motion_ae_forward.1']
    #allocation5 [shape = 'u8[8192]{0}', space=vmem, size = 0x2000, scoped, tag = 'input window, operand 4, single buffered']
    #allocation6 [shape = 'u8[512]{0}', space=vmem, size = 0x400, scoped, tag = 'input window, operand 5, single buffered']
    #allocation7 [shape = 's32[1]{0}', space=sflag, size = 0x4, scoped, tag = 'scoped memory for motion_ae_forward.1']
    #allocation8 [shape = 'u8[512]{0}', space=vmem, size = 0x400, scoped, tag = 'input window, operand 7, single buffered']
    #allocation9 [shape = 'u8[2048]{0}', space=vmem, size = 0x800, scoped, tag = 'input window, operand 8, single buffered']
    #allocation10 [shape = 's32[1]{0}', space=sflag, size = 0x4, scoped, tag = 'scoped memory for motion_ae_forward.1']
    #allocation11 [shape = 'u8[512]{0}', space=vmem, size = 0x400, scoped, tag = 'input window, operand 9, single buffered']
    #allocation12 [shape = 'u8[512]{0}', space=vmem, size = 0x400, scoped, tag = 'input window, operand 11, single buffered']
    #allocation13 [shape = 's32[1]{0}', space=sflag, size = 0x4, scoped, tag = 'scoped memory for motion_ae_forward.1']
    #allocation14 [shape = 'u8[4096]{0}', space=vmem, size = 0x1000, scoped, tag = 'input window, operand 13, single buffered']
    #allocation15 [shape = 'u8[512]{0}', space=vmem, size = 0x400, scoped, tag = 'input window, operand 14, single buffered']
    #allocation16 [shape = 's32[1]{0}', space=sflag, size = 0x4, scoped, tag = 'scoped memory for motion_ae_forward.1']
    %20 = vsyncpa [#allocation4], 0
    %21 = vsyncpa [#allocation3], 0
    %22 = vsyncpa [#allocation7], 0
    %23 = vsyncpa [#allocation10], 0
    %24 = vsyncpa [#allocation13], 0
    %25 = vsyncpa [#allocation16], 0
    // Predicated region
    $region2: #{motion_ae_forward.1} parent=1 // pred_check
      _
    $region3: #{motion_ae_forward.1} parent=1 // pred_check_branch
      %27 = sbr.rel (0) target = $region5
    $region4: #{motion_ae_forward.1} parent=1 // pred_region
      %s29 = ssub.s32 16, 16
      %30 = vsyncadd [#allocation4], %s29
      %s32 = sshll.u32 %s0, 4
      %s33 = int_to_ptr.vmem [resolvable:$true] %s32
      %35 = dma.vmem_to_smem %s33, 16, [#allocation2], [#allocation4]
    $region5: #{motion_ae_forward.1} parent=1 // pred_fallthru
      _
    // Predicated region
    $region6: #{motion_ae_forward.1} parent=1 // pred_check
      _
    $region7: #{motion_ae_forward.1} parent=1 // pred_check_branch
      %37 = sbr.rel (0) target = $region9
    $region8: #{motion_ae_forward.1} parent=1 // pred_region
      _
    $region9: #{motion_ae_forward.1} parent=1 // pred_fallthru
      _
    // Predicated region
    $region10: #{motion_ae_forward.1} parent=1 // pred_check
      _
    $region11: #{motion_ae_forward.1} parent=1 // pred_check_branch
      %39 = sbr.rel (0) target = $region13
    $region12: #{motion_ae_forward.1} parent=1 // pred_region
      _
    $region13: #{motion_ae_forward.1} parent=1 // pred_fallthru
      _
    // Predicated region
    $region14: #{motion_ae_forward.1} parent=1 // pred_check
      _
    $region15: #{motion_ae_forward.1} parent=1 // pred_check_branch
      %41 = sbr.rel (0) target = $region17
    $region16: #{motion_ae_forward.1} parent=1 // pred_region
      _
    $region17: #{motion_ae_forward.1} parent=1 // pred_fallthru
      _
    // Predicated region
    $region18: #{motion_ae_forward.1} parent=1 // pred_check
      _
    $region19: #{motion_ae_forward.1} parent=1 // pred_check_branch
      %43 = sbr.rel (0) target = $region21
    $region20: #{motion_ae_forward.1} parent=1 // pred_region
      %s45 = ssub.s32 256, 256
      %46 = vsyncadd [#allocation3], %s45
      %s47 = sshll.u32 [#allocation5], 4
      %s48 = int_to_ptr.vmem [resolvable:$true] %s47
      %53 = dma.hbm_to_vmem [thread:$0]  %s4, 256, %s48, [#allocation3], 128, 128, 8
    $region21: #{motion_ae_forward.1} parent=1 // pred_fallthru
      _
    // Predicated region
    $region22: #{motion_ae_forward.1} parent=1 // pred_check
      _
    $region23: #{motion_ae_forward.1} parent=1 // pred_check_branch
      %55 = sbr.rel (0) target = $region25
    $region24: #{motion_ae_forward.1} parent=1 // pred_region
      %s57 = ssub.s32 16, 16
      %58 = vsyncadd [#allocation7], %s57
      %s60 = sshll.u32 [#allocation6], 4
      %s61 = int_to_ptr.vmem [resolvable:$true] %s60
      %63 = dma.hbm_to_vmem [thread:$0]  %s5, 16, %s61, [#allocation7]
    $region25: #{motion_ae_forward.1} parent=1 // pred_fallthru
      _
    // Predicated region
    $region26: #{motion_ae_forward.1} parent=1 // pred_check
      _
    $region27: #{motion_ae_forward.1} parent=1 // pred_check_branch
      %65 = sbr.rel (0) target = $region29
    $region28: #{motion_ae_forward.1} parent=1 // pred_region
      _
    $region29: #{motion_ae_forward.1} parent=1 // pred_fallthru
      _
    // Predicated region
    $region30: #{motion_ae_forward.1} parent=1 // pred_check
      _
    $region31: #{motion_ae_forward.1} parent=1 // pred_check_branch
      %67 = sbr.rel (0) target = $region33
    $region32: #{motion_ae_forward.1} parent=1 // pred_region
      %s69 = ssub.s32 16, 16
      %70 = vsyncadd [#allocation7], %s69
      %s72 = sshll.u32 [#allocation8], 4
      %s73 = int_to_ptr.vmem [resolvable:$true] %s72
      %75 = dma.hbm_to_vmem [thread:$0]  %s7, 16, %s73, [#allocation7]
    $region33: #{motion_ae_forward.1} parent=1 // pred_fallthru
      _
    // Predicated region
    $region34: #{motion_ae_forward.1} parent=1 // pred_check
      _
    $region35: #{motion_ae_forward.1} parent=1 // pred_check_branch
      %77 = sbr.rel (0) target = $region37
    $region36: #{motion_ae_forward.1} parent=1 // pred_region
      %s79 = ssub.s32 64, 64
      %80 = vsyncadd [#allocation10], %s79
      %s82 = sshll.u32 [#allocation9], 4
      %s83 = int_to_ptr.vmem [resolvable:$true] %s82
      %85 = dma.hbm_to_vmem [thread:$0]  %s8, 64, %s83, [#allocation10]
    $region37: #{motion_ae_forward.1} parent=1 // pred_fallthru
      _
    // Predicated region
    $region38: #{motion_ae_forward.1} parent=1 // pred_check
      _
    $region39: #{motion_ae_forward.1} parent=1 // pred_check_branch
      %87 = sbr.rel (0) target = $region41
    $region40: #{motion_ae_forward.1} parent=1 // pred_region
      %s89 = ssub.s32 16, 16
      %90 = vsyncadd [#allocation10], %s89
      %s92 = sshll.u32 [#allocation11], 4
      %s93 = int_to_ptr.vmem [resolvable:$true] %s92
      %95 = dma.hbm_to_vmem [thread:$0]  %s9, 16, %s93, [#allocation10]
    $region41: #{motion_ae_forward.1} parent=1 // pred_fallthru
      _
    // Predicated region
    $region42: #{motion_ae_forward.1} parent=1 // pred_check
      _
    $region43: #{motion_ae_forward.1} parent=1 // pred_check_branch
      %97 = sbr.rel (0) target = $region45
    $region44: #{motion_ae_forward.1} parent=1 // pred_region
      _
    $region45: #{motion_ae_forward.1} parent=1 // pred_fallthru
      _
    // Predicated region
    $region46: #{motion_ae_forward.1} parent=1 // pred_check
      _
    $region47: #{motion_ae_forward.1} parent=1 // pred_check_branch
      %99 = sbr.rel (0) target = $region49
    $region48: #{motion_ae_forward.1} parent=1 // pred_region
      %s101 = ssub.s32 16, 16
      %102 = vsyncadd [#allocation13], %s101
      %s104 = sshll.u32 [#allocation12], 4
      %s105 = int_to_ptr.vmem [resolvable:$true] %s104
      %107 = dma.hbm_to_vmem [thread:$0]  %s11, 16, %s105, [#allocation13]
    $region49: #{motion_ae_forward.1} parent=1 // pred_fallthru
      _
    // Predicated region
    $region50: #{motion_ae_forward.1} parent=1 // pred_check
      _
    $region51: #{motion_ae_forward.1} parent=1 // pred_check_branch
      %109 = sbr.rel (0) target = $region53
    $region52: #{motion_ae_forward.1} parent=1 // pred_region
      _
    $region53: #{motion_ae_forward.1} parent=1 // pred_fallthru
      _
    // Predicated region
    $region54: #{motion_ae_forward.1} parent=1 // pred_check
      _
    $region55: #{motion_ae_forward.1} parent=1 // pred_check_branch
      %111 = sbr.rel (0) target = $region57
    $region56: #{motion_ae_forward.1} parent=1 // pred_region
      %s113 = ssub.s32 128, 128
      %114 = vsyncadd [#allocation13], %s113
      %s116 = sshll.u32 [#allocation14], 4
      %s117 = int_to_ptr.vmem [resolvable:$true] %s116
      %119 = dma.hbm_to_vmem [thread:$0]  %s13, 128, %s117, [#allocation13]
    $region57: #{motion_ae_forward.1} parent=1 // pred_fallthru
      _
    // Predicated region
    $region58: #{motion_ae_forward.1} parent=1 // pred_check
      _
    $region59: #{motion_ae_forward.1} parent=1 // pred_check_branch
      %121 = sbr.rel (0) target = $region61
    $region60: #{motion_ae_forward.1} parent=1 // pred_region
      %s123 = ssub.s32 16, 16
      %124 = vsyncadd [#allocation16], %s123
      %s126 = sshll.u32 [#allocation15], 4
      %s127 = int_to_ptr.vmem [resolvable:$true] %s126
      %129 = dma.hbm_to_vmem [thread:$0]  %s14, 16, %s127, [#allocation16]
    $region61: #{motion_ae_forward.1} parent=1 // pred_fallthru
      _
    // Predicated region
    $region62: #{motion_ae_forward.1} parent=1 // pred_check
      _
    $region63: #{motion_ae_forward.1} parent=1 // pred_check_branch
      %131 = sbr.rel (0) target = $region65
    $region64: #{motion_ae_forward.1} parent=1 // pred_region
      %132 = dma.done [#allocation4], 16
    $region65: #{motion_ae_forward.1} parent=1 // pred_fallthru
      _
    // Predicated region
    $region66: #{motion_ae_forward.1} parent=1 // pred_check
      _
    $region67: #{motion_ae_forward.1} parent=1 // pred_check_branch
      %134 = sbr.rel (0) target = $region69
    $region68: #{motion_ae_forward.1} parent=1 // pred_region
      %135 = dma.done [#allocation3], 256
    $region69: #{motion_ae_forward.1} parent=1 // pred_fallthru
      _
    // Predicated region
    $region70: #{motion_ae_forward.1} parent=1 // pred_check
      _
    $region71: #{motion_ae_forward.1} parent=1 // pred_check_branch
      %137 = sbr.rel (0) target = $region73
    $region72: #{motion_ae_forward.1} parent=1 // pred_region
      %138 = dma.done [#allocation7], 16
    $region73: #{motion_ae_forward.1} parent=1 // pred_fallthru
      _
    // Predicated region
    $region74: #{motion_ae_forward.1} parent=1 // pred_check
      _
    $region75: #{motion_ae_forward.1} parent=1 // pred_check_branch
      %140 = sbr.rel (0) target = $region77
    $region76: #{motion_ae_forward.1} parent=1 // pred_region
      %141 = dma.done [#allocation7], 16
    $region77: #{motion_ae_forward.1} parent=1 // pred_fallthru
      _
    // Predicated region
    $region78: #{motion_ae_forward.1} parent=1 // pred_check
      _
    $region79: #{motion_ae_forward.1} parent=1 // pred_check_branch
      %143 = sbr.rel (0) target = $region81
    $region80: #{motion_ae_forward.1} parent=1 // pred_region
      %144 = dma.done [#allocation10], 64
    $region81: #{motion_ae_forward.1} parent=1 // pred_fallthru
      _
    // Predicated region
    $region82: #{motion_ae_forward.1} parent=1 // pred_check
      _
    $region83: #{motion_ae_forward.1} parent=1 // pred_check_branch
      %146 = sbr.rel (0) target = $region85
    $region84: #{motion_ae_forward.1} parent=1 // pred_region
      %147 = dma.done [#allocation10], 16
    $region85: #{motion_ae_forward.1} parent=1 // pred_fallthru
      _
    // Predicated region
    $region86: #{motion_ae_forward.1} parent=1 // pred_check
      _
    $region87: #{motion_ae_forward.1} parent=1 // pred_check_branch
      %149 = sbr.rel (0) target = $region89
    $region88: #{motion_ae_forward.1} parent=1 // pred_region
      %150 = dma.done [#allocation13], 16
    $region89: #{motion_ae_forward.1} parent=1 // pred_fallthru
      _
    // Predicated region
    $region90: #{motion_ae_forward.1} parent=1 // pred_check
      _
    $region91: #{motion_ae_forward.1} parent=1 // pred_check_branch
      %152 = sbr.rel (0) target = $region93
    $region92: #{motion_ae_forward.1} parent=1 // pred_region
      %153 = dma.done [#allocation13], 128
    $region93: #{motion_ae_forward.1} parent=1 // pred_fallthru
      _
    // Predicated region
    $region94: #{motion_ae_forward.1} parent=1 // pred_check
      _
    $region95: #{motion_ae_forward.1} parent=1 // pred_check_branch
      %155 = sbr.rel (0) target = $region97
    $region96: #{motion_ae_forward.1} parent=1 // pred_region
      %156 = dma.done [#allocation16], 16
    $region97: #{motion_ae_forward.1} parent=1 // pred_fallthru
      _
    %157 = sfence
    %v158 = vld [vmem:[%s1] sm:$0xff]
    %s159 = scalar_lea.vmem %s1, 8
    %v160 = vld [vmem:[%s159] sm:$0xff]
    %v161 = vld [vmem:[%s2] sm:$0xf]
    %v162 = vld [vmem:[%s3] sm:$0x1]
    %v164 = vlaneseq
    %v165 = vshrl.u32 %v164, 7
    %v166 = vsub.s32 0, %v165
    %v167 = vrot.slane %v162, %v166
    %vm169 = vcmask 31744
    %v171 = vsel %vm169, %v158, 0
    %v174 = vsel %vm169, %v160, 0
    %vm176 = vcmask 1043456
    %v178 = vsel %vm176, %v161, 0
    %180 = vmatprep.subr.mxu0 0.0
    %181 = vmatpush1.msra.mxu0 %v178
    %182 = vmatprep.subr.mxu0 0.0
    %183 = vmatpush1.msra.mxu0 0.0
    %184 = vmatprep.subr.mxu0 0.0
    %185 = vmatpush1.msra.mxu0 0.0
    %186 = vmatprep.subr.mxu0 0.0
    %187 = vmatpush1.msra.mxu0 0.0
    %188 = vmatprep.subr.mxu0 0.0
    %189 = vmatpush1.msra.mxu0 0.0
    %190 = vmatprep.subr.mxu0 0.0
    %191 = vmatpush1.msra.mxu0 0.0
    %192 = vmatprep.subr.mxu0 0.0
    %193 = vmatpush1.msra.mxu0 0.0
    %194 = vmatprep.subr.mxu0 0.0
    %195 = vmatpush1.msra.mxu0 0.0
    %196 = vmatprep.subr.mxu0 0.0
    %197 = vmatpush1.msra.mxu0 0.0
    %198 = vmatprep.subr.mxu0 0.0
    %199 = vmatpush1.msra.mxu0 0.0
    %200 = vmatprep.subr.mxu0 0.0
    %201 = vmatpush1.msra.mxu0 0.0
    %202 = vmatprep.subr.mxu0 0.0
    %203 = vmatpush1.msra.mxu0 0.0
    %204 = vmatprep.subr.mxu0 0.0
    %205 = vmatpush1.msra.mxu0 0.0
    %206 = vmatprep.subr.mxu0 0.0
    %207 = vmatpush1.msra.mxu0 0.0
    %208 = vmatprep.subr.mxu0 0.0
    %209 = vmatpush1.msra.mxu0 0.0
    %210 = vmatprep.subr.mxu0 0.0
    %211 = vmatpush1.msra.mxu0 0.0
    %212 = vmatprep.subr.mxu0 0.0
    %213 = vmatpush1.msra.mxu0 0.0
    %214 = vmatprep.subr.mxu0 0.0
    %215 = vmatpush1.msra.mxu0 0.0
    %216 = vmatprep.subr.mxu0 0.0
    %217 = vmatpush1.msra.mxu0 0.0
    %218 = vmatprep.subr.mxu0 0.0
    %219 = vmatpush1.msra.mxu0 0.0
    %220 = vmatprep.subr.mxu0 0.0
    %221 = vmatpush1.msra.mxu0 0.0
    %222 = vmatprep.subr.mxu0 0.0
    %223 = vmatpush1.msra.mxu0 0.0
    %224 = vmatprep.subr.mxu0 0.0
    %225 = vmatpush1.msra.mxu0 0.0
    %226 = vmatprep.subr.mxu0 0.0
    %227 = vmatpush1.msra.mxu0 0.0
    %228 = vmatprep.subr.mxu0 0.0
    %229 = vmatpush1.msra.mxu0 0.0
    %230 = vmatprep.subr.mxu0 0.0
    %231 = vmatpush1.msra.mxu0 0.0
    %232 = vmatprep.subr.mxu0 0.0
    %233 = vmatpush1.msra.mxu0 0.0
    %234 = vmatprep.subr.mxu0 0.0
    %235 = vmatpush1.msra.mxu0 0.0
    %236 = vmatprep.subr.mxu0 0.0
    %237 = vmatpush1.msra.mxu0 0.0
    %238 = vmatprep.subr.mxu0 0.0
    %239 = vmatpush1.msra.mxu0 0.0
    %240 = vmatprep.subr.mxu0 0.0
    %241 = vmatpush1.msra.mxu0 0.0
    %242 = vmatprep.subr.mxu0 0.0
    %243 = vmatpush1.msra.mxu0 0.0
    %244 = vmatprep.mubr.f32.mxu0 0.0
    %245 = vmatmul.mubr.f32.gmra.mrb[0].mxu0 %v171
    %v246 = vpop.f32.mrb[0].mxu0
    %v247 = vadd.f32 %v167, %v246
    %v248 = vpop.f32.mrb[0].mxu0
    %249 = vmatprep.mubr.f32.mxu0 0.0
    %250 = vmatmul.mubr.f32.gmra.mrb[0].mxu0 %v174
    %v251 = vpop.f32.mrb[0].mxu0
    %v252 = vadd.f32 %v167, %v251
    %v253 = vpop.f32.mrb[0].mxu0
    %254 = vdwg.mxu0
    %v255 = vmax.f32 %v247, 0.0
    %v256 = vmax.f32 %v252, 0.0
    %v257 = vld [vmem:[#allocation5] sm:$0xff]
    %v258 = vld [vmem:[#allocation5 + $0x8] sm:$0xff]
    %v259 = vld [vmem:[#allocation6] sm:$0x1]
    %v261 = vlaneseq
    %v262 = vshrl.u32 %v261, 7
    %v263 = vsub.s32 0, %v262
    %v264 = vrot.slane %v259, %v263
    %vm266 = vcmask 130048
    %v268 = vsel %vm266, %v255, 0
    %v271 = vsel %vm266, %v256, 0
    %273 = vmatprep.subr.mxu0 0.0
    %274 = vmatpush1.msra.mxu0 %v257
    %275 = vmatprep.subr.mxu0 0.0
    %276 = vmatpush1.msra.mxu0 %v258
    %277 = vmatprep.subr.mxu0 0.0
    %278 = vmatpush1.msra.mxu0 0.0
    %279 = vmatprep.subr.mxu0 0.0
    %280 = vmatpush1.msra.mxu0 0.0
    %281 = vmatprep.subr.mxu0 0.0
    %282 = vmatpush1.msra.mxu0 0.0
    %283 = vmatprep.subr.mxu0 0.0
    %284 = vmatpush1.msra.mxu0 0.0
    %285 = vmatprep.subr.mxu0 0.0
    %286 = vmatpush1.msra.mxu0 0.0
    %287 = vmatprep.subr.mxu0 0.0
    %288 = vmatpush1.msra.mxu0 0.0
    %289 = vmatprep.subr.mxu0 0.0
    %290 = vmatpush1.msra.mxu0 0.0
    %291 = vmatprep.subr.mxu0 0.0
    %292 = vmatpush1.msra.mxu0 0.0
    %293 = vmatprep.subr.mxu0 0.0
    %294 = vmatpush1.msra.mxu0 0.0
    %295 = vmatprep.subr.mxu0 0.0
    %296 = vmatpush1.msra.mxu0 0.0
    %297 = vmatprep.subr.mxu0 0.0
    %298 = vmatpush1.msra.mxu0 0.0
    %299 = vmatprep.subr.mxu0 0.0
    %300 = vmatpush1.msra.mxu0 0.0
    %301 = vmatprep.subr.mxu0 0.0
    %302 = vmatpush1.msra.mxu0 0.0
    %303 = vmatprep.subr.mxu0 0.0
    %304 = vmatpush1.msra.mxu0 0.0
    %305 = vmatprep.subr.mxu0 0.0
    %306 = vmatpush1.msra.mxu0 0.0
    %307 = vmatprep.subr.mxu0 0.0
    %308 = vmatpush1.msra.mxu0 0.0
    %309 = vmatprep.subr.mxu0 0.0
    %310 = vmatpush1.msra.mxu0 0.0
    %311 = vmatprep.subr.mxu0 0.0
    %312 = vmatpush1.msra.mxu0 0.0
    %313 = vmatprep.subr.mxu0 0.0
    %314 = vmatpush1.msra.mxu0 0.0
    %315 = vmatprep.subr.mxu0 0.0
    %316 = vmatpush1.msra.mxu0 0.0
    %317 = vmatprep.subr.mxu0 0.0
    %318 = vmatpush1.msra.mxu0 0.0
    %319 = vmatprep.subr.mxu0 0.0
    %320 = vmatpush1.msra.mxu0 0.0
    %321 = vmatprep.subr.mxu0 0.0
    %322 = vmatpush1.msra.mxu0 0.0
    %323 = vmatprep.subr.mxu0 0.0
    %324 = vmatpush1.msra.mxu0 0.0
    %325 = vmatprep.subr.mxu0 0.0
    %326 = vmatpush1.msra.mxu0 0.0
    %327 = vmatprep.subr.mxu0 0.0
    %328 = vmatpush1.msra.mxu0 0.0
    %329 = vmatprep.subr.mxu0 0.0
    %330 = vmatpush1.msra.mxu0 0.0
    %331 = vmatprep.subr.mxu0 0.0
    %332 = vmatpush1.msra.mxu0 0.0
    %333 = vmatprep.subr.mxu0 0.0
    %334 = vmatpush1.msra.mxu0 0.0
    %335 = vmatprep.subr.mxu0 0.0
    %336 = vmatpush1.msra.mxu0 0.0
    %337 = vmatprep.mubr.f32.mxu0 0.0
    %338 = vmatmul.mubr.f32.gmra.mrb[0].mxu0 %v268
    %v339 = vpop.f32.mrb[0].mxu0
    %v340 = vadd.f32 %v264, %v339
    %v341 = vpop.f32.mrb[0].mxu0
    %342 = vmatprep.mubr.f32.mxu0 0.0
    %343 = vmatmul.mubr.f32.gmra.mrb[0].mxu0 %v271
    %v344 = vpop.f32.mrb[0].mxu0
    %v345 = vadd.f32 %v264, %v344
    %v346 = vpop.f32.mrb[0].mxu0
    %347 = vdwg.mxu0
    %v348 = vld [vmem:[#allocation9] sm:$0xf]
    %v349 = vld [vmem:[#allocation11] sm:$0x1]
    %v351 = vlaneseq
    %v352 = vshrl.u32 %v351, 7
    %v353 = vsub.s32 0, %v352
    %v354 = vrot.slane %v349, %v353
    %v357 = vsel %vm176, %v348, 0
    %359 = vmatprep.subr.mxu0 0.0
    %360 = vmatpush1.msra.mxu0 %v357
    %361 = vmatprep.subr.mxu0 0.0
    %362 = vmatpush1.msra.mxu0 0.0
    %363 = vmatprep.subr.mxu0 0.0
    %364 = vmatpush1.msra.mxu0 0.0
    %365 = vmatprep.subr.mxu0 0.0
    %366 = vmatpush1.msra.mxu0 0.0
    %367 = vmatprep.subr.mxu0 0.0
    %368 = vmatpush1.msra.mxu0 0.0
    %369 = vmatprep.subr.mxu0 0.0
    %370 = vmatpush1.msra.mxu0 0.0
    %371 = vmatprep.subr.mxu0 0.0
    %372 = vmatpush1.msra.mxu0 0.0
    %373 = vmatprep.subr.mxu0 0.0
    %374 = vmatpush1.msra.mxu0 0.0
    %375 = vmatprep.subr.mxu0 0.0
    %376 = vmatpush1.msra.mxu0 0.0
    %377 = vmatprep.subr.mxu0 0.0
    %378 = vmatpush1.msra.mxu0 0.0
    %379 = vmatprep.subr.mxu0 0.0
    %380 = vmatpush1.msra.mxu0 0.0
    %381 = vmatprep.subr.mxu0 0.0
    %382 = vmatpush1.msra.mxu0 0.0
    %383 = vmatprep.subr.mxu0 0.0
    %384 = vmatpush1.msra.mxu0 0.0
    %385 = vmatprep.subr.mxu0 0.0
    %386 = vmatpush1.msra.mxu0 0.0
    %387 = vmatprep.subr.mxu0 0.0
    %388 = vmatpush1.msra.mxu0 0.0
    %389 = vmatprep.subr.mxu0 0.0
    %390 = vmatpush1.msra.mxu0 0.0
    %391 = vmatprep.subr.mxu0 0.0
    %392 = vmatpush1.msra.mxu0 0.0
    %393 = vmatprep.subr.mxu0 0.0
    %394 = vmatpush1.msra.mxu0 0.0
    %395 = vmatprep.subr.mxu0 0.0
    %396 = vmatpush1.msra.mxu0 0.0
    %397 = vmatprep.subr.mxu0 0.0
    %398 = vmatpush1.msra.mxu0 0.0
    %399 = vmatprep.subr.mxu0 0.0
    %400 = vmatpush1.msra.mxu0 0.0
    %401 = vmatprep.subr.mxu0 0.0
    %402 = vmatpush1.msra.mxu0 0.0
    %403 = vmatprep.subr.mxu0 0.0
    %404 = vmatpush1.msra.mxu0 0.0
    %405 = vmatprep.subr.mxu0 0.0
    %406 = vmatpush1.msra.mxu0 0.0
    %407 = vmatprep.subr.mxu0 0.0
    %408 = vmatpush1.msra.mxu0 0.0
    %409 = vmatprep.subr.mxu0 0.0
    %410 = vmatpush1.msra.mxu0 0.0
    %411 = vmatprep.subr.mxu0 0.0
    %412 = vmatpush1.msra.mxu0 0.0
    %413 = vmatprep.subr.mxu0 0.0
    %414 = vmatpush1.msra.mxu0 0.0
    %415 = vmatprep.subr.mxu0 0.0
    %416 = vmatpush1.msra.mxu0 0.0
    %417 = vmatprep.subr.mxu0 0.0
    %418 = vmatpush1.msra.mxu0 0.0
    %419 = vmatprep.subr.mxu0 0.0
    %420 = vmatpush1.msra.mxu0 0.0
    %421 = vmatprep.subr.mxu0 0.0
    %422 = vmatpush1.msra.mxu0 0.0
    %423 = vmatprep.mubr.f32.mxu0 0.0
    %424 = vmatmul.mubr.f32.gmra.mrb[0].mxu0 %v171
    %v425 = vpop.f32.mrb[0].mxu0
    %v426 = vadd.f32 %v354, %v425
    %v427 = vpop.f32.mrb[0].mxu0
    %428 = vmatprep.mubr.f32.mxu0 0.0
    %429 = vmatmul.mubr.f32.gmra.mrb[0].mxu0 %v174
    %v430 = vpop.f32.mrb[0].mxu0
    %v431 = vadd.f32 %v354, %v430
    %v432 = vpop.f32.mrb[0].mxu0
    %433 = vdwg.mxu0
    %v435 = vrot.slane %v345, 7
    %vm437 = vcmask 1040384
    %v438 = vsel %vm437, %v340, %v435
    %v440 = vrot.slane %v340, 1
    %v442 = vsel %vm437, %v440, %v345
    %v443 = vrot.slane %v340, 2
    %v445 = vrot.slane %v345, 1
    %v447 = vsel %vm437, %v443, %v445
    %v448 = vrot.slane %v340, 3
    %v450 = vrot.slane %v345, 2
    %v452 = vsel %vm437, %v448, %v450
    %v453 = vrot.slane %v340, 4
    %v455 = vrot.slane %v345, 3
    %v457 = vsel %vm437, %v453, %v455
    %v458 = vrot.slane %v340, 5
    %v460 = vrot.slane %v345, 4
    %v462 = vsel %vm437, %v458, %v460
    %v463 = vrot.slane %v340, 6
    %v465 = vrot.slane %v345, 5
    %v467 = vsel %vm437, %v463, %v465
    %v468 = vrot.slane %v340, 7
    %v470 = vrot.slane %v345, 6
    %v472 = vsel %vm437, %v468, %v470
    %v474 = vrot.slane %v431, 7
    %v476 = vsel %vm437, %v426, %v474
    %v478 = vrot.slane %v426, 1
    %v480 = vsel %vm437, %v478, %v431
    %v481 = vrot.slane %v426, 2
    %v483 = vrot.slane %v431, 1
    %v485 = vsel %vm437, %v481, %v483
    %v486 = vrot.slane %v426, 3
    %v488 = vrot.slane %v431, 2
    %v490 = vsel %vm437, %v486, %v488
    %v491 = vrot.slane %v426, 4
    %v493 = vrot.slane %v431, 3
    %v495 = vsel %vm437, %v491, %v493
    %v496 = vrot.slane %v426, 5
    %v498 = vrot.slane %v431, 4
    %v500 = vsel %vm437, %v496, %v498
    %v501 = vrot.slane %v426, 6
    %v503 = vrot.slane %v431, 5
    %v505 = vsel %vm437, %v501, %v503
    %v506 = vrot.slane %v426, 7
    %v508 = vrot.slane %v431, 6
    %v510 = vsel %vm437, %v506, %v508
    %s511 = sld [smem:[#allocation2]]
    %v512 = vstv %s511
    %vm513 = vcmp.gt.s32.totalorder %v512, 0
    %s514 = sld [smem:[#allocation2 + $0x1]]
    %v515 = vstv %s514
    %vm516 = vcmp.gt.s32.totalorder %v515, 0
    %s517 = sld [smem:[#allocation2 + $0x2]]
    %v518 = vstv %s517
    %vm519 = vcmp.gt.s32.totalorder %v518, 0
    %s520 = sld [smem:[#allocation2 + $0x3]]
    %v521 = vstv %s520
    %vm522 = vcmp.gt.s32.totalorder %v521, 0
    %s523 = sld [smem:[#allocation2 + $0x4]]
    %v524 = vstv %s523
    %vm525 = vcmp.gt.s32.totalorder %v524, 0
    %s526 = sld [smem:[#allocation2 + $0x5]]
    %v527 = vstv %s526
    %vm528 = vcmp.gt.s32.totalorder %v527, 0
    %s529 = sld [smem:[#allocation2 + $0x6]]
    %v530 = vstv %s529
    %vm531 = vcmp.gt.s32.totalorder %v530, 0
    %v532 = vld [vmem:[%s6] sm:$0xff]
    %v533 = vld [vmem:[%s6 + $0x8] sm:$0xff]
    %v534 = vld [vmem:[%s6 + $0x10] sm:$0xff]
    %v535 = vld [vmem:[%s6 + $0x18] sm:$0xff]
    %v536 = vld [vmem:[#allocation8] sm:$0x1]
    %v538 = vlaneseq
    %v539 = vshrl.u32 %v538, 7
    %v540 = vsub.s32 0, %v539
    %v541 = vrot.slane %v536, %v540
    %v543 = vadd.f32 %v438, 0.0
    %v544 = vxor.u32 %v543, 2147483648
    %v545 = vmul.f32 %v544, 1.442695
    %v546 = vpow.pop %v545
    %v547 = vadd.f32 %v546, 1.0
    %v548 = vrcp.pop %v547
    %v549 = vmul.f32 1.0, %v548
    %v550 = vadd.f32 %v541, 0.0
    %552 = vrot.lane.b32.xlu0 %v550, 32
    %v553 = vpop.permute.xlu0 %552
    %v555 = vmul.f32 %v549, %v553
    %557 = vrot.lane.b32.xlu0 %v555, 96
    %v558 = vpop.permute.xlu0 %557
    %v560 = vadd.f32 %v438, %v558
    %v561 = vtanh.pop %v560
    %v562 = vsub.f32 1.0, %v549
    %564 = vrot.lane.b32.xlu0 %v561, 64
    %v565 = vpop.permute.xlu0 %564
    %v567 = vmul.f32 %v562, %v565
    %v568 = vmul.f32 %v549, 0.0
    %v569 = vadd.f32 %v567, %v568
    %571 = vrot.lane.b32.xlu0 %v569, 64
    %v572 = vpop.permute.xlu0 %571
    %vm573 = vcmask 261120
    %v574 = vsel %vm573, %v572, 0
    %576 = vmatprep.subr.mxu0 0.0
    %577 = vmatpush1.msra.mxu0 %v532
    %578 = vmatprep.subr.mxu0 0.0
    %579 = vmatpush1.msra.mxu0 %v533
    %580 = vmatprep.subr.mxu0 0.0
    %581 = vmatpush1.msra.mxu0 %v534
    %582 = vmatprep.subr.mxu0 0.0
    %583 = vmatpush1.msra.mxu0 %v535
    %584 = vmatprep.subr.mxu0 0.0
    %585 = vmatpush1.msra.mxu0 0.0
    %586 = vmatprep.subr.mxu0 0.0
    %587 = vmatpush1.msra.mxu0 0.0
    %588 = vmatprep.subr.mxu0 0.0
    %589 = vmatpush1.msra.mxu0 0.0
    %590 = vmatprep.subr.mxu0 0.0
    %591 = vmatpush1.msra.mxu0 0.0
    %592 = vmatprep.subr.mxu0 0.0
    %593 = vmatpush1.msra.mxu0 0.0
    %594 = vmatprep.subr.mxu0 0.0
    %595 = vmatpush1.msra.mxu0 0.0
    %596 = vmatprep.subr.mxu0 0.0
    %597 = vmatpush1.msra.mxu0 0.0
    %598 = vmatprep.subr.mxu0 0.0
    %599 = vmatpush1.msra.mxu0 0.0
    %600 = vmatprep.subr.mxu0 0.0
    %601 = vmatpush1.msra.mxu0 0.0
    %602 = vmatprep.subr.mxu0 0.0
    %603 = vmatpush1.msra.mxu0 0.0
    %604 = vmatprep.subr.mxu0 0.0
    %605 = vmatpush1.msra.mxu0 0.0
    %606 = vmatprep.subr.mxu0 0.0
    %607 = vmatpush1.msra.mxu0 0.0
    %608 = vmatprep.subr.mxu0 0.0
    %609 = vmatpush1.msra.mxu0 0.0
    %610 = vmatprep.subr.mxu0 0.0
    %611 = vmatpush1.msra.mxu0 0.0
    %612 = vmatprep.subr.mxu0 0.0
    %613 = vmatpush1.msra.mxu0 0.0
    %614 = vmatprep.subr.mxu0 0.0
    %615 = vmatpush1.msra.mxu0 0.0
    %616 = vmatprep.subr.mxu0 0.0
    %617 = vmatpush1.msra.mxu0 0.0
    %618 = vmatprep.subr.mxu0 0.0
    %619 = vmatpush1.msra.mxu0 0.0
    %620 = vmatprep.subr.mxu0 0.0
    %621 = vmatpush1.msra.mxu0 0.0
    %622 = vmatprep.subr.mxu0 0.0
    %623 = vmatpush1.msra.mxu0 0.0
    %624 = vmatprep.subr.mxu0 0.0
    %625 = vmatpush1.msra.mxu0 0.0
    %626 = vmatprep.subr.mxu0 0.0
    %627 = vmatpush1.msra.mxu0 0.0
    %628 = vmatprep.subr.mxu0 0.0
    %629 = vmatpush1.msra.mxu0 0.0
    %630 = vmatprep.subr.mxu0 0.0
    %631 = vmatpush1.msra.mxu0 0.0
    %632 = vmatprep.subr.mxu0 0.0
    %633 = vmatpush1.msra.mxu0 0.0
    %634 = vmatprep.subr.mxu0 0.0
    %635 = vmatpush1.msra.mxu0 0.0
    %636 = vmatprep.subr.mxu0 0.0
    %637 = vmatpush1.msra.mxu0 0.0
    %638 = vmatprep.subr.mxu0 0.0
    %639 = vmatpush1.msra.mxu0 0.0
    %640 = vmatprep.mubr.f32.mxu0 0.0
    %641 = vmatmul.mubr.f32.gmra.mrb[0].mxu0 %v574
    %v642 = vpop.f32.mrb[0].mxu0
    %v643 = vadd.f32 0.0, %v642
    %v644 = vpop.f32.mrb[0].mxu0
    %645 = vdwg.mxu0
    %v646 = vadd.f32 %v442, %v643
    %v647 = vxor.u32 %v646, 2147483648
    %v648 = vmul.f32 %v647, 1.442695
    %v649 = vpow.pop %v648
    %v650 = vadd.f32 %v649, 1.0
    %v651 = vrcp.pop %v650
    %v652 = vmul.f32 1.0, %v651
    %v653 = vadd.f32 %v643, %v541
    %655 = vrot.lane.b32.xlu0 %v653, 32
    %v656 = vpop.permute.xlu0 %655
    %v658 = vmul.f32 %v652, %v656
    %660 = vrot.lane.b32.xlu0 %v658, 96
    %v661 = vpop.permute.xlu0 %660
    %v663 = vadd.f32 %v442, %v661
    %v664 = vtanh.pop %v663
    %v665 = vsub.f32 1.0, %v652
    %667 = vrot.lane.b32.xlu0 %v664, 64
    %v668 = vpop.permute.xlu0 %667
    %v670 = vmul.f32 %v665, %v668
    %v671 = vmul.f32 %v652, %v569
    %v672 = vadd.f32 %v670, %v671
    %674 = vrot.lane.b32.xlu0 %v672, 64
    %v675 = vpop.permute.xlu0 %674
    %v676 = vsel %vm573, %v675, 0
    %678 = vmatprep.subr.mxu0 0.0
    %679 = vmatpush1.msra.mxu0 %v532
    %680 = vmatprep.subr.mxu0 0.0
    %681 = vmatpush1.msra.mxu0 %v533
    %682 = vmatprep.subr.mxu0 0.0
    %683 = vmatpush1.msra.mxu0 %v534
    %684 = vmatprep.subr.mxu0 0.0
    %685 = vmatpush1.msra.mxu0 %v535
    %686 = vmatprep.subr.mxu0 0.0
    %687 = vmatpush1.msra.mxu0 0.0
    %688 = vmatprep.subr.mxu0 0.0
    %689 = vmatpush1.msra.mxu0 0.0
    %690 = vmatprep.subr.mxu0 0.0
    %691 = vmatpush1.msra.mxu0 0.0
    %692 = vmatprep.subr.mxu0 0.0
    %693 = vmatpush1.msra.mxu0 0.0
    %694 = vmatprep.subr.mxu0 0.0
    %695 = vmatpush1.msra.mxu0 0.0
    %696 = vmatprep.subr.mxu0 0.0
    %697 = vmatpush1.msra.mxu0 0.0
    %698 = vmatprep.subr.mxu0 0.0
    %699 = vmatpush1.msra.mxu0 0.0
    %700 = vmatprep.subr.mxu0 0.0
    %701 = vmatpush1.msra.mxu0 0.0
    %702 = vmatprep.subr.mxu0 0.0
    %703 = vmatpush1.msra.mxu0 0.0
    %704 = vmatprep.subr.mxu0 0.0
    %705 = vmatpush1.msra.mxu0 0.0
    %706 = vmatprep.subr.mxu0 0.0
    %707 = vmatpush1.msra.mxu0 0.0
    %708 = vmatprep.subr.mxu0 0.0
    %709 = vmatpush1.msra.mxu0 0.0
    %710 = vmatprep.subr.mxu0 0.0
    %711 = vmatpush1.msra.mxu0 0.0
    %712 = vmatprep.subr.mxu0 0.0
    %713 = vmatpush1.msra.mxu0 0.0
    %714 = vmatprep.subr.mxu0 0.0
    %715 = vmatpush1.msra.mxu0 0.0
    %716 = vmatprep.subr.mxu0 0.0
    %717 = vmatpush1.msra.mxu0 0.0
    %718 = vmatprep.subr.mxu0 0.0
    %719 = vmatpush1.msra.mxu0 0.0
    %720 = vmatprep.subr.mxu0 0.0
    %721 = vmatpush1.msra.mxu0 0.0
    %722 = vmatprep.subr.mxu0 0.0
    %723 = vmatpush1.msra.mxu0 0.0
    %724 = vmatprep.subr.mxu0 0.0
    %725 = vmatpush1.msra.mxu0 0.0
    %726 = vmatprep.subr.mxu0 0.0
    %727 = vmatpush1.msra.mxu0 0.0
    %728 = vmatprep.subr.mxu0 0.0
    %729 = vmatpush1.msra.mxu0 0.0
    %730 = vmatprep.subr.mxu0 0.0
    %731 = vmatpush1.msra.mxu0 0.0
    %732 = vmatprep.subr.mxu0 0.0
    %733 = vmatpush1.msra.mxu0 0.0
    %734 = vmatprep.subr.mxu0 0.0
    %735 = vmatpush1.msra.mxu0 0.0
    %736 = vmatprep.subr.mxu0 0.0
    %737 = vmatpush1.msra.mxu0 0.0
    %738 = vmatprep.subr.mxu0 0.0
    %739 = vmatpush1.msra.mxu0 0.0
    %740 = vmatprep.subr.mxu0 0.0
    %741 = vmatpush1.msra.mxu0 0.0
    %742 = vmatprep.mubr.f32.mxu0 0.0
    %743 = vmatmul.mubr.f32.gmra.mrb[0].mxu0 %v676
    %v744 = vpop.f32.mrb[0].mxu0
    %v745 = vadd.f32 0.0, %v744
    %v746 = vpop.f32.mrb[0].mxu0
    %747 = vdwg.mxu0
    %v748 = vadd.f32 %v447, %v745
    %v749 = vxor.u32 %v748, 2147483648
    %v750 = vmul.f32 %v749, 1.442695
    %v751 = vpow.pop %v750
    %v752 = vadd.f32 %v751, 1.0
    %v753 = vrcp.pop %v752
    %v754 = vmul.f32 1.0, %v753
    %v755 = vadd.f32 %v745, %v541
    %757 = vrot.lane.b32.xlu0 %v755, 32
    %v758 = vpop.permute.xlu0 %757
    %v760 = vmul.f32 %v754, %v758
    %762 = vrot.lane.b32.xlu0 %v760, 96
    %v763 = vpop.permute.xlu0 %762
    %v765 = vadd.f32 %v447, %v763
    %v766 = vtanh.pop %v765
    %v767 = vsub.f32 1.0, %v754
    %769 = vrot.lane.b32.xlu0 %v766, 64
    %v770 = vpop.permute.xlu0 %769
    %v772 = vmul.f32 %v767, %v770
    %v773 = vmul.f32 %v754, %v672
    %v774 = vadd.f32 %v772, %v773
    %776 = vrot.lane.b32.xlu0 %v774, 64
    %v777 = vpop.permute.xlu0 %776
    %v778 = vsel %vm573, %v777, 0
    %780 = vmatprep.subr.mxu0 0.0
    %781 = vmatpush1.msra.mxu0 %v532
    %782 = vmatprep.subr.mxu0 0.0
    %783 = vmatpush1.msra.mxu0 %v533
    %784 = vmatprep.subr.mxu0 0.0
    %785 = vmatpush1.msra.mxu0 %v534
    %786 = vmatprep.subr.mxu0 0.0
    %787 = vmatpush1.msra.mxu0 %v535
    %788 = vmatprep.subr.mxu0 0.0
    %789 = vmatpush1.msra.mxu0 0.0
    %790 = vmatprep.subr.mxu0 0.0
    %791 = vmatpush1.msra.mxu0 0.0
    %792 = vmatprep.subr.mxu0 0.0
    %793 = vmatpush1.msra.mxu0 0.0
    %794 = vmatprep.subr.mxu0 0.0
    %795 = vmatpush1.msra.mxu0 0.0
    %796 = vmatprep.subr.mxu0 0.0
    %797 = vmatpush1.msra.mxu0 0.0
    %798 = vmatprep.subr.mxu0 0.0
    %799 = vmatpush1.msra.mxu0 0.0
    %800 = vmatprep.subr.mxu0 0.0
    %801 = vmatpush1.msra.mxu0 0.0
    %802 = vmatprep.subr.mxu0 0.0
    %803 = vmatpush1.msra.mxu0 0.0
    %804 = vmatprep.subr.mxu0 0.0
    %805 = vmatpush1.msra.mxu0 0.0
    %806 = vmatprep.subr.mxu0 0.0
    %807 = vmatpush1.msra.mxu0 0.0
    %808 = vmatprep.subr.mxu0 0.0
    %809 = vmatpush1.msra.mxu0 0.0
    %810 = vmatprep.subr.mxu0 0.0
    %811 = vmatpush1.msra.mxu0 0.0
    %812 = vmatprep.subr.mxu0 0.0
    %813 = vmatpush1.msra.mxu0 0.0
    %814 = vmatprep.subr.mxu0 0.0
    %815 = vmatpush1.msra.mxu0 0.0
    %816 = vmatprep.subr.mxu0 0.0
    %817 = vmatpush1.msra.mxu0 0.0
    %818 = vmatprep.subr.mxu0 0.0
    %819 = vmatpush1.msra.mxu0 0.0
    %820 = vmatprep.subr.mxu0 0.0
    %821 = vmatpush1.msra.mxu0 0.0
    %822 = vmatprep.subr.mxu0 0.0
    %823 = vmatpush1.msra.mxu0 0.0
    %824 = vmatprep.subr.mxu0 0.0
    %825 = vmatpush1.msra.mxu0 0.0
    %826 = vmatprep.subr.mxu0 0.0
    %827 = vmatpush1.msra.mxu0 0.0
    %828 = vmatprep.subr.mxu0 0.0
    %829 = vmatpush1.msra.mxu0 0.0
    %830 = vmatprep.subr.mxu0 0.0
    %831 = vmatpush1.msra.mxu0 0.0
    %832 = vmatprep.subr.mxu0 0.0
    %833 = vmatpush1.msra.mxu0 0.0
    %834 = vmatprep.subr.mxu0 0.0
    %835 = vmatpush1.msra.mxu0 0.0
    %836 = vmatprep.subr.mxu0 0.0
    %837 = vmatpush1.msra.mxu0 0.0
    %838 = vmatprep.subr.mxu0 0.0
    %839 = vmatpush1.msra.mxu0 0.0
    %840 = vmatprep.subr.mxu0 0.0
    %841 = vmatpush1.msra.mxu0 0.0
    %842 = vmatprep.subr.mxu0 0.0
    %843 = vmatpush1.msra.mxu0 0.0
    %844 = vmatprep.mubr.f32.mxu0 0.0
    %845 = vmatmul.mubr.f32.gmra.mrb[0].mxu0 %v778
    %v846 = vpop.f32.mrb[0].mxu0
    %v847 = vadd.f32 0.0, %v846
    %v848 = vpop.f32.mrb[0].mxu0
    %849 = vdwg.mxu0
    %v850 = vadd.f32 %v452, %v847
    %v851 = vxor.u32 %v850, 2147483648
    %v852 = vmul.f32 %v851, 1.442695
    %v853 = vpow.pop %v852
    %v854 = vadd.f32 %v853, 1.0
    %v855 = vrcp.pop %v854
    %v856 = vmul.f32 1.0, %v855
    %v857 = vadd.f32 %v847, %v541
    %859 = vrot.lane.b32.xlu0 %v857, 32
    %v860 = vpop.permute.xlu0 %859
    %v862 = vmul.f32 %v856, %v860
    %864 = vrot.lane.b32.xlu0 %v862, 96
    %v865 = vpop.permute.xlu0 %864
    %v867 = vadd.f32 %v452, %v865
    %v868 = vtanh.pop %v867
    %v869 = vsub.f32 1.0, %v856
    %871 = vrot.lane.b32.xlu0 %v868, 64
    %v872 = vpop.permute.xlu0 %871
    %v874 = vmul.f32 %v869, %v872
    %v875 = vmul.f32 %v856, %v774
    %v876 = vadd.f32 %v874, %v875
    %878 = vrot.lane.b32.xlu0 %v876, 64
    %v879 = vpop.permute.xlu0 %878
    %v880 = vsel %vm573, %v879, 0
    %882 = vmatprep.subr.mxu0 0.0
    %883 = vmatpush1.msra.mxu0 %v532
    %884 = vmatprep.subr.mxu0 0.0
    %885 = vmatpush1.msra.mxu0 %v533
    %886 = vmatprep.subr.mxu0 0.0
    %887 = vmatpush1.msra.mxu0 %v534
    %888 = vmatprep.subr.mxu0 0.0
    %889 = vmatpush1.msra.mxu0 %v535
    %890 = vmatprep.subr.mxu0 0.0
    %891 = vmatpush1.msra.mxu0 0.0
    %892 = vmatprep.subr.mxu0 0.0
    %893 = vmatpush1.msra.mxu0 0.0
    %894 = vmatprep.subr.mxu0 0.0
    %895 = vmatpush1.msra.mxu0 0.0
    %896 = vmatprep.subr.mxu0 0.0
    %897 = vmatpush1.msra.mxu0 0.0
    %898 = vmatprep.subr.mxu0 0.0
    %899 = vmatpush1.msra.mxu0 0.0
    %900 = vmatprep.subr.mxu0 0.0
    %901 = vmatpush1.msra.mxu0 0.0
    %902 = vmatprep.subr.mxu0 0.0
    %903 = vmatpush1.msra.mxu0 0.0
    %904 = vmatprep.subr.mxu0 0.0
    %905 = vmatpush1.msra.mxu0 0.0
    %906 = vmatprep.subr.mxu0 0.0
    %907 = vmatpush1.msra.mxu0 0.0
    %908 = vmatprep.subr.mxu0 0.0
    %909 = vmatpush1.msra.mxu0 0.0
    %910 = vmatprep.subr.mxu0 0.0
    %911 = vmatpush1.msra.mxu0 0.0
    %912 = vmatprep.subr.mxu0 0.0
    %913 = vmatpush1.msra.mxu0 0.0
    %914 = vmatprep.subr.mxu0 0.0
    %915 = vmatpush1.msra.mxu0 0.0
    %916 = vmatprep.subr.mxu0 0.0
    %917 = vmatpush1.msra.mxu0 0.0
    %918 = vmatprep.subr.mxu0 0.0
    %919 = vmatpush1.msra.mxu0 0.0
    %920 = vmatprep.subr.mxu0 0.0
    %921 = vmatpush1.msra.mxu0 0.0
    %922 = vmatprep.subr.mxu0 0.0
    %923 = vmatpush1.msra.mxu0 0.0
    %924 = vmatprep.subr.mxu0 0.0
    %925 = vmatpush1.msra.mxu0 0.0
    %926 = vmatprep.subr.mxu0 0.0
    %927 = vmatpush1.msra.mxu0 0.0
    %928 = vmatprep.subr.mxu0 0.0
    %929 = vmatpush1.msra.mxu0 0.0
    %930 = vmatprep.subr.mxu0 0.0
    %931 = vmatpush1.msra.mxu0 0.0
    %932 = vmatprep.subr.mxu0 0.0
    %933 = vmatpush1.msra.mxu0 0.0
    %934 = vmatprep.subr.mxu0 0.0
    %935 = vmatpush1.msra.mxu0 0.0
    %936 = vmatprep.subr.mxu0 0.0
    %937 = vmatpush1.msra.mxu0 0.0
    %938 = vmatprep.subr.mxu0 0.0
    %939 = vmatpush1.msra.mxu0 0.0
    %940 = vmatprep.subr.mxu0 0.0
    %941 = vmatpush1.msra.mxu0 0.0
    %942 = vmatprep.subr.mxu0 0.0
    %943 = vmatpush1.msra.mxu0 0.0
    %944 = vmatprep.subr.mxu0 0.0
    %945 = vmatpush1.msra.mxu0 0.0
    %946 = vmatprep.mubr.f32.mxu0 0.0
    %947 = vmatmul.mubr.f32.gmra.mrb[0].mxu0 %v880
    %v948 = vpop.f32.mrb[0].mxu0
    %v949 = vadd.f32 0.0, %v948
    %v950 = vpop.f32.mrb[0].mxu0
    %951 = vdwg.mxu0
    %v952 = vadd.f32 %v457, %v949
    %v953 = vxor.u32 %v952, 2147483648
    %v954 = vmul.f32 %v953, 1.442695
    %v955 = vpow.pop %v954
    %v956 = vadd.f32 %v955, 1.0
    %v957 = vrcp.pop %v956
    %v958 = vmul.f32 1.0, %v957
    %v959 = vadd.f32 %v949, %v541
    %961 = vrot.lane.b32.xlu0 %v959, 32
    %v962 = vpop.permute.xlu0 %961
    %v964 = vmul.f32 %v958, %v962
    %966 = vrot.lane.b32.xlu0 %v964, 96
    %v967 = vpop.permute.xlu0 %966
    %v969 = vadd.f32 %v457, %v967
    %v970 = vtanh.pop %v969
    %v971 = vsub.f32 1.0, %v958
    %973 = vrot.lane.b32.xlu0 %v970, 64
    %v974 = vpop.permute.xlu0 %973
    %v976 = vmul.f32 %v971, %v974
    %v977 = vmul.f32 %v958, %v876
    %v978 = vadd.f32 %v976, %v977
    %980 = vrot.lane.b32.xlu0 %v978, 64
    %v981 = vpop.permute.xlu0 %980
    %v982 = vsel %vm573, %v981, 0
    %984 = vmatprep.subr.mxu0 0.0
    %985 = vmatpush1.msra.mxu0 %v532
    %986 = vmatprep.subr.mxu0 0.0
    %987 = vmatpush1.msra.mxu0 %v533
    %988 = vmatprep.subr.mxu0 0.0
    %989 = vmatpush1.msra.mxu0 %v534
    %990 = vmatprep.subr.mxu0 0.0
    %991 = vmatpush1.msra.mxu0 %v535
    %992 = vmatprep.subr.mxu0 0.0
    %993 = vmatpush1.msra.mxu0 0.0
    %994 = vmatprep.subr.mxu0 0.0
    %995 = vmatpush1.msra.mxu0 0.0
    %996 = vmatprep.subr.mxu0 0.0
    %997 = vmatpush1.msra.mxu0 0.0
    %998 = vmatprep.subr.mxu0 0.0
    %999 = vmatpush1.msra.mxu0 0.0
    %1000 = vmatprep.subr.mxu0 0.0
    %1001 = vmatpush1.msra.mxu0 0.0
    %1002 = vmatprep.subr.mxu0 0.0
    %1003 = vmatpush1.msra.mxu0 0.0
    %1004 = vmatprep.subr.mxu0 0.0
    %1005 = vmatpush1.msra.mxu0 0.0
    %1006 = vmatprep.subr.mxu0 0.0
    %1007 = vmatpush1.msra.mxu0 0.0
    %1008 = vmatprep.subr.mxu0 0.0
    %1009 = vmatpush1.msra.mxu0 0.0
    %1010 = vmatprep.subr.mxu0 0.0
    %1011 = vmatpush1.msra.mxu0 0.0
    %1012 = vmatprep.subr.mxu0 0.0
    %1013 = vmatpush1.msra.mxu0 0.0
    %1014 = vmatprep.subr.mxu0 0.0
    %1015 = vmatpush1.msra.mxu0 0.0
    %1016 = vmatprep.subr.mxu0 0.0
    %1017 = vmatpush1.msra.mxu0 0.0
    %1018 = vmatprep.subr.mxu0 0.0
    %1019 = vmatpush1.msra.mxu0 0.0
    %1020 = vmatprep.subr.mxu0 0.0
    %1021 = vmatpush1.msra.mxu0 0.0
    %1022 = vmatprep.subr.mxu0 0.0
    %1023 = vmatpush1.msra.mxu0 0.0
    %1024 = vmatprep.subr.mxu0 0.0
    %1025 = vmatpush1.msra.mxu0 0.0
    %1026 = vmatprep.subr.mxu0 0.0
    %1027 = vmatpush1.msra.mxu0 0.0
    %1028 = vmatprep.subr.mxu0 0.0
    %1029 = vmatpush1.msra.mxu0 0.0
    %1030 = vmatprep.subr.mxu0 0.0
    %1031 = vmatpush1.msra.mxu0 0.0
    %1032 = vmatprep.subr.mxu0 0.0
    %1033 = vmatpush1.msra.mxu0 0.0
    %1034 = vmatprep.subr.mxu0 0.0
    %1035 = vmatpush1.msra.mxu0 0.0
    %1036 = vmatprep.subr.mxu0 0.0
    %1037 = vmatpush1.msra.mxu0 0.0
    %1038 = vmatprep.subr.mxu0 0.0
    %1039 = vmatpush1.msra.mxu0 0.0
    %1040 = vmatprep.subr.mxu0 0.0
    %1041 = vmatpush1.msra.mxu0 0.0
    %1042 = vmatprep.subr.mxu0 0.0
    %1043 = vmatpush1.msra.mxu0 0.0
    %1044 = vmatprep.subr.mxu0 0.0
    %1045 = vmatpush1.msra.mxu0 0.0
    %1046 = vmatprep.subr.mxu0 0.0
    %1047 = vmatpush1.msra.mxu0 0.0
    %1048 = vmatprep.mubr.f32.mxu0 0.0
    %1049 = vmatmul.mubr.f32.gmra.mrb[0].mxu0 %v982
    %v1050 = vpop.f32.mrb[0].mxu0
    %v1051 = vadd.f32 0.0, %v1050
    %v1052 = vpop.f32.mrb[0].mxu0
    %1053 = vdwg.mxu0
    %v1054 = vadd.f32 %v462, %v1051
    %v1055 = vxor.u32 %v1054, 2147483648
    %v1056 = vmul.f32 %v1055, 1.442695
    %v1057 = vpow.pop %v1056
    %v1058 = vadd.f32 %v1057, 1.0
    %v1059 = vrcp.pop %v1058
    %v1060 = vmul.f32 1.0, %v1059
    %v1061 = vadd.f32 %v1051, %v541
    %1063 = vrot.lane.b32.xlu0 %v1061, 32
    %v1064 = vpop.permute.xlu0 %1063
    %v1066 = vmul.f32 %v1060, %v1064
    %1068 = vrot.lane.b32.xlu0 %v1066, 96
    %v1069 = vpop.permute.xlu0 %1068
    %v1071 = vadd.f32 %v462, %v1069
    %v1072 = vtanh.pop %v1071
    %v1073 = vsub.f32 1.0, %v1060
    %1075 = vrot.lane.b32.xlu0 %v1072, 64
    %v1076 = vpop.permute.xlu0 %1075
    %v1078 = vmul.f32 %v1073, %v1076
    %v1079 = vmul.f32 %v1060, %v978
    %v1080 = vadd.f32 %v1078, %v1079
    %1082 = vrot.lane.b32.xlu0 %v1080, 64
    %v1083 = vpop.permute.xlu0 %1082
    %v1084 = vsel %vm573, %v1083, 0
    %1086 = vmatprep.subr.mxu0 0.0
    %1087 = vmatpush1.msra.mxu0 %v532
    %1088 = vmatprep.subr.mxu0 0.0
    %1089 = vmatpush1.msra.mxu0 %v533
    %1090 = vmatprep.subr.mxu0 0.0
    %1091 = vmatpush1.msra.mxu0 %v534
    %1092 = vmatprep.subr.mxu0 0.0
    %1093 = vmatpush1.msra.mxu0 %v535
    %1094 = vmatprep.subr.mxu0 0.0
    %1095 = vmatpush1.msra.mxu0 0.0
    %1096 = vmatprep.subr.mxu0 0.0
    %1097 = vmatpush1.msra.mxu0 0.0
    %1098 = vmatprep.subr.mxu0 0.0
    %1099 = vmatpush1.msra.mxu0 0.0
    %1100 = vmatprep.subr.mxu0 0.0
    %1101 = vmatpush1.msra.mxu0 0.0
    %1102 = vmatprep.subr.mxu0 0.0
    %1103 = vmatpush1.msra.mxu0 0.0
    %1104 = vmatprep.subr.mxu0 0.0
    %1105 = vmatpush1.msra.mxu0 0.0
    %1106 = vmatprep.subr.mxu0 0.0
    %1107 = vmatpush1.msra.mxu0 0.0
    %1108 = vmatprep.subr.mxu0 0.0
    %1109 = vmatpush1.msra.mxu0 0.0
    %1110 = vmatprep.subr.mxu0 0.0
    %1111 = vmatpush1.msra.mxu0 0.0
    %1112 = vmatprep.subr.mxu0 0.0
    %1113 = vmatpush1.msra.mxu0 0.0
    %1114 = vmatprep.subr.mxu0 0.0
    %1115 = vmatpush1.msra.mxu0 0.0
    %1116 = vmatprep.subr.mxu0 0.0
    %1117 = vmatpush1.msra.mxu0 0.0
    %1118 = vmatprep.subr.mxu0 0.0
    %1119 = vmatpush1.msra.mxu0 0.0
    %1120 = vmatprep.subr.mxu0 0.0
    %1121 = vmatpush1.msra.mxu0 0.0
    %1122 = vmatprep.subr.mxu0 0.0
    %1123 = vmatpush1.msra.mxu0 0.0
    %1124 = vmatprep.subr.mxu0 0.0
    %1125 = vmatpush1.msra.mxu0 0.0
    %1126 = vmatprep.subr.mxu0 0.0
    %1127 = vmatpush1.msra.mxu0 0.0
    %1128 = vmatprep.subr.mxu0 0.0
    %1129 = vmatpush1.msra.mxu0 0.0
    %1130 = vmatprep.subr.mxu0 0.0
    %1131 = vmatpush1.msra.mxu0 0.0
    %1132 = vmatprep.subr.mxu0 0.0
    %1133 = vmatpush1.msra.mxu0 0.0
    %1134 = vmatprep.subr.mxu0 0.0
    %1135 = vmatpush1.msra.mxu0 0.0
    %1136 = vmatprep.subr.mxu0 0.0
    %1137 = vmatpush1.msra.mxu0 0.0
    %1138 = vmatprep.subr.mxu0 0.0
    %1139 = vmatpush1.msra.mxu0 0.0
    %1140 = vmatprep.subr.mxu0 0.0
    %1141 = vmatpush1.msra.mxu0 0.0
    %1142 = vmatprep.subr.mxu0 0.0
    %1143 = vmatpush1.msra.mxu0 0.0
    %1144 = vmatprep.subr.mxu0 0.0
    %1145 = vmatpush1.msra.mxu0 0.0
    %1146 = vmatprep.subr.mxu0 0.0
    %1147 = vmatpush1.msra.mxu0 0.0
    %1148 = vmatprep.subr.mxu0 0.0
    %1149 = vmatpush1.msra.mxu0 0.0
    %1150 = vmatprep.mubr.f32.mxu0 0.0
    %1151 = vmatmul.mubr.f32.gmra.mrb[0].mxu0 %v1084
    %v1152 = vpop.f32.mrb[0].mxu0
    %v1153 = vadd.f32 0.0, %v1152
    %v1154 = vpop.f32.mrb[0].mxu0
    %1155 = vdwg.mxu0
    %v1156 = vadd.f32 %v467, %v1153
    %v1157 = vxor.u32 %v1156, 2147483648
    %v1158 = vmul.f32 %v1157, 1.442695
    %v1159 = vpow.pop %v1158
    %v1160 = vadd.f32 %v1159, 1.0
    %v1161 = vrcp.pop %v1160
    %v1162 = vmul.f32 1.0, %v1161
    %v1163 = vadd.f32 %v1153, %v541
    %1165 = vrot.lane.b32.xlu0 %v1163, 32
    %v1166 = vpop.permute.xlu0 %1165
    %v1168 = vmul.f32 %v1162, %v1166
    %1170 = vrot.lane.b32.xlu0 %v1168, 96
    %v1171 = vpop.permute.xlu0 %1170
    %v1173 = vadd.f32 %v467, %v1171
    %v1174 = vtanh.pop %v1173
    %v1175 = vsub.f32 1.0, %v1162
    %1177 = vrot.lane.b32.xlu0 %v1174, 64
    %v1178 = vpop.permute.xlu0 %1177
    %v1180 = vmul.f32 %v1175, %v1178
    %v1181 = vmul.f32 %v1162, %v1080
    %v1182 = vadd.f32 %v1180, %v1181
    %1184 = vrot.lane.b32.xlu0 %v1182, 64
    %v1185 = vpop.permute.xlu0 %1184
    %v1186 = vsel %vm573, %v1185, 0
    %1188 = vmatprep.subr.mxu0 0.0
    %1189 = vmatpush1.msra.mxu0 %v532
    %1190 = vmatprep.subr.mxu0 0.0
    %1191 = vmatpush1.msra.mxu0 %v533
    %1192 = vmatprep.subr.mxu0 0.0
    %1193 = vmatpush1.msra.mxu0 %v534
    %1194 = vmatprep.subr.mxu0 0.0
    %1195 = vmatpush1.msra.mxu0 %v535
    %1196 = vmatprep.subr.mxu0 0.0
    %1197 = vmatpush1.msra.mxu0 0.0
    %1198 = vmatprep.subr.mxu0 0.0
    %1199 = vmatpush1.msra.mxu0 0.0
    %1200 = vmatprep.subr.mxu0 0.0
    %1201 = vmatpush1.msra.mxu0 0.0
    %1202 = vmatprep.subr.mxu0 0.0
    %1203 = vmatpush1.msra.mxu0 0.0
    %1204 = vmatprep.subr.mxu0 0.0
    %1205 = vmatpush1.msra.mxu0 0.0
    %1206 = vmatprep.subr.mxu0 0.0
    %1207 = vmatpush1.msra.mxu0 0.0
    %1208 = vmatprep.subr.mxu0 0.0
    %1209 = vmatpush1.msra.mxu0 0.0
    %1210 = vmatprep.subr.mxu0 0.0
    %1211 = vmatpush1.msra.mxu0 0.0
    %1212 = vmatprep.subr.mxu0 0.0
    %1213 = vmatpush1.msra.mxu0 0.0
    %1214 = vmatprep.subr.mxu0 0.0
    %1215 = vmatpush1.msra.mxu0 0.0
    %1216 = vmatprep.subr.mxu0 0.0
    %1217 = vmatpush1.msra.mxu0 0.0
    %1218 = vmatprep.subr.mxu0 0.0
    %1219 = vmatpush1.msra.mxu0 0.0
    %1220 = vmatprep.subr.mxu0 0.0
    %1221 = vmatpush1.msra.mxu0 0.0
    %1222 = vmatprep.subr.mxu0 0.0
    %1223 = vmatpush1.msra.mxu0 0.0
    %1224 = vmatprep.subr.mxu0 0.0
    %1225 = vmatpush1.msra.mxu0 0.0
    %1226 = vmatprep.subr.mxu0 0.0
    %1227 = vmatpush1.msra.mxu0 0.0
    %1228 = vmatprep.subr.mxu0 0.0
    %1229 = vmatpush1.msra.mxu0 0.0
    %1230 = vmatprep.subr.mxu0 0.0
    %1231 = vmatpush1.msra.mxu0 0.0
    %1232 = vmatprep.subr.mxu0 0.0
    %1233 = vmatpush1.msra.mxu0 0.0
    %1234 = vmatprep.subr.mxu0 0.0
    %1235 = vmatpush1.msra.mxu0 0.0
    %1236 = vmatprep.subr.mxu0 0.0
    %1237 = vmatpush1.msra.mxu0 0.0
    %1238 = vmatprep.subr.mxu0 0.0
    %1239 = vmatpush1.msra.mxu0 0.0
    %1240 = vmatprep.subr.mxu0 0.0
    %1241 = vmatpush1.msra.mxu0 0.0
    %1242 = vmatprep.subr.mxu0 0.0
    %1243 = vmatpush1.msra.mxu0 0.0
    %1244 = vmatprep.subr.mxu0 0.0
    %1245 = vmatpush1.msra.mxu0 0.0
    %1246 = vmatprep.subr.mxu0 0.0
    %1247 = vmatpush1.msra.mxu0 0.0
    %1248 = vmatprep.subr.mxu0 0.0
    %1249 = vmatpush1.msra.mxu0 0.0
    %1250 = vmatprep.subr.mxu0 0.0
    %1251 = vmatpush1.msra.mxu0 0.0
    %1252 = vmatprep.mubr.f32.mxu0 0.0
    %1253 = vmatmul.mubr.f32.gmra.mrb[0].mxu0 %v1186
    %v1254 = vpop.f32.mrb[0].mxu0
    %v1255 = vadd.f32 0.0, %v1254
    %v1256 = vpop.f32.mrb[0].mxu0
    %1257 = vdwg.mxu0
    %v1258 = vadd.f32 %v472, %v1255
    %v1259 = vxor.u32 %v1258, 2147483648
    %v1260 = vmul.f32 %v1259, 1.442695
    %v1261 = vpow.pop %v1260
    %v1262 = vadd.f32 %v1261, 1.0
    %v1263 = vrcp.pop %v1262
    %v1264 = vmul.f32 1.0, %v1263
    %v1265 = vadd.f32 %v1255, %v541
    %1267 = vrot.lane.b32.xlu0 %v1265, 32
    %v1268 = vpop.permute.xlu0 %1267
    %v1270 = vmul.f32 %v1264, %v1268
    %1272 = vrot.lane.b32.xlu0 %v1270, 96
    %v1273 = vpop.permute.xlu0 %1272
    %v1275 = vadd.f32 %v472, %v1273
    %v1276 = vtanh.pop %v1275
    %v1277 = vsub.f32 1.0, %v1264
    %1279 = vrot.lane.b32.xlu0 %v1276, 64
    %v1280 = vpop.permute.xlu0 %1279
    %v1282 = vmul.f32 %v1277, %v1280
    %v1283 = vmul.f32 %v1264, %v1182
    %v1284 = vadd.f32 %v1282, %v1283
    %v1285 = vld [vmem:[%s10] sm:$0xff]
    %v1286 = vld [vmem:[%s10 + $0x8] sm:$0xff]
    %v1287 = vld [vmem:[%s10 + $0x10] sm:$0xff]
    %v1288 = vld [vmem:[%s10 + $0x18] sm:$0xff]
    %v1289 = vld [vmem:[#allocation14] sm:$0xff]
    %v1290 = vld [vmem:[#allocation12] sm:$0x1]
    %v1292 = vlaneseq
    %v1293 = vshrl.u32 %v1292, 7
    %v1294 = vsub.s32 0, %v1293
    %v1295 = vrot.slane %v1290, %v1294
    %v1297 = vld [vmem:[%s12] sm:$0x1]
    %v1299 = vlaneseq
    %v1300 = vshrl.u32 %v1299, 7
    %v1301 = vsub.s32 0, %v1300
    %v1302 = vrot.slane %v1297, %v1301
    %v1303 = vld [vmem:[#allocation15] sm:$0x1]
    %v1305 = vlaneseq
    %v1306 = vshrl.u32 %v1305, 7
    %v1307 = vsub.s32 0, %v1306
    %v1308 = vrot.slane %v1303, %v1307
    %v1310 = vrot.slane %v160, 7
    %v1312 = vsel %vm437, %v158, %v1310
    %1314 = vrot.lane.b32.xlu0 %v1284, 64
    %v1315 = vpop.permute.xlu0 %1314
    %v1316 = vsel %vm573, %v1315, 0
    %1318 = vmatprep.subr.mxu0 0.0
    %1319 = vmatpush1.msra.mxu0 %v1285
    %1320 = vmatprep.subr.mxu0 0.0
    %1321 = vmatpush1.msra.mxu0 %v1286
    %1322 = vmatprep.subr.mxu0 0.0
    %1323 = vmatpush1.msra.mxu0 %v1287
    %1324 = vmatprep.subr.mxu0 0.0
    %1325 = vmatpush1.msra.mxu0 %v1288
    %1326 = vmatprep.subr.mxu0 0.0
    %1327 = vmatpush1.msra.mxu0 0.0
    %1328 = vmatprep.subr.mxu0 0.0
    %1329 = vmatpush1.msra.mxu0 0.0
    %1330 = vmatprep.subr.mxu0 0.0
    %1331 = vmatpush1.msra.mxu0 0.0
    %1332 = vmatprep.subr.mxu0 0.0
    %1333 = vmatpush1.msra.mxu0 0.0
    %1334 = vmatprep.subr.mxu0 0.0
    %1335 = vmatpush1.msra.mxu0 0.0
    %1336 = vmatprep.subr.mxu0 0.0
    %1337 = vmatpush1.msra.mxu0 0.0
    %1338 = vmatprep.subr.mxu0 0.0
    %1339 = vmatpush1.msra.mxu0 0.0
    %1340 = vmatprep.subr.mxu0 0.0
    %1341 = vmatpush1.msra.mxu0 0.0
    %1342 = vmatprep.subr.mxu0 0.0
    %1343 = vmatpush1.msra.mxu0 0.0
    %1344 = vmatprep.subr.mxu0 0.0
    %1345 = vmatpush1.msra.mxu0 0.0
    %1346 = vmatprep.subr.mxu0 0.0
    %1347 = vmatpush1.msra.mxu0 0.0
    %1348 = vmatprep.subr.mxu0 0.0
    %1349 = vmatpush1.msra.mxu0 0.0
    %1350 = vmatprep.subr.mxu0 0.0
    %1351 = vmatpush1.msra.mxu0 0.0
    %1352 = vmatprep.subr.mxu0 0.0
    %1353 = vmatpush1.msra.mxu0 0.0
    %1354 = vmatprep.subr.mxu0 0.0
    %1355 = vmatpush1.msra.mxu0 0.0
    %1356 = vmatprep.subr.mxu0 0.0
    %1357 = vmatpush1.msra.mxu0 0.0
    %1358 = vmatprep.subr.mxu0 0.0
    %1359 = vmatpush1.msra.mxu0 0.0
    %1360 = vmatprep.subr.mxu0 0.0
    %1361 = vmatpush1.msra.mxu0 0.0
    %1362 = vmatprep.subr.mxu0 0.0
    %1363 = vmatpush1.msra.mxu0 0.0
    %1364 = vmatprep.subr.mxu0 0.0
    %1365 = vmatpush1.msra.mxu0 0.0
    %1366 = vmatprep.subr.mxu0 0.0
    %1367 = vmatpush1.msra.mxu0 0.0
    %1368 = vmatprep.subr.mxu0 0.0
    %1369 = vmatpush1.msra.mxu0 0.0
    %1370 = vmatprep.subr.mxu0 0.0
    %1371 = vmatpush1.msra.mxu0 0.0
    %1372 = vmatprep.subr.mxu0 0.0
    %1373 = vmatpush1.msra.mxu0 0.0
    %1374 = vmatprep.subr.mxu0 0.0
    %1375 = vmatpush1.msra.mxu0 0.0
    %1376 = vmatprep.subr.mxu0 0.0
    %1377 = vmatpush1.msra.mxu0 0.0
    %1378 = vmatprep.subr.mxu0 0.0
    %1379 = vmatpush1.msra.mxu0 0.0
    %1380 = vmatprep.subr.mxu0 0.0
    %1381 = vmatpush1.msra.mxu0 0.0
    %1382 = vmatprep.mubr.f32.mxu0 0.0
    %1383 = vmatmul.mubr.f32.gmra.mrb[0].mxu0 %v1316
    %v1384 = vpop.f32.mrb[0].mxu0
    %v1385 = vadd.f32 0.0, %v1384
    %v1386 = vpop.f32.mrb[0].mxu0
    %1387 = vdwg.mxu0
    %v1388 = vadd.f32 %v476, %v1385
    %v1389 = vxor.u32 %v1388, 2147483648
    %v1390 = vmul.f32 %v1389, 1.442695
    %v1391 = vpow.pop %v1390
    %v1392 = vadd.f32 %v1391, 1.0
    %v1393 = vrcp.pop %v1392
    %v1394 = vmul.f32 1.0, %v1393
    %v1395 = vadd.f32 %v1385, %v1295
    %1397 = vrot.lane.b32.xlu0 %v1395, 32
    %v1398 = vpop.permute.xlu0 %1397
    %v1400 = vmul.f32 %v1394, %v1398
    %1402 = vrot.lane.b32.xlu0 %v1400, 96
    %v1403 = vpop.permute.xlu0 %1402
    %v1405 = vadd.f32 %v476, %v1403
    %v1406 = vtanh.pop %v1405
    %v1407 = vsub.f32 1.0, %v1394
    %1409 = vrot.lane.b32.xlu0 %v1406, 64
    %v1410 = vpop.permute.xlu0 %1409
    %v1412 = vmul.f32 %v1407, %v1410
    %v1413 = vmul.f32 %v1394, %v1284
    %v1414 = vadd.f32 %v1412, %v1413
    %1416 = vrot.lane.b32.xlu0 %v1414, 64
    %v1417 = vpop.permute.xlu0 %1416
    %v1418 = vsel %vm573, %v1417, 0
    %1420 = vmatprep.subr.mxu0 0.0
    %1421 = vmatpush1.msra.mxu0 %v1285
    %1422 = vmatprep.subr.mxu0 0.0
    %1423 = vmatpush1.msra.mxu0 %v1286
    %1424 = vmatprep.subr.mxu0 0.0
    %1425 = vmatpush1.msra.mxu0 %v1287
    %1426 = vmatprep.subr.mxu0 0.0
    %1427 = vmatpush1.msra.mxu0 %v1288
    %1428 = vmatprep.subr.mxu0 0.0
    %1429 = vmatpush1.msra.mxu0 0.0
    %1430 = vmatprep.subr.mxu0 0.0
    %1431 = vmatpush1.msra.mxu0 0.0
    %1432 = vmatprep.subr.mxu0 0.0
    %1433 = vmatpush1.msra.mxu0 0.0
    %1434 = vmatprep.subr.mxu0 0.0
    %1435 = vmatpush1.msra.mxu0 0.0
    %1436 = vmatprep.subr.mxu0 0.0
    %1437 = vmatpush1.msra.mxu0 0.0
    %1438 = vmatprep.subr.mxu0 0.0
    %1439 = vmatpush1.msra.mxu0 0.0
    %1440 = vmatprep.subr.mxu0 0.0
    %1441 = vmatpush1.msra.mxu0 0.0
    %1442 = vmatprep.subr.mxu0 0.0
    %1443 = vmatpush1.msra.mxu0 0.0
    %1444 = vmatprep.subr.mxu0 0.0
    %1445 = vmatpush1.msra.mxu0 0.0
    %1446 = vmatprep.subr.mxu0 0.0
    %1447 = vmatpush1.msra.mxu0 0.0
    %1448 = vmatprep.subr.mxu0 0.0
    %1449 = vmatpush1.msra.mxu0 0.0
    %1450 = vmatprep.subr.mxu0 0.0
    %1451 = vmatpush1.msra.mxu0 0.0
    %1452 = vmatprep.subr.mxu0 0.0
    %1453 = vmatpush1.msra.mxu0 0.0
    %1454 = vmatprep.subr.mxu0 0.0
    %1455 = vmatpush1.msra.mxu0 0.0
    %1456 = vmatprep.subr.mxu0 0.0
    %1457 = vmatpush1.msra.mxu0 0.0
    %1458 = vmatprep.subr.mxu0 0.0
    %1459 = vmatpush1.msra.mxu0 0.0
    %1460 = vmatprep.subr.mxu0 0.0
    %1461 = vmatpush1.msra.mxu0 0.0
    %1462 = vmatprep.subr.mxu0 0.0
    %1463 = vmatpush1.msra.mxu0 0.0
    %1464 = vmatprep.subr.mxu0 0.0
    %1465 = vmatpush1.msra.mxu0 0.0
    %1466 = vmatprep.subr.mxu0 0.0
    %1467 = vmatpush1.msra.mxu0 0.0
    %1468 = vmatprep.subr.mxu0 0.0
    %1469 = vmatpush1.msra.mxu0 0.0
    %1470 = vmatprep.subr.mxu0 0.0
    %1471 = vmatpush1.msra.mxu0 0.0
    %1472 = vmatprep.subr.mxu0 0.0
    %1473 = vmatpush1.msra.mxu0 0.0
    %1474 = vmatprep.subr.mxu0 0.0
    %1475 = vmatpush1.msra.mxu0 0.0
    %1476 = vmatprep.subr.mxu0 0.0
    %1477 = vmatpush1.msra.mxu0 0.0
    %1478 = vmatprep.subr.mxu0 0.0
    %1479 = vmatpush1.msra.mxu0 0.0
    %1480 = vmatprep.subr.mxu0 0.0
    %1481 = vmatpush1.msra.mxu0 0.0
    %1482 = vmatprep.subr.mxu0 0.0
    %1483 = vmatpush1.msra.mxu0 0.0
    %1484 = vmatprep.mubr.f32.mxu0 0.0
    %1485 = vmatmul.mubr.f32.gmra.mrb[0].mxu0 %v1418
    %v1486 = vpop.f32.mrb[0].mxu0
    %v1487 = vadd.f32 0.0, %v1486
    %v1488 = vpop.f32.mrb[0].mxu0
    %1489 = vdwg.mxu0
    %1490 = vrot.lane.b32.xlu0 %v1302, 96
    %v1491 = vpop.permute.xlu0 %1490
    %v1493 = vadd.f32 %v1487, %v1491
    %v1494 = vmax.f32 %v1493, 0.0
    %1496 = vrot.lane.b32.xlu0 %v1494, 32
    %v1497 = vpop.permute.xlu0 %1496
    %vm1498 = vcmask 64512
    %v1499 = vsel %vm1498, %v1497, 0
    %1501 = vmatprep.subr.mxu0 0.0
    %1502 = vmatpush1.msra.mxu0 %v1289
    %1503 = vmatprep.subr.mxu0 0.0
    %1504 = vmatpush1.msra.mxu0 0.0
    %1505 = vmatprep.subr.mxu0 0.0
    %1506 = vmatpush1.msra.mxu0 0.0
    %1507 = vmatprep.subr.mxu0 0.0
    %1508 = vmatpush1.msra.mxu0 0.0
    %1509 = vmatprep.subr.mxu0 0.0
    %1510 = vmatpush1.msra.mxu0 0.0
    %1511 = vmatprep.subr.mxu0 0.0
    %1512 = vmatpush1.msra.mxu0 0.0
    %1513 = vmatprep.subr.mxu0 0.0
    %1514 = vmatpush1.msra.mxu0 0.0
    %1515 = vmatprep.subr.mxu0 0.0
    %1516 = vmatpush1.msra.mxu0 0.0
    %1517 = vmatprep.subr.mxu0 0.0
    %1518 = vmatpush1.msra.mxu0 0.0
    %1519 = vmatprep.subr.mxu0 0.0
    %1520 = vmatpush1.msra.mxu0 0.0
    %1521 = vmatprep.subr.mxu0 0.0
    %1522 = vmatpush1.msra.mxu0 0.0
    %1523 = vmatprep.subr.mxu0 0.0
    %1524 = vmatpush1.msra.mxu0 0.0
    %1525 = vmatprep.subr.mxu0 0.0
    %1526 = vmatpush1.msra.mxu0 0.0
    %1527 = vmatprep.subr.mxu0 0.0
    %1528 = vmatpush1.msra.mxu0 0.0
    %1529 = vmatprep.subr.mxu0 0.0
    %1530 = vmatpush1.msra.mxu0 0.0
    %1531 = vmatprep.subr.mxu0 0.0
    %1532 = vmatpush1.msra.mxu0 0.0
    %1533 = vmatprep.subr.mxu0 0.0
    %1534 = vmatpush1.msra.mxu0 0.0
    %1535 = vmatprep.subr.mxu0 0.0
    %1536 = vmatpush1.msra.mxu0 0.0
    %1537 = vmatprep.subr.mxu0 0.0
    %1538 = vmatpush1.msra.mxu0 0.0
    %1539 = vmatprep.subr.mxu0 0.0
    %1540 = vmatpush1.msra.mxu0 0.0
    %1541 = vmatprep.subr.mxu0 0.0
    %1542 = vmatpush1.msra.mxu0 0.0
    %1543 = vmatprep.subr.mxu0 0.0
    %1544 = vmatpush1.msra.mxu0 0.0
    %1545 = vmatprep.subr.mxu0 0.0
    %1546 = vmatpush1.msra.mxu0 0.0
    %1547 = vmatprep.subr.mxu0 0.0
    %1548 = vmatpush1.msra.mxu0 0.0
    %1549 = vmatprep.subr.mxu0 0.0
    %1550 = vmatpush1.msra.mxu0 0.0
    %1551 = vmatprep.subr.mxu0 0.0
    %1552 = vmatpush1.msra.mxu0 0.0
    %1553 = vmatprep.subr.mxu0 0.0
    %1554 = vmatpush1.msra.mxu0 0.0
    %1555 = vmatprep.subr.mxu0 0.0
    %1556 = vmatpush1.msra.mxu0 0.0
    %1557 = vmatprep.subr.mxu0 0.0
    %1558 = vmatpush1.msra.mxu0 0.0
    %1559 = vmatprep.subr.mxu0 0.0
    %1560 = vmatpush1.msra.mxu0 0.0
    %1561 = vmatprep.subr.mxu0 0.0
    %1562 = vmatpush1.msra.mxu0 0.0
    %1563 = vmatprep.subr.mxu0 0.0
    %1564 = vmatpush1.msra.mxu0 0.0
    %1565 = vmatprep.mubr.f32.mxu0 0.0
    %1566 = vmatmul.mubr.f32.gmra.mrb[0].mxu0 %v1499
    %v1567 = vpop.f32.mrb[0].mxu0
    %v1568 = vadd.f32 %v1308, %v1567
    %v1569 = vpop.f32.mrb[0].mxu0
    %1570 = vdwg.mxu0
    %v1571 = vadd.f32 %v476, %v1568
    %1573 = vrot.lane.b32.xlu0 %v1568, 32
    %v1574 = vpop.permute.xlu0 %1573
    %v1576 = vadd.f32 %v1312, %v1574
    %v1579 = vunpack.c.l.s4 1966171168
    %v1580 = vunpack.c.0.s8 %v1579
    %v1581 = vlaneseq
    %v1582 = vshrl.u32 %v1581, 7
    %v1583 = vsub.s32 %v1580, %v1582
    %v1584 = vrot.slane %v1576, %v1583
    %v1585 = vcombine.high %v1584, %v1584
    %v1587 = vunpack.c.l.s4 1966171168
    %v1588 = vunpack.c.0.s8 %v1587
    %v1589 = vlaneseq
    %v1590 = vshrl.u32 %v1589, 7
    %v1591 = vsub.s32 %v1588, %v1590
    %v1592 = vrot.slane %v1584, %v1591
    %v1594 = vunpack.c.l.s4 1966171168
    %v1595 = vunpack.c.0.s8 %v1594
    %v1596 = vlaneseq
    %v1597 = vshrl.u32 %v1596, 7
    %v1598 = vsub.s32 %v1595, %v1597
    %v1599 = vrot.slane %v1585, %v1598
    %vm1602 = vcmask 24576
    %1603 = vst.msk [vmem:[%s15] sm:$0x1] %vm1602, %v1592
    %1604 = vst.msk [vmem:[%s15 + $0x8] sm:$0x1] %vm1602, %v1599
    %v1605 = vsel %vm513, %v480, %v1571
    %v1606 = vadd.f32 %v1605, %v1487
    %v1607 = vxor.u32 %v1606, 2147483648
    %v1608 = vmul.f32 %v1607, 1.442695
    %v1609 = vpow.pop %v1608
    %v1610 = vadd.f32 %v1609, 1.0
    %v1611 = vrcp.pop %v1610
    %v1612 = vmul.f32 1.0, %v1611
    %v1613 = vadd.f32 %v1487, %v1295
    %1615 = vrot.lane.b32.xlu0 %v1613, 32
    %v1616 = vpop.permute.xlu0 %1615
    %v1618 = vmul.f32 %v1612, %v1616
    %1620 = vrot.lane.b32.xlu0 %v1618, 96
    %v1621 = vpop.permute.xlu0 %1620
    %v1623 = vadd.f32 %v1605, %v1621
    %v1624 = vtanh.pop %v1623
    %v1625 = vsub.f32 1.0, %v1612
    %1627 = vrot.lane.b32.xlu0 %v1624, 64
    %v1628 = vpop.permute.xlu0 %1627
    %v1630 = vmul.f32 %v1625, %v1628
    %v1631 = vmul.f32 %v1612, %v1414
    %v1632 = vadd.f32 %v1630, %v1631
    %1634 = vrot.lane.b32.xlu0 %v1632, 64
    %v1635 = vpop.permute.xlu0 %1634
    %v1636 = vsel %vm573, %v1635, 0
    %1638 = vmatprep.subr.mxu0 0.0
    %1639 = vmatpush1.msra.mxu0 %v1285
    %1640 = vmatprep.subr.mxu0 0.0
    %1641 = vmatpush1.msra.mxu0 %v1286
    %1642 = vmatprep.subr.mxu0 0.0
    %1643 = vmatpush1.msra.mxu0 %v1287
    %1644 = vmatprep.subr.mxu0 0.0
    %1645 = vmatpush1.msra.mxu0 %v1288
    %1646 = vmatprep.subr.mxu0 0.0
    %1647 = vmatpush1.msra.mxu0 0.0
    %1648 = vmatprep.subr.mxu0 0.0
    %1649 = vmatpush1.msra.mxu0 0.0
    %1650 = vmatprep.subr.mxu0 0.0
    %1651 = vmatpush1.msra.mxu0 0.0
    %1652 = vmatprep.subr.mxu0 0.0
    %1653 = vmatpush1.msra.mxu0 0.0
    %1654 = vmatprep.subr.mxu0 0.0
    %1655 = vmatpush1.msra.mxu0 0.0
    %1656 = vmatprep.subr.mxu0 0.0
    %1657 = vmatpush1.msra.mxu0 0.0
    %1658 = vmatprep.subr.mxu0 0.0
    %1659 = vmatpush1.msra.mxu0 0.0
    %1660 = vmatprep.subr.mxu0 0.0
    %1661 = vmatpush1.msra.mxu0 0.0
    %1662 = vmatprep.subr.mxu0 0.0
    %1663 = vmatpush1.msra.mxu0 0.0
    %1664 = vmatprep.subr.mxu0 0.0
    %1665 = vmatpush1.msra.mxu0 0.0
    %1666 = vmatprep.subr.mxu0 0.0
    %1667 = vmatpush1.msra.mxu0 0.0
    %1668 = vmatprep.subr.mxu0 0.0
    %1669 = vmatpush1.msra.mxu0 0.0
    %1670 = vmatprep.subr.mxu0 0.0
    %1671 = vmatpush1.msra.mxu0 0.0
    %1672 = vmatprep.subr.mxu0 0.0
    %1673 = vmatpush1.msra.mxu0 0.0
    %1674 = vmatprep.subr.mxu0 0.0
    %1675 = vmatpush1.msra.mxu0 0.0
    %1676 = vmatprep.subr.mxu0 0.0
    %1677 = vmatpush1.msra.mxu0 0.0
    %1678 = vmatprep.subr.mxu0 0.0
    %1679 = vmatpush1.msra.mxu0 0.0
    %1680 = vmatprep.subr.mxu0 0.0
    %1681 = vmatpush1.msra.mxu0 0.0
    %1682 = vmatprep.subr.mxu0 0.0
    %1683 = vmatpush1.msra.mxu0 0.0
    %1684 = vmatprep.subr.mxu0 0.0
    %1685 = vmatpush1.msra.mxu0 0.0
    %1686 = vmatprep.subr.mxu0 0.0
    %1687 = vmatpush1.msra.mxu0 0.0
    %1688 = vmatprep.subr.mxu0 0.0
    %1689 = vmatpush1.msra.mxu0 0.0
    %1690 = vmatprep.subr.mxu0 0.0
    %1691 = vmatpush1.msra.mxu0 0.0
    %1692 = vmatprep.subr.mxu0 0.0
    %1693 = vmatpush1.msra.mxu0 0.0
    %1694 = vmatprep.subr.mxu0 0.0
    %1695 = vmatpush1.msra.mxu0 0.0
    %1696 = vmatprep.subr.mxu0 0.0
    %1697 = vmatpush1.msra.mxu0 0.0
    %1698 = vmatprep.subr.mxu0 0.0
    %1699 = vmatpush1.msra.mxu0 0.0
    %1700 = vmatprep.subr.mxu0 0.0
    %1701 = vmatpush1.msra.mxu0 0.0
    %1702 = vmatprep.mubr.f32.mxu0 0.0
    %1703 = vmatmul.mubr.f32.gmra.mrb[0].mxu0 %v1636
    %v1704 = vpop.f32.mrb[0].mxu0
    %v1705 = vadd.f32 0.0, %v1704
    %v1706 = vpop.f32.mrb[0].mxu0
    %1707 = vdwg.mxu0
    %v1708 = vadd.f32 %v1705, %v1491
    %v1709 = vmax.f32 %v1708, 0.0
    %1711 = vrot.lane.b32.xlu0 %v1709, 32
    %v1712 = vpop.permute.xlu0 %1711
    %v1713 = vsel %vm1498, %v1712, 0
    %1715 = vmatprep.subr.mxu0 0.0
    %1716 = vmatpush1.msra.mxu0 %v1289
    %1717 = vmatprep.subr.mxu0 0.0
    %1718 = vmatpush1.msra.mxu0 0.0
    %1719 = vmatprep.subr.mxu0 0.0
    %1720 = vmatpush1.msra.mxu0 0.0
    %1721 = vmatprep.subr.mxu0 0.0
    %1722 = vmatpush1.msra.mxu0 0.0
    %1723 = vmatprep.subr.mxu0 0.0
    %1724 = vmatpush1.msra.mxu0 0.0
    %1725 = vmatprep.subr.mxu0 0.0
    %1726 = vmatpush1.msra.mxu0 0.0
    %1727 = vmatprep.subr.mxu0 0.0
    %1728 = vmatpush1.msra.mxu0 0.0
    %1729 = vmatprep.subr.mxu0 0.0
    %1730 = vmatpush1.msra.mxu0 0.0
    %1731 = vmatprep.subr.mxu0 0.0
    %1732 = vmatpush1.msra.mxu0 0.0
    %1733 = vmatprep.subr.mxu0 0.0
    %1734 = vmatpush1.msra.mxu0 0.0
    %1735 = vmatprep.subr.mxu0 0.0
    %1736 = vmatpush1.msra.mxu0 0.0
    %1737 = vmatprep.subr.mxu0 0.0
    %1738 = vmatpush1.msra.mxu0 0.0
    %1739 = vmatprep.subr.mxu0 0.0
    %1740 = vmatpush1.msra.mxu0 0.0
    %1741 = vmatprep.subr.mxu0 0.0
    %1742 = vmatpush1.msra.mxu0 0.0
    %1743 = vmatprep.subr.mxu0 0.0
    %1744 = vmatpush1.msra.mxu0 0.0
    %1745 = vmatprep.subr.mxu0 0.0
    %1746 = vmatpush1.msra.mxu0 0.0
    %1747 = vmatprep.subr.mxu0 0.0
    %1748 = vmatpush1.msra.mxu0 0.0
    %1749 = vmatprep.subr.mxu0 0.0
    %1750 = vmatpush1.msra.mxu0 0.0
    %1751 = vmatprep.subr.mxu0 0.0
    %1752 = vmatpush1.msra.mxu0 0.0
    %1753 = vmatprep.subr.mxu0 0.0
    %1754 = vmatpush1.msra.mxu0 0.0
    %1755 = vmatprep.subr.mxu0 0.0
    %1756 = vmatpush1.msra.mxu0 0.0
    %1757 = vmatprep.subr.mxu0 0.0
    %1758 = vmatpush1.msra.mxu0 0.0
    %1759 = vmatprep.subr.mxu0 0.0
    %1760 = vmatpush1.msra.mxu0 0.0
    %1761 = vmatprep.subr.mxu0 0.0
    %1762 = vmatpush1.msra.mxu0 0.0
    %1763 = vmatprep.subr.mxu0 0.0
    %1764 = vmatpush1.msra.mxu0 0.0
    %1765 = vmatprep.subr.mxu0 0.0
    %1766 = vmatpush1.msra.mxu0 0.0
    %1767 = vmatprep.subr.mxu0 0.0
    %1768 = vmatpush1.msra.mxu0 0.0
    %1769 = vmatprep.subr.mxu0 0.0
    %1770 = vmatpush1.msra.mxu0 0.0
    %1771 = vmatprep.subr.mxu0 0.0
    %1772 = vmatpush1.msra.mxu0 0.0
    %1773 = vmatprep.subr.mxu0 0.0
    %1774 = vmatpush1.msra.mxu0 0.0
    %1775 = vmatprep.subr.mxu0 0.0
    %1776 = vmatpush1.msra.mxu0 0.0
    %1777 = vmatprep.subr.mxu0 0.0
    %1778 = vmatpush1.msra.mxu0 0.0
    %1779 = vmatprep.mubr.f32.mxu0 0.0
    %1780 = vmatmul.mubr.f32.gmra.mrb[0].mxu0 %v1713
    %v1781 = vpop.f32.mrb[0].mxu0
    %v1782 = vadd.f32 %v1308, %v1781
    %v1783 = vpop.f32.mrb[0].mxu0
    %1784 = vdwg.mxu0
    %v1785 = vadd.f32 %v1571, %v1782
    %1787 = vrot.lane.b32.xlu0 %v1782, 32
    %v1788 = vpop.permute.xlu0 %1787
    %v1790 = vadd.f32 %v1576, %v1788
    %v1793 = vunpack.c.l.s4 1966171168
    %v1794 = vunpack.c.0.s8 %v1793
    %v1795 = vlaneseq
    %v1796 = vshrl.u32 %v1795, 7
    %v1797 = vsub.s32 %v1794, %v1796
    %v1798 = vrot.slane %v1790, %v1797
    %v1799 = vcombine.high %v1798, %v1798
    %v1801 = vunpack.c.l.s4 1966171168
    %v1802 = vunpack.c.0.s8 %v1801
    %v1803 = vlaneseq
    %v1804 = vshrl.u32 %v1803, 7
    %v1805 = vsub.s32 %v1802, %v1804
    %v1806 = vrot.slane %v1798, %v1805
    %v1808 = vunpack.c.l.s4 1966171168
    %v1809 = vunpack.c.0.s8 %v1808
    %v1810 = vlaneseq
    %v1811 = vshrl.u32 %v1810, 7
    %v1812 = vsub.s32 %v1809, %v1811
    %v1813 = vrot.slane %v1799, %v1812
    %1816 = vst.msk [vmem:[%s15 + $0x1] sm:$0x1] %vm1602, %v1806
    %1817 = vst.msk [vmem:[%s15 + $0x9] sm:$0x1] %vm1602, %v1813
    %v1818 = vsel %vm516, %v485, %v1785
    %v1819 = vadd.f32 %v1818, %v1705
    %v1820 = vxor.u32 %v1819, 2147483648
    %v1821 = vmul.f32 %v1820, 1.442695
    %v1822 = vpow.pop %v1821
    %v1823 = vadd.f32 %v1822, 1.0
    %v1824 = vrcp.pop %v1823
    %v1825 = vmul.f32 1.0, %v1824
    %v1826 = vadd.f32 %v1705, %v1295
    %1828 = vrot.lane.b32.xlu0 %v1826, 32
    %v1829 = vpop.permute.xlu0 %1828
    %v1831 = vmul.f32 %v1825, %v1829
    %1833 = vrot.lane.b32.xlu0 %v1831, 96
    %v1834 = vpop.permute.xlu0 %1833
    %v1836 = vadd.f32 %v1818, %v1834
    %v1837 = vtanh.pop %v1836
    %v1838 = vsub.f32 1.0, %v1825
    %1840 = vrot.lane.b32.xlu0 %v1837, 64
    %v1841 = vpop.permute.xlu0 %1840
    %v1843 = vmul.f32 %v1838, %v1841
    %v1844 = vmul.f32 %v1825, %v1632
    %v1845 = vadd.f32 %v1843, %v1844
    %1847 = vrot.lane.b32.xlu0 %v1845, 64
    %v1848 = vpop.permute.xlu0 %1847
    %v1849 = vsel %vm573, %v1848, 0
    %1851 = vmatprep.subr.mxu0 0.0
    %1852 = vmatpush1.msra.mxu0 %v1285
    %1853 = vmatprep.subr.mxu0 0.0
    %1854 = vmatpush1.msra.mxu0 %v1286
    %1855 = vmatprep.subr.mxu0 0.0
    %1856 = vmatpush1.msra.mxu0 %v1287
    %1857 = vmatprep.subr.mxu0 0.0
    %1858 = vmatpush1.msra.mxu0 %v1288
    %1859 = vmatprep.subr.mxu0 0.0
    %1860 = vmatpush1.msra.mxu0 0.0
    %1861 = vmatprep.subr.mxu0 0.0
    %1862 = vmatpush1.msra.mxu0 0.0
    %1863 = vmatprep.subr.mxu0 0.0
    %1864 = vmatpush1.msra.mxu0 0.0
    %1865 = vmatprep.subr.mxu0 0.0
    %1866 = vmatpush1.msra.mxu0 0.0
    %1867 = vmatprep.subr.mxu0 0.0
    %1868 = vmatpush1.msra.mxu0 0.0
    %1869 = vmatprep.subr.mxu0 0.0
    %1870 = vmatpush1.msra.mxu0 0.0
    %1871 = vmatprep.subr.mxu0 0.0
    %1872 = vmatpush1.msra.mxu0 0.0
    %1873 = vmatprep.subr.mxu0 0.0
    %1874 = vmatpush1.msra.mxu0 0.0
    %1875 = vmatprep.subr.mxu0 0.0
    %1876 = vmatpush1.msra.mxu0 0.0
    %1877 = vmatprep.subr.mxu0 0.0
    %1878 = vmatpush1.msra.mxu0 0.0
    %1879 = vmatprep.subr.mxu0 0.0
    %1880 = vmatpush1.msra.mxu0 0.0
    %1881 = vmatprep.subr.mxu0 0.0
    %1882 = vmatpush1.msra.mxu0 0.0
    %1883 = vmatprep.subr.mxu0 0.0
    %1884 = vmatpush1.msra.mxu0 0.0
    %1885 = vmatprep.subr.mxu0 0.0
    %1886 = vmatpush1.msra.mxu0 0.0
    %1887 = vmatprep.subr.mxu0 0.0
    %1888 = vmatpush1.msra.mxu0 0.0
    %1889 = vmatprep.subr.mxu0 0.0
    %1890 = vmatpush1.msra.mxu0 0.0
    %1891 = vmatprep.subr.mxu0 0.0
    %1892 = vmatpush1.msra.mxu0 0.0
    %1893 = vmatprep.subr.mxu0 0.0
    %1894 = vmatpush1.msra.mxu0 0.0
    %1895 = vmatprep.subr.mxu0 0.0
    %1896 = vmatpush1.msra.mxu0 0.0
    %1897 = vmatprep.subr.mxu0 0.0
    %1898 = vmatpush1.msra.mxu0 0.0
    %1899 = vmatprep.subr.mxu0 0.0
    %1900 = vmatpush1.msra.mxu0 0.0
    %1901 = vmatprep.subr.mxu0 0.0
    %1902 = vmatpush1.msra.mxu0 0.0
    %1903 = vmatprep.subr.mxu0 0.0
    %1904 = vmatpush1.msra.mxu0 0.0
    %1905 = vmatprep.subr.mxu0 0.0
    %1906 = vmatpush1.msra.mxu0 0.0
    %1907 = vmatprep.subr.mxu0 0.0
    %1908 = vmatpush1.msra.mxu0 0.0
    %1909 = vmatprep.subr.mxu0 0.0
    %1910 = vmatpush1.msra.mxu0 0.0
    %1911 = vmatprep.subr.mxu0 0.0
    %1912 = vmatpush1.msra.mxu0 0.0
    %1913 = vmatprep.subr.mxu0 0.0
    %1914 = vmatpush1.msra.mxu0 0.0
    %1915 = vmatprep.mubr.f32.mxu0 0.0
    %1916 = vmatmul.mubr.f32.gmra.mrb[0].mxu0 %v1849
    %v1917 = vpop.f32.mrb[0].mxu0
    %v1918 = vadd.f32 0.0, %v1917
    %v1919 = vpop.f32.mrb[0].mxu0
    %1920 = vdwg.mxu0
    %v1921 = vadd.f32 %v1918, %v1491
    %v1922 = vmax.f32 %v1921, 0.0
    %1924 = vrot.lane.b32.xlu0 %v1922, 32
    %v1925 = vpop.permute.xlu0 %1924
    %v1926 = vsel %vm1498, %v1925, 0
    %1928 = vmatprep.subr.mxu0 0.0
    %1929 = vmatpush1.msra.mxu0 %v1289
    %1930 = vmatprep.subr.mxu0 0.0
    %1931 = vmatpush1.msra.mxu0 0.0
    %1932 = vmatprep.subr.mxu0 0.0
    %1933 = vmatpush1.msra.mxu0 0.0
    %1934 = vmatprep.subr.mxu0 0.0
    %1935 = vmatpush1.msra.mxu0 0.0
    %1936 = vmatprep.subr.mxu0 0.0
    %1937 = vmatpush1.msra.mxu0 0.0
    %1938 = vmatprep.subr.mxu0 0.0
    %1939 = vmatpush1.msra.mxu0 0.0
    %1940 = vmatprep.subr.mxu0 0.0
    %1941 = vmatpush1.msra.mxu0 0.0
    %1942 = vmatprep.subr.mxu0 0.0
    %1943 = vmatpush1.msra.mxu0 0.0
    %1944 = vmatprep.subr.mxu0 0.0
    %1945 = vmatpush1.msra.mxu0 0.0
    %1946 = vmatprep.subr.mxu0 0.0
    %1947 = vmatpush1.msra.mxu0 0.0
    %1948 = vmatprep.subr.mxu0 0.0
    %1949 = vmatpush1.msra.mxu0 0.0
    %1950 = vmatprep.subr.mxu0 0.0
    %1951 = vmatpush1.msra.mxu0 0.0
    %1952 = vmatprep.subr.mxu0 0.0
    %1953 = vmatpush1.msra.mxu0 0.0
    %1954 = vmatprep.subr.mxu0 0.0
    %1955 = vmatpush1.msra.mxu0 0.0
    %1956 = vmatprep.subr.mxu0 0.0
    %1957 = vmatpush1.msra.mxu0 0.0
    %1958 = vmatprep.subr.mxu0 0.0
    %1959 = vmatpush1.msra.mxu0 0.0
    %1960 = vmatprep.subr.mxu0 0.0
    %1961 = vmatpush1.msra.mxu0 0.0
    %1962 = vmatprep.subr.mxu0 0.0
    %1963 = vmatpush1.msra.mxu0 0.0
    %1964 = vmatprep.subr.mxu0 0.0
    %1965 = vmatpush1.msra.mxu0 0.0
    %1966 = vmatprep.subr.mxu0 0.0
    %1967 = vmatpush1.msra.mxu0 0.0
    %1968 = vmatprep.subr.mxu0 0.0
    %1969 = vmatpush1.msra.mxu0 0.0
    %1970 = vmatprep.subr.mxu0 0.0
    %1971 = vmatpush1.msra.mxu0 0.0
    %1972 = vmatprep.subr.mxu0 0.0
    %1973 = vmatpush1.msra.mxu0 0.0
    %1974 = vmatprep.subr.mxu0 0.0
    %1975 = vmatpush1.msra.mxu0 0.0
    %1976 = vmatprep.subr.mxu0 0.0
    %1977 = vmatpush1.msra.mxu0 0.0
    %1978 = vmatprep.subr.mxu0 0.0
    %1979 = vmatpush1.msra.mxu0 0.0
    %1980 = vmatprep.subr.mxu0 0.0
    %1981 = vmatpush1.msra.mxu0 0.0
    %1982 = vmatprep.subr.mxu0 0.0
    %1983 = vmatpush1.msra.mxu0 0.0
    %1984 = vmatprep.subr.mxu0 0.0
    %1985 = vmatpush1.msra.mxu0 0.0
    %1986 = vmatprep.subr.mxu0 0.0
    %1987 = vmatpush1.msra.mxu0 0.0
    %1988 = vmatprep.subr.mxu0 0.0
    %1989 = vmatpush1.msra.mxu0 0.0
    %1990 = vmatprep.subr.mxu0 0.0
    %1991 = vmatpush1.msra.mxu0 0.0
    %1992 = vmatprep.mubr.f32.mxu0 0.0
    %1993 = vmatmul.mubr.f32.gmra.mrb[0].mxu0 %v1926
    %v1994 = vpop.f32.mrb[0].mxu0
    %v1995 = vadd.f32 %v1308, %v1994
    %v1996 = vpop.f32.mrb[0].mxu0
    %1997 = vdwg.mxu0
    %v1998 = vadd.f32 %v1785, %v1995
    %2000 = vrot.lane.b32.xlu0 %v1995, 32
    %v2001 = vpop.permute.xlu0 %2000
    %v2003 = vadd.f32 %v1790, %v2001
    %v2006 = vunpack.c.l.s4 1966171168
    %v2007 = vunpack.c.0.s8 %v2006
    %v2008 = vlaneseq
    %v2009 = vshrl.u32 %v2008, 7
    %v2010 = vsub.s32 %v2007, %v2009
    %v2011 = vrot.slane %v2003, %v2010
    %v2012 = vcombine.high %v2011, %v2011
    %v2014 = vunpack.c.l.s4 1966171168
    %v2015 = vunpack.c.0.s8 %v2014
    %v2016 = vlaneseq
    %v2017 = vshrl.u32 %v2016, 7
    %v2018 = vsub.s32 %v2015, %v2017
    %v2019 = vrot.slane %v2011, %v2018
    %v2021 = vunpack.c.l.s4 1966171168
    %v2022 = vunpack.c.0.s8 %v2021
    %v2023 = vlaneseq
    %v2024 = vshrl.u32 %v2023, 7
    %v2025 = vsub.s32 %v2022, %v2024
    %v2026 = vrot.slane %v2012, %v2025
    %2029 = vst.msk [vmem:[%s15 + $0x2] sm:$0x1] %vm1602, %v2019
    %2030 = vst.msk [vmem:[%s15 + $0xa] sm:$0x1] %vm1602, %v2026
    %v2031 = vsel %vm519, %v490, %v1998
    %v2032 = vadd.f32 %v2031, %v1918
    %v2033 = vxor.u32 %v2032, 2147483648
    %v2034 = vmul.f32 %v2033, 1.442695
    %v2035 = vpow.pop %v2034
    %v2036 = vadd.f32 %v2035, 1.0
    %v2037 = vrcp.pop %v2036
    %v2038 = vmul.f32 1.0, %v2037
    %v2039 = vadd.f32 %v1918, %v1295
    %2041 = vrot.lane.b32.xlu0 %v2039, 32
    %v2042 = vpop.permute.xlu0 %2041
    %v2044 = vmul.f32 %v2038, %v2042
    %2046 = vrot.lane.b32.xlu0 %v2044, 96
    %v2047 = vpop.permute.xlu0 %2046
    %v2049 = vadd.f32 %v2031, %v2047
    %v2050 = vtanh.pop %v2049
    %v2051 = vsub.f32 1.0, %v2038
    %2053 = vrot.lane.b32.xlu0 %v2050, 64
    %v2054 = vpop.permute.xlu0 %2053
    %v2056 = vmul.f32 %v2051, %v2054
    %v2057 = vmul.f32 %v2038, %v1845
    %v2058 = vadd.f32 %v2056, %v2057
    %2060 = vrot.lane.b32.xlu0 %v2058, 64
    %v2061 = vpop.permute.xlu0 %2060
    %v2062 = vsel %vm573, %v2061, 0
    %2064 = vmatprep.subr.mxu0 0.0
    %2065 = vmatpush1.msra.mxu0 %v1285
    %2066 = vmatprep.subr.mxu0 0.0
    %2067 = vmatpush1.msra.mxu0 %v1286
    %2068 = vmatprep.subr.mxu0 0.0
    %2069 = vmatpush1.msra.mxu0 %v1287
    %2070 = vmatprep.subr.mxu0 0.0
    %2071 = vmatpush1.msra.mxu0 %v1288
    %2072 = vmatprep.subr.mxu0 0.0
    %2073 = vmatpush1.msra.mxu0 0.0
    %2074 = vmatprep.subr.mxu0 0.0
    %2075 = vmatpush1.msra.mxu0 0.0
    %2076 = vmatprep.subr.mxu0 0.0
    %2077 = vmatpush1.msra.mxu0 0.0
    %2078 = vmatprep.subr.mxu0 0.0
    %2079 = vmatpush1.msra.mxu0 0.0
    %2080 = vmatprep.subr.mxu0 0.0
    %2081 = vmatpush1.msra.mxu0 0.0
    %2082 = vmatprep.subr.mxu0 0.0
    %2083 = vmatpush1.msra.mxu0 0.0
    %2084 = vmatprep.subr.mxu0 0.0
    %2085 = vmatpush1.msra.mxu0 0.0
    %2086 = vmatprep.subr.mxu0 0.0
    %2087 = vmatpush1.msra.mxu0 0.0
    %2088 = vmatprep.subr.mxu0 0.0
    %2089 = vmatpush1.msra.mxu0 0.0
    %2090 = vmatprep.subr.mxu0 0.0
    %2091 = vmatpush1.msra.mxu0 0.0
    %2092 = vmatprep.subr.mxu0 0.0
    %2093 = vmatpush1.msra.mxu0 0.0
    %2094 = vmatprep.subr.mxu0 0.0
    %2095 = vmatpush1.msra.mxu0 0.0
    %2096 = vmatprep.subr.mxu0 0.0
    %2097 = vmatpush1.msra.mxu0 0.0
    %2098 = vmatprep.subr.mxu0 0.0
    %2099 = vmatpush1.msra.mxu0 0.0
    %2100 = vmatprep.subr.mxu0 0.0
    %2101 = vmatpush1.msra.mxu0 0.0
    %2102 = vmatprep.subr.mxu0 0.0
    %2103 = vmatpush1.msra.mxu0 0.0
    %2104 = vmatprep.subr.mxu0 0.0
    %2105 = vmatpush1.msra.mxu0 0.0
    %2106 = vmatprep.subr.mxu0 0.0
    %2107 = vmatpush1.msra.mxu0 0.0
    %2108 = vmatprep.subr.mxu0 0.0
    %2109 = vmatpush1.msra.mxu0 0.0
    %2110 = vmatprep.subr.mxu0 0.0
    %2111 = vmatpush1.msra.mxu0 0.0
    %2112 = vmatprep.subr.mxu0 0.0
    %2113 = vmatpush1.msra.mxu0 0.0
    %2114 = vmatprep.subr.mxu0 0.0
    %2115 = vmatpush1.msra.mxu0 0.0
    %2116 = vmatprep.subr.mxu0 0.0
    %2117 = vmatpush1.msra.mxu0 0.0
    %2118 = vmatprep.subr.mxu0 0.0
    %2119 = vmatpush1.msra.mxu0 0.0
    %2120 = vmatprep.subr.mxu0 0.0
    %2121 = vmatpush1.msra.mxu0 0.0
    %2122 = vmatprep.subr.mxu0 0.0
    %2123 = vmatpush1.msra.mxu0 0.0
    %2124 = vmatprep.subr.mxu0 0.0
    %2125 = vmatpush1.msra.mxu0 0.0
    %2126 = vmatprep.subr.mxu0 0.0
    %2127 = vmatpush1.msra.mxu0 0.0
    %2128 = vmatprep.mubr.f32.mxu0 0.0
    %2129 = vmatmul.mubr.f32.gmra.mrb[0].mxu0 %v2062
    %v2130 = vpop.f32.mrb[0].mxu0
    %v2131 = vadd.f32 0.0, %v2130
    %v2132 = vpop.f32.mrb[0].mxu0
    %2133 = vdwg.mxu0
    %v2134 = vadd.f32 %v2131, %v1491
    %v2135 = vmax.f32 %v2134, 0.0
    %2137 = vrot.lane.b32.xlu0 %v2135, 32
    %v2138 = vpop.permute.xlu0 %2137
    %v2139 = vsel %vm1498, %v2138, 0
    %2141 = vmatprep.subr.mxu0 0.0
    %2142 = vmatpush1.msra.mxu0 %v1289
    %2143 = vmatprep.subr.mxu0 0.0
    %2144 = vmatpush1.msra.mxu0 0.0
    %2145 = vmatprep.subr.mxu0 0.0
    %2146 = vmatpush1.msra.mxu0 0.0
    %2147 = vmatprep.subr.mxu0 0.0
    %2148 = vmatpush1.msra.mxu0 0.0
    %2149 = vmatprep.subr.mxu0 0.0
    %2150 = vmatpush1.msra.mxu0 0.0
    %2151 = vmatprep.subr.mxu0 0.0
    %2152 = vmatpush1.msra.mxu0 0.0
    %2153 = vmatprep.subr.mxu0 0.0
    %2154 = vmatpush1.msra.mxu0 0.0
    %2155 = vmatprep.subr.mxu0 0.0
    %2156 = vmatpush1.msra.mxu0 0.0
    %2157 = vmatprep.subr.mxu0 0.0
    %2158 = vmatpush1.msra.mxu0 0.0
    %2159 = vmatprep.subr.mxu0 0.0
    %2160 = vmatpush1.msra.mxu0 0.0
    %2161 = vmatprep.subr.mxu0 0.0
    %2162 = vmatpush1.msra.mxu0 0.0
    %2163 = vmatprep.subr.mxu0 0.0
    %2164 = vmatpush1.msra.mxu0 0.0
    %2165 = vmatprep.subr.mxu0 0.0
    %2166 = vmatpush1.msra.mxu0 0.0
    %2167 = vmatprep.subr.mxu0 0.0
    %2168 = vmatpush1.msra.mxu0 0.0
    %2169 = vmatprep.subr.mxu0 0.0
    %2170 = vmatpush1.msra.mxu0 0.0
    %2171 = vmatprep.subr.mxu0 0.0
    %2172 = vmatpush1.msra.mxu0 0.0
    %2173 = vmatprep.subr.mxu0 0.0
    %2174 = vmatpush1.msra.mxu0 0.0
    %2175 = vmatprep.subr.mxu0 0.0
    %2176 = vmatpush1.msra.mxu0 0.0
    %2177 = vmatprep.subr.mxu0 0.0
    %2178 = vmatpush1.msra.mxu0 0.0
    %2179 = vmatprep.subr.mxu0 0.0
    %2180 = vmatpush1.msra.mxu0 0.0
    %2181 = vmatprep.subr.mxu0 0.0
    %2182 = vmatpush1.msra.mxu0 0.0
    %2183 = vmatprep.subr.mxu0 0.0
    %2184 = vmatpush1.msra.mxu0 0.0
    %2185 = vmatprep.subr.mxu0 0.0
    %2186 = vmatpush1.msra.mxu0 0.0
    %2187 = vmatprep.subr.mxu0 0.0
    %2188 = vmatpush1.msra.mxu0 0.0
    %2189 = vmatprep.subr.mxu0 0.0
    %2190 = vmatpush1.msra.mxu0 0.0
    %2191 = vmatprep.subr.mxu0 0.0
    %2192 = vmatpush1.msra.mxu0 0.0
    %2193 = vmatprep.subr.mxu0 0.0
    %2194 = vmatpush1.msra.mxu0 0.0
    %2195 = vmatprep.subr.mxu0 0.0
    %2196 = vmatpush1.msra.mxu0 0.0
    %2197 = vmatprep.subr.mxu0 0.0
    %2198 = vmatpush1.msra.mxu0 0.0
    %2199 = vmatprep.subr.mxu0 0.0
    %2200 = vmatpush1.msra.mxu0 0.0
    %2201 = vmatprep.subr.mxu0 0.0
    %2202 = vmatpush1.msra.mxu0 0.0
    %2203 = vmatprep.subr.mxu0 0.0
    %2204 = vmatpush1.msra.mxu0 0.0
    %2205 = vmatprep.mubr.f32.mxu0 0.0
    %2206 = vmatmul.mubr.f32.gmra.mrb[0].mxu0 %v2139
    %v2207 = vpop.f32.mrb[0].mxu0
    %v2208 = vadd.f32 %v1308, %v2207
    %v2209 = vpop.f32.mrb[0].mxu0
    %2210 = vdwg.mxu0
    %v2211 = vadd.f32 %v1998, %v2208
    %2213 = vrot.lane.b32.xlu0 %v2208, 32
    %v2214 = vpop.permute.xlu0 %2213
    %v2216 = vadd.f32 %v2003, %v2214
    %v2219 = vunpack.c.l.s4 1966171168
    %v2220 = vunpack.c.0.s8 %v2219
    %v2221 = vlaneseq
    %v2222 = vshrl.u32 %v2221, 7
    %v2223 = vsub.s32 %v2220, %v2222
    %v2224 = vrot.slane %v2216, %v2223
    %v2225 = vcombine.high %v2224, %v2224
    %v2227 = vunpack.c.l.s4 1966171168
    %v2228 = vunpack.c.0.s8 %v2227
    %v2229 = vlaneseq
    %v2230 = vshrl.u32 %v2229, 7
    %v2231 = vsub.s32 %v2228, %v2230
    %v2232 = vrot.slane %v2224, %v2231
    %v2234 = vunpack.c.l.s4 1966171168
    %v2235 = vunpack.c.0.s8 %v2234
    %v2236 = vlaneseq
    %v2237 = vshrl.u32 %v2236, 7
    %v2238 = vsub.s32 %v2235, %v2237
    %v2239 = vrot.slane %v2225, %v2238
    %2242 = vst.msk [vmem:[%s15 + $0x3] sm:$0x1] %vm1602, %v2232
    %2243 = vst.msk [vmem:[%s15 + $0xb] sm:$0x1] %vm1602, %v2239
    %v2244 = vsel %vm522, %v495, %v2211
    %v2245 = vadd.f32 %v2244, %v2131
    %v2246 = vxor.u32 %v2245, 2147483648
    %v2247 = vmul.f32 %v2246, 1.442695
    %v2248 = vpow.pop %v2247
    %v2249 = vadd.f32 %v2248, 1.0
    %v2250 = vrcp.pop %v2249
    %v2251 = vmul.f32 1.0, %v2250
    %v2252 = vadd.f32 %v2131, %v1295
    %2254 = vrot.lane.b32.xlu0 %v2252, 32
    %v2255 = vpop.permute.xlu0 %2254
    %v2257 = vmul.f32 %v2251, %v2255
    %2259 = vrot.lane.b32.xlu0 %v2257, 96
    %v2260 = vpop.permute.xlu0 %2259
    %v2262 = vadd.f32 %v2244, %v2260
    %v2263 = vtanh.pop %v2262
    %v2264 = vsub.f32 1.0, %v2251
    %2266 = vrot.lane.b32.xlu0 %v2263, 64
    %v2267 = vpop.permute.xlu0 %2266
    %v2269 = vmul.f32 %v2264, %v2267
    %v2270 = vmul.f32 %v2251, %v2058
    %v2271 = vadd.f32 %v2269, %v2270
    %2273 = vrot.lane.b32.xlu0 %v2271, 64
    %v2274 = vpop.permute.xlu0 %2273
    %v2275 = vsel %vm573, %v2274, 0
    %2277 = vmatprep.subr.mxu0 0.0
    %2278 = vmatpush1.msra.mxu0 %v1285
    %2279 = vmatprep.subr.mxu0 0.0
    %2280 = vmatpush1.msra.mxu0 %v1286
    %2281 = vmatprep.subr.mxu0 0.0
    %2282 = vmatpush1.msra.mxu0 %v1287
    %2283 = vmatprep.subr.mxu0 0.0
    %2284 = vmatpush1.msra.mxu0 %v1288
    %2285 = vmatprep.subr.mxu0 0.0
    %2286 = vmatpush1.msra.mxu0 0.0
    %2287 = vmatprep.subr.mxu0 0.0
    %2288 = vmatpush1.msra.mxu0 0.0
    %2289 = vmatprep.subr.mxu0 0.0
    %2290 = vmatpush1.msra.mxu0 0.0
    %2291 = vmatprep.subr.mxu0 0.0
    %2292 = vmatpush1.msra.mxu0 0.0
    %2293 = vmatprep.subr.mxu0 0.0
    %2294 = vmatpush1.msra.mxu0 0.0
    %2295 = vmatprep.subr.mxu0 0.0
    %2296 = vmatpush1.msra.mxu0 0.0
    %2297 = vmatprep.subr.mxu0 0.0
    %2298 = vmatpush1.msra.mxu0 0.0
    %2299 = vmatprep.subr.mxu0 0.0
    %2300 = vmatpush1.msra.mxu0 0.0
    %2301 = vmatprep.subr.mxu0 0.0
    %2302 = vmatpush1.msra.mxu0 0.0
    %2303 = vmatprep.subr.mxu0 0.0
    %2304 = vmatpush1.msra.mxu0 0.0
    %2305 = vmatprep.subr.mxu0 0.0
    %2306 = vmatpush1.msra.mxu0 0.0
    %2307 = vmatprep.subr.mxu0 0.0
    %2308 = vmatpush1.msra.mxu0 0.0
    %2309 = vmatprep.subr.mxu0 0.0
    %2310 = vmatpush1.msra.mxu0 0.0
    %2311 = vmatprep.subr.mxu0 0.0
    %2312 = vmatpush1.msra.mxu0 0.0
    %2313 = vmatprep.subr.mxu0 0.0
    %2314 = vmatpush1.msra.mxu0 0.0
    %2315 = vmatprep.subr.mxu0 0.0
    %2316 = vmatpush1.msra.mxu0 0.0
    %2317 = vmatprep.subr.mxu0 0.0
    %2318 = vmatpush1.msra.mxu0 0.0
    %2319 = vmatprep.subr.mxu0 0.0
    %2320 = vmatpush1.msra.mxu0 0.0
    %2321 = vmatprep.subr.mxu0 0.0
    %2322 = vmatpush1.msra.mxu0 0.0
    %2323 = vmatprep.subr.mxu0 0.0
    %2324 = vmatpush1.msra.mxu0 0.0
    %2325 = vmatprep.subr.mxu0 0.0
    %2326 = vmatpush1.msra.mxu0 0.0
    %2327 = vmatprep.subr.mxu0 0.0
    %2328 = vmatpush1.msra.mxu0 0.0
    %2329 = vmatprep.subr.mxu0 0.0
    %2330 = vmatpush1.msra.mxu0 0.0
    %2331 = vmatprep.subr.mxu0 0.0
    %2332 = vmatpush1.msra.mxu0 0.0
    %2333 = vmatprep.subr.mxu0 0.0
    %2334 = vmatpush1.msra.mxu0 0.0
    %2335 = vmatprep.subr.mxu0 0.0
    %2336 = vmatpush1.msra.mxu0 0.0
    %2337 = vmatprep.subr.mxu0 0.0
    %2338 = vmatpush1.msra.mxu0 0.0
    %2339 = vmatprep.subr.mxu0 0.0
    %2340 = vmatpush1.msra.mxu0 0.0
    %2341 = vmatprep.mubr.f32.mxu0 0.0
    %2342 = vmatmul.mubr.f32.gmra.mrb[0].mxu0 %v2275
    %v2343 = vpop.f32.mrb[0].mxu0
    %v2344 = vadd.f32 0.0, %v2343
    %v2345 = vpop.f32.mrb[0].mxu0
    %2346 = vdwg.mxu0
    %v2347 = vadd.f32 %v2344, %v1491
    %v2348 = vmax.f32 %v2347, 0.0
    %2350 = vrot.lane.b32.xlu0 %v2348, 32
    %v2351 = vpop.permute.xlu0 %2350
    %v2352 = vsel %vm1498, %v2351, 0
    %2354 = vmatprep.subr.mxu0 0.0
    %2355 = vmatpush1.msra.mxu0 %v1289
    %2356 = vmatprep.subr.mxu0 0.0
    %2357 = vmatpush1.msra.mxu0 0.0
    %2358 = vmatprep.subr.mxu0 0.0
    %2359 = vmatpush1.msra.mxu0 0.0
    %2360 = vmatprep.subr.mxu0 0.0
    %2361 = vmatpush1.msra.mxu0 0.0
    %2362 = vmatprep.subr.mxu0 0.0
    %2363 = vmatpush1.msra.mxu0 0.0
    %2364 = vmatprep.subr.mxu0 0.0
    %2365 = vmatpush1.msra.mxu0 0.0
    %2366 = vmatprep.subr.mxu0 0.0
    %2367 = vmatpush1.msra.mxu0 0.0
    %2368 = vmatprep.subr.mxu0 0.0
    %2369 = vmatpush1.msra.mxu0 0.0
    %2370 = vmatprep.subr.mxu0 0.0
    %2371 = vmatpush1.msra.mxu0 0.0
    %2372 = vmatprep.subr.mxu0 0.0
    %2373 = vmatpush1.msra.mxu0 0.0
    %2374 = vmatprep.subr.mxu0 0.0
    %2375 = vmatpush1.msra.mxu0 0.0
    %2376 = vmatprep.subr.mxu0 0.0
    %2377 = vmatpush1.msra.mxu0 0.0
    %2378 = vmatprep.subr.mxu0 0.0
    %2379 = vmatpush1.msra.mxu0 0.0
    %2380 = vmatprep.subr.mxu0 0.0
    %2381 = vmatpush1.msra.mxu0 0.0
    %2382 = vmatprep.subr.mxu0 0.0
    %2383 = vmatpush1.msra.mxu0 0.0
    %2384 = vmatprep.subr.mxu0 0.0
    %2385 = vmatpush1.msra.mxu0 0.0
    %2386 = vmatprep.subr.mxu0 0.0
    %2387 = vmatpush1.msra.mxu0 0.0
    %2388 = vmatprep.subr.mxu0 0.0
    %2389 = vmatpush1.msra.mxu0 0.0
    %2390 = vmatprep.subr.mxu0 0.0
    %2391 = vmatpush1.msra.mxu0 0.0
    %2392 = vmatprep.subr.mxu0 0.0
    %2393 = vmatpush1.msra.mxu0 0.0
    %2394 = vmatprep.subr.mxu0 0.0
    %2395 = vmatpush1.msra.mxu0 0.0
    %2396 = vmatprep.subr.mxu0 0.0
    %2397 = vmatpush1.msra.mxu0 0.0
    %2398 = vmatprep.subr.mxu0 0.0
    %2399 = vmatpush1.msra.mxu0 0.0
    %2400 = vmatprep.subr.mxu0 0.0
    %2401 = vmatpush1.msra.mxu0 0.0
    %2402 = vmatprep.subr.mxu0 0.0
    %2403 = vmatpush1.msra.mxu0 0.0
    %2404 = vmatprep.subr.mxu0 0.0
    %2405 = vmatpush1.msra.mxu0 0.0
    %2406 = vmatprep.subr.mxu0 0.0
    %2407 = vmatpush1.msra.mxu0 0.0
    %2408 = vmatprep.subr.mxu0 0.0
    %2409 = vmatpush1.msra.mxu0 0.0
    %2410 = vmatprep.subr.mxu0 0.0
    %2411 = vmatpush1.msra.mxu0 0.0
    %2412 = vmatprep.subr.mxu0 0.0
    %2413 = vmatpush1.msra.mxu0 0.0
    %2414 = vmatprep.subr.mxu0 0.0
    %2415 = vmatpush1.msra.mxu0 0.0
    %2416 = vmatprep.subr.mxu0 0.0
    %2417 = vmatpush1.msra.mxu0 0.0
    %2418 = vmatprep.mubr.f32.mxu0 0.0
    %2419 = vmatmul.mubr.f32.gmra.mrb[0].mxu0 %v2352
    %v2420 = vpop.f32.mrb[0].mxu0
    %v2421 = vadd.f32 %v1308, %v2420
    %v2422 = vpop.f32.mrb[0].mxu0
    %2423 = vdwg.mxu0
    %v2424 = vadd.f32 %v2211, %v2421
    %2426 = vrot.lane.b32.xlu0 %v2421, 32
    %v2427 = vpop.permute.xlu0 %2426
    %v2429 = vadd.f32 %v2216, %v2427
    %v2432 = vunpack.c.l.s4 1966171168
    %v2433 = vunpack.c.0.s8 %v2432
    %v2434 = vlaneseq
    %v2435 = vshrl.u32 %v2434, 7
    %v2436 = vsub.s32 %v2433, %v2435
    %v2437 = vrot.slane %v2429, %v2436
    %v2438 = vcombine.high %v2437, %v2437
    %v2440 = vunpack.c.l.s4 1966171168
    %v2441 = vunpack.c.0.s8 %v2440
    %v2442 = vlaneseq
    %v2443 = vshrl.u32 %v2442, 7
    %v2444 = vsub.s32 %v2441, %v2443
    %v2445 = vrot.slane %v2437, %v2444
    %v2447 = vunpack.c.l.s4 1966171168
    %v2448 = vunpack.c.0.s8 %v2447
    %v2449 = vlaneseq
    %v2450 = vshrl.u32 %v2449, 7
    %v2451 = vsub.s32 %v2448, %v2450
    %v2452 = vrot.slane %v2438, %v2451
    %2455 = vst.msk [vmem:[%s15 + $0x4] sm:$0x1] %vm1602, %v2445
    %2456 = vst.msk [vmem:[%s15 + $0xc] sm:$0x1] %vm1602, %v2452
    %v2457 = vsel %vm525, %v500, %v2424
    %v2458 = vadd.f32 %v2457, %v2344
    %v2459 = vxor.u32 %v2458, 2147483648
    %v2460 = vmul.f32 %v2459, 1.442695
    %v2461 = vpow.pop %v2460
    %v2462 = vadd.f32 %v2461, 1.0
    %v2463 = vrcp.pop %v2462
    %v2464 = vmul.f32 1.0, %v2463
    %v2465 = vadd.f32 %v2344, %v1295
    %2467 = vrot.lane.b32.xlu0 %v2465, 32
    %v2468 = vpop.permute.xlu0 %2467
    %v2470 = vmul.f32 %v2464, %v2468
    %2472 = vrot.lane.b32.xlu0 %v2470, 96
    %v2473 = vpop.permute.xlu0 %2472
    %v2475 = vadd.f32 %v2457, %v2473
    %v2476 = vtanh.pop %v2475
    %v2477 = vsub.f32 1.0, %v2464
    %2479 = vrot.lane.b32.xlu0 %v2476, 64
    %v2480 = vpop.permute.xlu0 %2479
    %v2482 = vmul.f32 %v2477, %v2480
    %v2483 = vmul.f32 %v2464, %v2271
    %v2484 = vadd.f32 %v2482, %v2483
    %2486 = vrot.lane.b32.xlu0 %v2484, 64
    %v2487 = vpop.permute.xlu0 %2486
    %v2488 = vsel %vm573, %v2487, 0
    %2490 = vmatprep.subr.mxu0 0.0
    %2491 = vmatpush1.msra.mxu0 %v1285
    %2492 = vmatprep.subr.mxu0 0.0
    %2493 = vmatpush1.msra.mxu0 %v1286
    %2494 = vmatprep.subr.mxu0 0.0
    %2495 = vmatpush1.msra.mxu0 %v1287
    %2496 = vmatprep.subr.mxu0 0.0
    %2497 = vmatpush1.msra.mxu0 %v1288
    %2498 = vmatprep.subr.mxu0 0.0
    %2499 = vmatpush1.msra.mxu0 0.0
    %2500 = vmatprep.subr.mxu0 0.0
    %2501 = vmatpush1.msra.mxu0 0.0
    %2502 = vmatprep.subr.mxu0 0.0
    %2503 = vmatpush1.msra.mxu0 0.0
    %2504 = vmatprep.subr.mxu0 0.0
    %2505 = vmatpush1.msra.mxu0 0.0
    %2506 = vmatprep.subr.mxu0 0.0
    %2507 = vmatpush1.msra.mxu0 0.0
    %2508 = vmatprep.subr.mxu0 0.0
    %2509 = vmatpush1.msra.mxu0 0.0
    %2510 = vmatprep.subr.mxu0 0.0
    %2511 = vmatpush1.msra.mxu0 0.0
    %2512 = vmatprep.subr.mxu0 0.0
    %2513 = vmatpush1.msra.mxu0 0.0
    %2514 = vmatprep.subr.mxu0 0.0
    %2515 = vmatpush1.msra.mxu0 0.0
    %2516 = vmatprep.subr.mxu0 0.0
    %2517 = vmatpush1.msra.mxu0 0.0
    %2518 = vmatprep.subr.mxu0 0.0
    %2519 = vmatpush1.msra.mxu0 0.0
    %2520 = vmatprep.subr.mxu0 0.0
    %2521 = vmatpush1.msra.mxu0 0.0
    %2522 = vmatprep.subr.mxu0 0.0
    %2523 = vmatpush1.msra.mxu0 0.0
    %2524 = vmatprep.subr.mxu0 0.0
    %2525 = vmatpush1.msra.mxu0 0.0
    %2526 = vmatprep.subr.mxu0 0.0
    %2527 = vmatpush1.msra.mxu0 0.0
    %2528 = vmatprep.subr.mxu0 0.0
    %2529 = vmatpush1.msra.mxu0 0.0
    %2530 = vmatprep.subr.mxu0 0.0
    %2531 = vmatpush1.msra.mxu0 0.0
    %2532 = vmatprep.subr.mxu0 0.0
    %2533 = vmatpush1.msra.mxu0 0.0
    %2534 = vmatprep.subr.mxu0 0.0
    %2535 = vmatpush1.msra.mxu0 0.0
    %2536 = vmatprep.subr.mxu0 0.0
    %2537 = vmatpush1.msra.mxu0 0.0
    %2538 = vmatprep.subr.mxu0 0.0
    %2539 = vmatpush1.msra.mxu0 0.0
    %2540 = vmatprep.subr.mxu0 0.0
    %2541 = vmatpush1.msra.mxu0 0.0
    %2542 = vmatprep.subr.mxu0 0.0
    %2543 = vmatpush1.msra.mxu0 0.0
    %2544 = vmatprep.subr.mxu0 0.0
    %2545 = vmatpush1.msra.mxu0 0.0
    %2546 = vmatprep.subr.mxu0 0.0
    %2547 = vmatpush1.msra.mxu0 0.0
    %2548 = vmatprep.subr.mxu0 0.0
    %2549 = vmatpush1.msra.mxu0 0.0
    %2550 = vmatprep.subr.mxu0 0.0
    %2551 = vmatpush1.msra.mxu0 0.0
    %2552 = vmatprep.subr.mxu0 0.0
    %2553 = vmatpush1.msra.mxu0 0.0
    %2554 = vmatprep.mubr.f32.mxu0 0.0
    %2555 = vmatmul.mubr.f32.gmra.mrb[0].mxu0 %v2488
    %v2556 = vpop.f32.mrb[0].mxu0
    %v2557 = vadd.f32 0.0, %v2556
    %v2558 = vpop.f32.mrb[0].mxu0
    %2559 = vdwg.mxu0
    %v2560 = vadd.f32 %v2557, %v1491
    %v2561 = vmax.f32 %v2560, 0.0
    %2563 = vrot.lane.b32.xlu0 %v2561, 32
    %v2564 = vpop.permute.xlu0 %2563
    %v2565 = vsel %vm1498, %v2564, 0
    %2567 = vmatprep.subr.mxu0 0.0
    %2568 = vmatpush1.msra.mxu0 %v1289
    %2569 = vmatprep.subr.mxu0 0.0
    %2570 = vmatpush1.msra.mxu0 0.0
    %2571 = vmatprep.subr.mxu0 0.0
    %2572 = vmatpush1.msra.mxu0 0.0
    %2573 = vmatprep.subr.mxu0 0.0
    %2574 = vmatpush1.msra.mxu0 0.0
    %2575 = vmatprep.subr.mxu0 0.0
    %2576 = vmatpush1.msra.mxu0 0.0
    %2577 = vmatprep.subr.mxu0 0.0
    %2578 = vmatpush1.msra.mxu0 0.0
    %2579 = vmatprep.subr.mxu0 0.0
    %2580 = vmatpush1.msra.mxu0 0.0
    %2581 = vmatprep.subr.mxu0 0.0
    %2582 = vmatpush1.msra.mxu0 0.0
    %2583 = vmatprep.subr.mxu0 0.0
    %2584 = vmatpush1.msra.mxu0 0.0
    %2585 = vmatprep.subr.mxu0 0.0
    %2586 = vmatpush1.msra.mxu0 0.0
    %2587 = vmatprep.subr.mxu0 0.0
    %2588 = vmatpush1.msra.mxu0 0.0
    %2589 = vmatprep.subr.mxu0 0.0
    %2590 = vmatpush1.msra.mxu0 0.0
    %2591 = vmatprep.subr.mxu0 0.0
    %2592 = vmatpush1.msra.mxu0 0.0
    %2593 = vmatprep.subr.mxu0 0.0
    %2594 = vmatpush1.msra.mxu0 0.0
    %2595 = vmatprep.subr.mxu0 0.0
    %2596 = vmatpush1.msra.mxu0 0.0
    %2597 = vmatprep.subr.mxu0 0.0
    %2598 = vmatpush1.msra.mxu0 0.0
    %2599 = vmatprep.subr.mxu0 0.0
    %2600 = vmatpush1.msra.mxu0 0.0
    %2601 = vmatprep.subr.mxu0 0.0
    %2602 = vmatpush1.msra.mxu0 0.0
    %2603 = vmatprep.subr.mxu0 0.0
    %2604 = vmatpush1.msra.mxu0 0.0
    %2605 = vmatprep.subr.mxu0 0.0
    %2606 = vmatpush1.msra.mxu0 0.0
    %2607 = vmatprep.subr.mxu0 0.0
    %2608 = vmatpush1.msra.mxu0 0.0
    %2609 = vmatprep.subr.mxu0 0.0
    %2610 = vmatpush1.msra.mxu0 0.0
    %2611 = vmatprep.subr.mxu0 0.0
    %2612 = vmatpush1.msra.mxu0 0.0
    %2613 = vmatprep.subr.mxu0 0.0
    %2614 = vmatpush1.msra.mxu0 0.0
    %2615 = vmatprep.subr.mxu0 0.0
    %2616 = vmatpush1.msra.mxu0 0.0
    %2617 = vmatprep.subr.mxu0 0.0
    %2618 = vmatpush1.msra.mxu0 0.0
    %2619 = vmatprep.subr.mxu0 0.0
    %2620 = vmatpush1.msra.mxu0 0.0
    %2621 = vmatprep.subr.mxu0 0.0
    %2622 = vmatpush1.msra.mxu0 0.0
    %2623 = vmatprep.subr.mxu0 0.0
    %2624 = vmatpush1.msra.mxu0 0.0
    %2625 = vmatprep.subr.mxu0 0.0
    %2626 = vmatpush1.msra.mxu0 0.0
    %2627 = vmatprep.subr.mxu0 0.0
    %2628 = vmatpush1.msra.mxu0 0.0
    %2629 = vmatprep.subr.mxu0 0.0
    %2630 = vmatpush1.msra.mxu0 0.0
    %2631 = vmatprep.mubr.f32.mxu0 0.0
    %2632 = vmatmul.mubr.f32.gmra.mrb[0].mxu0 %v2565
    %v2633 = vpop.f32.mrb[0].mxu0
    %v2634 = vadd.f32 %v1308, %v2633
    %v2635 = vpop.f32.mrb[0].mxu0
    %2636 = vdwg.mxu0
    %v2637 = vadd.f32 %v2424, %v2634
    %2639 = vrot.lane.b32.xlu0 %v2634, 32
    %v2640 = vpop.permute.xlu0 %2639
    %v2642 = vadd.f32 %v2429, %v2640
    %v2645 = vunpack.c.l.s4 1966171168
    %v2646 = vunpack.c.0.s8 %v2645
    %v2647 = vlaneseq
    %v2648 = vshrl.u32 %v2647, 7
    %v2649 = vsub.s32 %v2646, %v2648
    %v2650 = vrot.slane %v2642, %v2649
    %v2651 = vcombine.high %v2650, %v2650
    %v2653 = vunpack.c.l.s4 1966171168
    %v2654 = vunpack.c.0.s8 %v2653
    %v2655 = vlaneseq
    %v2656 = vshrl.u32 %v2655, 7
    %v2657 = vsub.s32 %v2654, %v2656
    %v2658 = vrot.slane %v2650, %v2657
    %v2660 = vunpack.c.l.s4 1966171168
    %v2661 = vunpack.c.0.s8 %v2660
    %v2662 = vlaneseq
    %v2663 = vshrl.u32 %v2662, 7
    %v2664 = vsub.s32 %v2661, %v2663
    %v2665 = vrot.slane %v2651, %v2664
    %2668 = vst.msk [vmem:[%s15 + $0x5] sm:$0x1] %vm1602, %v2658
    %2669 = vst.msk [vmem:[%s15 + $0xd] sm:$0x1] %vm1602, %v2665
    %v2670 = vsel %vm528, %v505, %v2637
    %v2671 = vadd.f32 %v2670, %v2557
    %v2672 = vxor.u32 %v2671, 2147483648
    %v2673 = vmul.f32 %v2672, 1.442695
    %v2674 = vpow.pop %v2673
    %v2675 = vadd.f32 %v2674, 1.0
    %v2676 = vrcp.pop %v2675
    %v2677 = vmul.f32 1.0, %v2676
    %v2678 = vadd.f32 %v2557, %v1295
    %2680 = vrot.lane.b32.xlu0 %v2678, 32
    %v2681 = vpop.permute.xlu0 %2680
    %v2683 = vmul.f32 %v2677, %v2681
    %2685 = vrot.lane.b32.xlu0 %v2683, 96
    %v2686 = vpop.permute.xlu0 %2685
    %v2688 = vadd.f32 %v2670, %v2686
    %v2689 = vtanh.pop %v2688
    %v2690 = vsub.f32 1.0, %v2677
    %2692 = vrot.lane.b32.xlu0 %v2689, 64
    %v2693 = vpop.permute.xlu0 %2692
    %v2695 = vmul.f32 %v2690, %v2693
    %v2696 = vmul.f32 %v2677, %v2484
    %v2697 = vadd.f32 %v2695, %v2696
    %2699 = vrot.lane.b32.xlu0 %v2697, 64
    %v2700 = vpop.permute.xlu0 %2699
    %v2701 = vsel %vm573, %v2700, 0
    %2703 = vmatprep.subr.mxu0 0.0
    %2704 = vmatpush1.msra.mxu0 %v1285
    %2705 = vmatprep.subr.mxu0 0.0
    %2706 = vmatpush1.msra.mxu0 %v1286
    %2707 = vmatprep.subr.mxu0 0.0
    %2708 = vmatpush1.msra.mxu0 %v1287
    %2709 = vmatprep.subr.mxu0 0.0
    %2710 = vmatpush1.msra.mxu0 %v1288
    %2711 = vmatprep.subr.mxu0 0.0
    %2712 = vmatpush1.msra.mxu0 0.0
    %2713 = vmatprep.subr.mxu0 0.0
    %2714 = vmatpush1.msra.mxu0 0.0
    %2715 = vmatprep.subr.mxu0 0.0
    %2716 = vmatpush1.msra.mxu0 0.0
    %2717 = vmatprep.subr.mxu0 0.0
    %2718 = vmatpush1.msra.mxu0 0.0
    %2719 = vmatprep.subr.mxu0 0.0
    %2720 = vmatpush1.msra.mxu0 0.0
    %2721 = vmatprep.subr.mxu0 0.0
    %2722 = vmatpush1.msra.mxu0 0.0
    %2723 = vmatprep.subr.mxu0 0.0
    %2724 = vmatpush1.msra.mxu0 0.0
    %2725 = vmatprep.subr.mxu0 0.0
    %2726 = vmatpush1.msra.mxu0 0.0
    %2727 = vmatprep.subr.mxu0 0.0
    %2728 = vmatpush1.msra.mxu0 0.0
    %2729 = vmatprep.subr.mxu0 0.0
    %2730 = vmatpush1.msra.mxu0 0.0
    %2731 = vmatprep.subr.mxu0 0.0
    %2732 = vmatpush1.msra.mxu0 0.0
    %2733 = vmatprep.subr.mxu0 0.0
    %2734 = vmatpush1.msra.mxu0 0.0
    %2735 = vmatprep.subr.mxu0 0.0
    %2736 = vmatpush1.msra.mxu0 0.0
    %2737 = vmatprep.subr.mxu0 0.0
    %2738 = vmatpush1.msra.mxu0 0.0
    %2739 = vmatprep.subr.mxu0 0.0
    %2740 = vmatpush1.msra.mxu0 0.0
    %2741 = vmatprep.subr.mxu0 0.0
    %2742 = vmatpush1.msra.mxu0 0.0
    %2743 = vmatprep.subr.mxu0 0.0
    %2744 = vmatpush1.msra.mxu0 0.0
    %2745 = vmatprep.subr.mxu0 0.0
    %2746 = vmatpush1.msra.mxu0 0.0
    %2747 = vmatprep.subr.mxu0 0.0
    %2748 = vmatpush1.msra.mxu0 0.0
    %2749 = vmatprep.subr.mxu0 0.0
    %2750 = vmatpush1.msra.mxu0 0.0
    %2751 = vmatprep.subr.mxu0 0.0
    %2752 = vmatpush1.msra.mxu0 0.0
    %2753 = vmatprep.subr.mxu0 0.0
    %2754 = vmatpush1.msra.mxu0 0.0
    %2755 = vmatprep.subr.mxu0 0.0
    %2756 = vmatpush1.msra.mxu0 0.0
    %2757 = vmatprep.subr.mxu0 0.0
    %2758 = vmatpush1.msra.mxu0 0.0
    %2759 = vmatprep.subr.mxu0 0.0
    %2760 = vmatpush1.msra.mxu0 0.0
    %2761 = vmatprep.subr.mxu0 0.0
    %2762 = vmatpush1.msra.mxu0 0.0
    %2763 = vmatprep.subr.mxu0 0.0
    %2764 = vmatpush1.msra.mxu0 0.0
    %2765 = vmatprep.subr.mxu0 0.0
    %2766 = vmatpush1.msra.mxu0 0.0
    %2767 = vmatprep.mubr.f32.mxu0 0.0
    %2768 = vmatmul.mubr.f32.gmra.mrb[0].mxu0 %v2701
    %v2769 = vpop.f32.mrb[0].mxu0
    %v2770 = vadd.f32 0.0, %v2769
    %v2771 = vpop.f32.mrb[0].mxu0
    %2772 = vdwg.mxu0
    %v2773 = vadd.f32 %v2770, %v1491
    %v2774 = vmax.f32 %v2773, 0.0
    %2776 = vrot.lane.b32.xlu0 %v2774, 32
    %v2777 = vpop.permute.xlu0 %2776
    %v2778 = vsel %vm1498, %v2777, 0
    %2780 = vmatprep.subr.mxu0 0.0
    %2781 = vmatpush1.msra.mxu0 %v1289
    %2782 = vmatprep.subr.mxu0 0.0
    %2783 = vmatpush1.msra.mxu0 0.0
    %2784 = vmatprep.subr.mxu0 0.0
    %2785 = vmatpush1.msra.mxu0 0.0
    %2786 = vmatprep.subr.mxu0 0.0
    %2787 = vmatpush1.msra.mxu0 0.0
    %2788 = vmatprep.subr.mxu0 0.0
    %2789 = vmatpush1.msra.mxu0 0.0
    %2790 = vmatprep.subr.mxu0 0.0
    %2791 = vmatpush1.msra.mxu0 0.0
    %2792 = vmatprep.subr.mxu0 0.0
    %2793 = vmatpush1.msra.mxu0 0.0
    %2794 = vmatprep.subr.mxu0 0.0
    %2795 = vmatpush1.msra.mxu0 0.0
    %2796 = vmatprep.subr.mxu0 0.0
    %2797 = vmatpush1.msra.mxu0 0.0
    %2798 = vmatprep.subr.mxu0 0.0
    %2799 = vmatpush1.msra.mxu0 0.0
    %2800 = vmatprep.subr.mxu0 0.0
    %2801 = vmatpush1.msra.mxu0 0.0
    %2802 = vmatprep.subr.mxu0 0.0
    %2803 = vmatpush1.msra.mxu0 0.0
    %2804 = vmatprep.subr.mxu0 0.0
    %2805 = vmatpush1.msra.mxu0 0.0
    %2806 = vmatprep.subr.mxu0 0.0
    %2807 = vmatpush1.msra.mxu0 0.0
    %2808 = vmatprep.subr.mxu0 0.0
    %2809 = vmatpush1.msra.mxu0 0.0
    %2810 = vmatprep.subr.mxu0 0.0
    %2811 = vmatpush1.msra.mxu0 0.0
    %2812 = vmatprep.subr.mxu0 0.0
    %2813 = vmatpush1.msra.mxu0 0.0
    %2814 = vmatprep.subr.mxu0 0.0
    %2815 = vmatpush1.msra.mxu0 0.0
    %2816 = vmatprep.subr.mxu0 0.0
    %2817 = vmatpush1.msra.mxu0 0.0
    %2818 = vmatprep.subr.mxu0 0.0
    %2819 = vmatpush1.msra.mxu0 0.0
    %2820 = vmatprep.subr.mxu0 0.0
    %2821 = vmatpush1.msra.mxu0 0.0
    %2822 = vmatprep.subr.mxu0 0.0
    %2823 = vmatpush1.msra.mxu0 0.0
    %2824 = vmatprep.subr.mxu0 0.0
    %2825 = vmatpush1.msra.mxu0 0.0
    %2826 = vmatprep.subr.mxu0 0.0
    %2827 = vmatpush1.msra.mxu0 0.0
    %2828 = vmatprep.subr.mxu0 0.0
    %2829 = vmatpush1.msra.mxu0 0.0
    %2830 = vmatprep.subr.mxu0 0.0
    %2831 = vmatpush1.msra.mxu0 0.0
    %2832 = vmatprep.subr.mxu0 0.0
    %2833 = vmatpush1.msra.mxu0 0.0
    %2834 = vmatprep.subr.mxu0 0.0
    %2835 = vmatpush1.msra.mxu0 0.0
    %2836 = vmatprep.subr.mxu0 0.0
    %2837 = vmatpush1.msra.mxu0 0.0
    %2838 = vmatprep.subr.mxu0 0.0
    %2839 = vmatpush1.msra.mxu0 0.0
    %2840 = vmatprep.subr.mxu0 0.0
    %2841 = vmatpush1.msra.mxu0 0.0
    %2842 = vmatprep.subr.mxu0 0.0
    %2843 = vmatpush1.msra.mxu0 0.0
    %2844 = vmatprep.mubr.f32.mxu0 0.0
    %2845 = vmatmul.mubr.f32.gmra.mrb[0].mxu0 %v2778
    %v2846 = vpop.f32.mrb[0].mxu0
    %v2847 = vadd.f32 %v1308, %v2846
    %v2848 = vpop.f32.mrb[0].mxu0
    %2849 = vdwg.mxu0
    %v2850 = vadd.f32 %v2637, %v2847
    %2852 = vrot.lane.b32.xlu0 %v2847, 32
    %v2853 = vpop.permute.xlu0 %2852
    %v2855 = vadd.f32 %v2642, %v2853
    %v2858 = vunpack.c.l.s4 1966171168
    %v2859 = vunpack.c.0.s8 %v2858
    %v2860 = vlaneseq
    %v2861 = vshrl.u32 %v2860, 7
    %v2862 = vsub.s32 %v2859, %v2861
    %v2863 = vrot.slane %v2855, %v2862
    %v2864 = vcombine.high %v2863, %v2863
    %v2866 = vunpack.c.l.s4 1966171168
    %v2867 = vunpack.c.0.s8 %v2866
    %v2868 = vlaneseq
    %v2869 = vshrl.u32 %v2868, 7
    %v2870 = vsub.s32 %v2867, %v2869
    %v2871 = vrot.slane %v2863, %v2870
    %v2873 = vunpack.c.l.s4 1966171168
    %v2874 = vunpack.c.0.s8 %v2873
    %v2875 = vlaneseq
    %v2876 = vshrl.u32 %v2875, 7
    %v2877 = vsub.s32 %v2874, %v2876
    %v2878 = vrot.slane %v2864, %v2877
    %2881 = vst.msk [vmem:[%s15 + $0x6] sm:$0x1] %vm1602, %v2871
    %2882 = vst.msk [vmem:[%s15 + $0xe] sm:$0x1] %vm1602, %v2878
    %v2883 = vsel %vm531, %v510, %v2850
    %v2884 = vadd.f32 %v2883, %v2770
    %v2885 = vxor.u32 %v2884, 2147483648
    %v2886 = vmul.f32 %v2885, 1.442695
    %v2887 = vpow.pop %v2886
    %v2888 = vadd.f32 %v2887, 1.0
    %v2889 = vrcp.pop %v2888
    %v2890 = vmul.f32 1.0, %v2889
    %v2891 = vadd.f32 %v2770, %v1295
    %2893 = vrot.lane.b32.xlu0 %v2891, 32
    %v2894 = vpop.permute.xlu0 %2893
    %v2896 = vmul.f32 %v2890, %v2894
    %2898 = vrot.lane.b32.xlu0 %v2896, 96
    %v2899 = vpop.permute.xlu0 %2898
    %v2901 = vadd.f32 %v2883, %v2899
    %v2902 = vtanh.pop %v2901
    %v2903 = vsub.f32 1.0, %v2890
    %2905 = vrot.lane.b32.xlu0 %v2902, 64
    %v2906 = vpop.permute.xlu0 %2905
    %v2908 = vmul.f32 %v2903, %v2906
    %v2909 = vmul.f32 %v2890, %v2697
    %v2910 = vadd.f32 %v2908, %v2909
    %2912 = vrot.lane.b32.xlu0 %v2910, 64
    %v2913 = vpop.permute.xlu0 %2912
    %v2914 = vsel %vm573, %v2913, 0
    %2916 = vmatprep.subr.mxu0 0.0
    %2917 = vmatpush1.msra.mxu0 %v1285
    %2918 = vmatprep.subr.mxu0 0.0
    %2919 = vmatpush1.msra.mxu0 %v1286
    %2920 = vmatprep.subr.mxu0 0.0
    %2921 = vmatpush1.msra.mxu0 %v1287
    %2922 = vmatprep.subr.mxu0 0.0
    %2923 = vmatpush1.msra.mxu0 %v1288
    %2924 = vmatprep.subr.mxu0 0.0
    %2925 = vmatpush1.msra.mxu0 0.0
    %2926 = vmatprep.subr.mxu0 0.0
    %2927 = vmatpush1.msra.mxu0 0.0
    %2928 = vmatprep.subr.mxu0 0.0
    %2929 = vmatpush1.msra.mxu0 0.0
    %2930 = vmatprep.subr.mxu0 0.0
    %2931 = vmatpush1.msra.mxu0 0.0
    %2932 = vmatprep.subr.mxu0 0.0
    %2933 = vmatpush1.msra.mxu0 0.0
    %2934 = vmatprep.subr.mxu0 0.0
    %2935 = vmatpush1.msra.mxu0 0.0
    %2936 = vmatprep.subr.mxu0 0.0
    %2937 = vmatpush1.msra.mxu0 0.0
    %2938 = vmatprep.subr.mxu0 0.0
    %2939 = vmatpush1.msra.mxu0 0.0
    %2940 = vmatprep.subr.mxu0 0.0
    %2941 = vmatpush1.msra.mxu0 0.0
    %2942 = vmatprep.subr.mxu0 0.0
    %2943 = vmatpush1.msra.mxu0 0.0
    %2944 = vmatprep.subr.mxu0 0.0
    %2945 = vmatpush1.msra.mxu0 0.0
    %2946 = vmatprep.subr.mxu0 0.0
    %2947 = vmatpush1.msra.mxu0 0.0
    %2948 = vmatprep.subr.mxu0 0.0
    %2949 = vmatpush1.msra.mxu0 0.0
    %2950 = vmatprep.subr.mxu0 0.0
    %2951 = vmatpush1.msra.mxu0 0.0
    %2952 = vmatprep.subr.mxu0 0.0
    %2953 = vmatpush1.msra.mxu0 0.0
    %2954 = vmatprep.subr.mxu0 0.0
    %2955 = vmatpush1.msra.mxu0 0.0
    %2956 = vmatprep.subr.mxu0 0.0
    %2957 = vmatpush1.msra.mxu0 0.0
    %2958 = vmatprep.subr.mxu0 0.0
    %2959 = vmatpush1.msra.mxu0 0.0
    %2960 = vmatprep.subr.mxu0 0.0
    %2961 = vmatpush1.msra.mxu0 0.0
    %2962 = vmatprep.subr.mxu0 0.0
    %2963 = vmatpush1.msra.mxu0 0.0
    %2964 = vmatprep.subr.mxu0 0.0
    %2965 = vmatpush1.msra.mxu0 0.0
    %2966 = vmatprep.subr.mxu0 0.0
    %2967 = vmatpush1.msra.mxu0 0.0
    %2968 = vmatprep.subr.mxu0 0.0
    %2969 = vmatpush1.msra.mxu0 0.0
    %2970 = vmatprep.subr.mxu0 0.0
    %2971 = vmatpush1.msra.mxu0 0.0
    %2972 = vmatprep.subr.mxu0 0.0
    %2973 = vmatpush1.msra.mxu0 0.0
    %2974 = vmatprep.subr.mxu0 0.0
    %2975 = vmatpush1.msra.mxu0 0.0
    %2976 = vmatprep.subr.mxu0 0.0
    %2977 = vmatpush1.msra.mxu0 0.0
    %2978 = vmatprep.subr.mxu0 0.0
    %2979 = vmatpush1.msra.mxu0 0.0
    %2980 = vmatprep.mubr.f32.mxu0 0.0
    %2981 = vmatmul.mubr.f32.gmra.mrb[0].mxu0 %v2914
    %v2982 = vpop.f32.mrb[0].mxu0
    %v2983 = vadd.f32 0.0, %v2982
    %v2984 = vpop.f32.mrb[0].mxu0
    %2985 = vdwg.mxu0
    %v2986 = vadd.f32 %v2983, %v1491
    %v2987 = vmax.f32 %v2986, 0.0
    %2989 = vrot.lane.b32.xlu0 %v2987, 32
    %v2990 = vpop.permute.xlu0 %2989
    %v2991 = vsel %vm1498, %v2990, 0
    %2993 = vmatprep.subr.mxu0 0.0
    %2994 = vmatpush1.msra.mxu0 %v1289
    %2995 = vmatprep.subr.mxu0 0.0
    %2996 = vmatpush1.msra.mxu0 0.0
    %2997 = vmatprep.subr.mxu0 0.0
    %2998 = vmatpush1.msra.mxu0 0.0
    %2999 = vmatprep.subr.mxu0 0.0
    %3000 = vmatpush1.msra.mxu0 0.0
    %3001 = vmatprep.subr.mxu0 0.0
    %3002 = vmatpush1.msra.mxu0 0.0
    %3003 = vmatprep.subr.mxu0 0.0
    %3004 = vmatpush1.msra.mxu0 0.0
    %3005 = vmatprep.subr.mxu0 0.0
    %3006 = vmatpush1.msra.mxu0 0.0
    %3007 = vmatprep.subr.mxu0 0.0
    %3008 = vmatpush1.msra.mxu0 0.0
    %3009 = vmatprep.subr.mxu0 0.0
    %3010 = vmatpush1.msra.mxu0 0.0
    %3011 = vmatprep.subr.mxu0 0.0
    %3012 = vmatpush1.msra.mxu0 0.0
    %3013 = vmatprep.subr.mxu0 0.0
    %3014 = vmatpush1.msra.mxu0 0.0
    %3015 = vmatprep.subr.mxu0 0.0
    %3016 = vmatpush1.msra.mxu0 0.0
    %3017 = vmatprep.subr.mxu0 0.0
    %3018 = vmatpush1.msra.mxu0 0.0
    %3019 = vmatprep.subr.mxu0 0.0
    %3020 = vmatpush1.msra.mxu0 0.0
    %3021 = vmatprep.subr.mxu0 0.0
    %3022 = vmatpush1.msra.mxu0 0.0
    %3023 = vmatprep.subr.mxu0 0.0
    %3024 = vmatpush1.msra.mxu0 0.0
    %3025 = vmatprep.subr.mxu0 0.0
    %3026 = vmatpush1.msra.mxu0 0.0
    %3027 = vmatprep.subr.mxu0 0.0
    %3028 = vmatpush1.msra.mxu0 0.0
    %3029 = vmatprep.subr.mxu0 0.0
    %3030 = vmatpush1.msra.mxu0 0.0
    %3031 = vmatprep.subr.mxu0 0.0
    %3032 = vmatpush1.msra.mxu0 0.0
    %3033 = vmatprep.subr.mxu0 0.0
    %3034 = vmatpush1.msra.mxu0 0.0
    %3035 = vmatprep.subr.mxu0 0.0
    %3036 = vmatpush1.msra.mxu0 0.0
    %3037 = vmatprep.subr.mxu0 0.0
    %3038 = vmatpush1.msra.mxu0 0.0
    %3039 = vmatprep.subr.mxu0 0.0
    %3040 = vmatpush1.msra.mxu0 0.0
    %3041 = vmatprep.subr.mxu0 0.0
    %3042 = vmatpush1.msra.mxu0 0.0
    %3043 = vmatprep.subr.mxu0 0.0
    %3044 = vmatpush1.msra.mxu0 0.0
    %3045 = vmatprep.subr.mxu0 0.0
    %3046 = vmatpush1.msra.mxu0 0.0
    %3047 = vmatprep.subr.mxu0 0.0
    %3048 = vmatpush1.msra.mxu0 0.0
    %3049 = vmatprep.subr.mxu0 0.0
    %3050 = vmatpush1.msra.mxu0 0.0
    %3051 = vmatprep.subr.mxu0 0.0
    %3052 = vmatpush1.msra.mxu0 0.0
    %3053 = vmatprep.subr.mxu0 0.0
    %3054 = vmatpush1.msra.mxu0 0.0
    %3055 = vmatprep.subr.mxu0 0.0
    %3056 = vmatpush1.msra.mxu0 0.0
    %3057 = vmatprep.mubr.f32.mxu0 0.0
    %3058 = vmatmul.mubr.f32.gmra.mrb[0].mxu0 %v2991
    %v3059 = vpop.f32.mrb[0].mxu0
    %v3060 = vadd.f32 %v1308, %v3059
    %v3061 = vpop.f32.mrb[0].mxu0
    %3062 = vdwg.mxu0
    %3064 = vrot.lane.b32.xlu0 %v3060, 32
    %v3065 = vpop.permute.xlu0 %3064
    %v3067 = vadd.f32 %v2855, %v3065
    %v3070 = vunpack.c.l.s4 1966171168
    %v3071 = vunpack.c.0.s8 %v3070
    %v3072 = vlaneseq
    %v3073 = vshrl.u32 %v3072, 7
    %v3074 = vsub.s32 %v3071, %v3073
    %v3075 = vrot.slane %v3067, %v3074
    %v3076 = vcombine.high %v3075, %v3075
    %v3078 = vunpack.c.l.s4 1966171168
    %v3079 = vunpack.c.0.s8 %v3078
    %v3080 = vlaneseq
    %v3081 = vshrl.u32 %v3080, 7
    %v3082 = vsub.s32 %v3079, %v3081
    %v3083 = vrot.slane %v3075, %v3082
    %v3085 = vunpack.c.l.s4 1966171168
    %v3086 = vunpack.c.0.s8 %v3085
    %v3087 = vlaneseq
    %v3088 = vshrl.u32 %v3087, 7
    %v3089 = vsub.s32 %v3086, %v3088
    %v3090 = vrot.slane %v3076, %v3089
    %3093 = vst.msk [vmem:[%s15 + $0x7] sm:$0x1] %vm1602, %v3083
    %3094 = vst.msk [vmem:[%s15 + $0xf] sm:$0x1] %vm1602, %v3090
    // Predicated region
    $region98: #{motion_ae_forward.1} parent=1 // pred_check
      _
    $region99: #{motion_ae_forward.1} parent=1 // pred_check_branch
      %3096 = sbr.rel (0) target = $region101
    $region100: #{motion_ae_forward.1} parent=1 // pred_region
      _
    $region101: #{motion_ae_forward.1} parent=1 // pred_fallthru
      _
    // Predicated region
    $region102: #{motion_ae_forward.1} parent=1 // pred_check
      _
    $region103: #{motion_ae_forward.1} parent=1 // pred_check_branch
      %3098 = sbr.rel (0) target = $region105
    $region104: #{motion_ae_forward.1} parent=1 // pred_region
      _
    $region105: #{motion_ae_forward.1} parent=1 // pred_fallthru
      _
    %3099 = vsyncpa [#allocation3], 1
    %3100 = vsyncpa [#allocation7], 1
    %3101 = vsyncpa [#allocation10], 1
    %3102 = vsyncpa [#allocation13], 1
    %3103 = vsyncpa [#allocation16], 1
    %3104 = vsyncpa [#allocation4], 1

</llo_original>
